<compile_context>
chip_gen: v7x
topology: tpu7x:2x2x1
jax: 0.10.0
libtpu: 0.0.40
codegen_flags: <defaults>
</compile_context>

<pallas_src>
import functools

import jax
import jax.numpy as jnp
import numpy as np
from jax.experimental import pallas as pl
from jax.experimental.pallas import tpu as pltpu

EPS = 1e-5
H1 = 400
H2 = 300

_X_CACHE_BUDGET_BYTES = 8 * 1024 * 1024   # VMEM budget for the resident x cache
_VMEM_LIMIT_BYTES = 48 * 1024 * 1024      # > scoped default, < v7x 64 MiB physical


def _ceil8(n):
    return -(-n // 8) * 8


def _pk_layout(xDim):
    """Offsets of each small per-feature vector inside the packed (P, 1) column."""
    offs, off = {}, 0
    for name, ln in (("g0", xDim), ("be0", xDim), ("b1", H1), ("g1", H1),
                     ("be1", H1), ("b2", H2), ("w3", H2), ("b3", 1)):
        offs[name] = off
        off += _ceil8(ln)          # 8-aligned segments -> aligned sublane slices
    return offs, off


def _pick_tile_b(B, max_tile=2048):
    """Largest lane-aligned batch tile; multiples of 512 preferred (MXU
    N-granularity is 256 on v6e/v7x).  Single full-batch tile as fallback."""
    for cand in (2048, 1024, 512, 256, 128):
        if cand <= max_tile and B % cand == 0:
            return cand
    if B <= max_tile:
        return B                   # block dim == full array dim: always legal
    raise ValueError(
        f"batch size {B} must be a multiple of 128 or <= max_tile_b={max_tile}")


def pack_params(p):
    """Kernel-ready operands: bf16 weights + one packed f32 parameter column."""
    xDim = p["W1"].shape[1]
    offs, total = _pk_layout(xDim)
    pieces = {"g0": p["g0"], "be0": p["be0"], "b1": p["b1"], "g1": p["g1"],
              "be1": p["be1"], "b2": p["b2"], "w3": p["W3"].reshape(-1),
              "b3": p["b3"]}
    pk = jnp.zeros((total, 1), jnp.float32)
    for name, v in pieces.items():
        v = jnp.asarray(v, jnp.float32).reshape(-1, 1)
        pk = pk.at[offs[name]:offs[name] + v.shape[0]].set(v)
    return {
        "w1":  p["W1"].astype(jnp.bfloat16),            # (400, xDim)  (out, in)
        "w2a": p["W2"][:, :H1].astype(jnp.bfloat16),    # (300, 400)
        "w2b": p["W2"][:, H1:].astype(jnp.bfloat16),    # (300, uDim)
        "pk":  pk,                                      # (P, 1) f32
    }


def critic_bn_forward(x, u, packed, *, max_tile_b=2048):
    B, xDim = x.shape
    _, uDim = u.shape
    w1, w2a, w2b, pk = packed["w1"], packed["w2a"], packed["w2b"], packed["pk"]
    assert w1.shape == (H1, xDim) and w2a.shape == (H2, H1)
    assert w2b.shape == (H2, uDim)
    offs, P = _pk_layout(xDim)
    assert pk.shape == (P, 1)

    tile_b = _pick_tile_b(B, max_tile_b)
    n_tiles = B // tile_b
    inv_b = 1.0 / B
    # Cache x in VMEM during the stats phase so the apply phase does not re-read
    # it from HBM (only when it fits a small budget and there is >1 tile; with a
    # single tile the block is already resident because its index is constant).
    cache_x = (n_tiles > 1) and (xDim * B * 4 <= _X_CACHE_BUDGET_BYTES)

    def kernel(xT_ref, uT_ref, w1_ref, w2a_ref, w2b_ref, pk_ref, y_ref,
               s0a, s0b, gram, s1a, s1b, *xc_maybe):
        xc = xc_maybe[0] if cache_x else None
        p = pl.program_id(0)              # 0 = stats pass, 1 = apply pass
        t = pl.program_id(1)              # batch tile
        last = pl.num_programs(1) - 1

        def col(name, n):                 # (n, 1) f32 slice of the packed column
            off = offs[name]
            return pk_ref[off:off + n, :]

        # ---------------- phase 0: full-batch statistics of x ---------------
        @pl.when(p == 0)
        def _():
            @pl.when(t == 0)
            def _():
                s0a[...] = jnp.zeros_like(s0a)
                s0b[...] = jnp.zeros_like(s0b)
                gram[...] = jnp.zeros_like(gram)

            xt = xT_ref[...]                                    # (xDim, tb) f32
            if cache_x:
                xc[t] = xt
            s0a[...] += jnp.sum(xt, axis=1, keepdims=True)
            s0b[...] += jnp.sum(xt * xt, axis=1, keepdims=True)
            gram[...] += jax.lax.dot_general(                    # X X^T in f32
                xt, xt, dimension_numbers=(((1,), (1,)), ((), ())),
                preferred_element_type=jnp.float32)

            # Last tile: derive BN0's scale and, through h1 = W1 diag(scale0) x
            # + const, BN1's scale/shift.  Additive constants (beta0, b1)
            # cancel exactly under BatchNorm, so they never appear.
            @pl.when(t == last)
            def _():
                mean0 = s0a[...] * inv_b                        # (xDim, 1)
                var0 = jnp.maximum(s0b[...] * inv_b - mean0 * mean0, 0.0)
                scale0 = col("g0", xDim) * jax.lax.rsqrt(var0 + EPS)

                # (xDim,1) column -> (1,xDim) row without a transpose op.
                eye = (jax.lax.broadcasted_iota(jnp.int32, (xDim, xDim), 0) ==
                       jax.lax.broadcasted_iota(jnp.int32, (xDim, xDim), 1))

                def as_row(col_vec):
                    return jnp.sum(jnp.where(eye, col_vec, 0.0),
                                   axis=0, keepdims=True)

                a_mat = w1_ref[...].astype(jnp.float32) * as_row(scale0)  # (H1,xDim)
                m1p = jnp.sum(a_mat * as_row(mean0), axis=1, keepdims=True)
                t1 = jnp.dot(a_mat, gram[...] * inv_b,
                             preferred_element_type=jnp.float32)          # (H1,xDim)
                var1 = jnp.maximum(
                    jnp.sum(a_mat * t1, axis=1, keepdims=True) - m1p * m1p, 0.0)
                scale1 = col("g1", H1) * jax.lax.rsqrt(var1 + EPS)

                s0a[...] = scale0                               # reused in phase 1
                s1a[...] = scale1
                s1b[...] = col("be1", H1) - m1p * scale1

        # ---------------- phase 1: apply the network, write y ---------------
        @pl.when(p == 1)
        def _():
            xt = xc[t] if cache_x else xT_ref[...]              # (xDim, tb) f32
            xs = (xt * s0a[...]).astype(jnp.bfloat16)           # x * scale0
            h1 = jnp.dot(w1_ref[...], xs,
                         preferred_element_type=jnp.float32)    # (H1, tb) f32
            h1r = jnp.maximum(h1 * s1a[...] + s1b[...], 0.0)    # BN1 + relu
            h2 = (jnp.dot(w2a_ref[...], h1r.astype(jnp.bfloat16),
                          preferred_element_type=jnp.float32)
                  + jnp.dot(w2b_ref[...], uT_ref[...],
                            preferred_element_type=jnp.float32)
                  + col("b2", H2))
            h2r = jnp.maximum(h2, 0.0)
            # layer3 (out_features = 1): VPU multiply + sublane reduction gives
            # a lane-dense (1, tile_b) slab -> unmasked stores.
            y = jnp.sum(h2r * col("w3", H2), axis=0, keepdims=True) + col("b3", 1)
            y_ref[...] = y

    xT = x.astype(jnp.float32).T               # (xDim, B) — layout plumbing only
    uT = u.T.astype(jnp.bfloat16)              # (uDim, B) — MXU operand only

    if cache_x:
        x_index = lambda p, t: (0, t * (1 - p))   # no x re-DMA in the apply pass
    else:
        x_index = lambda p, t: (0, t)

    scratch = [
        pltpu.VMEM((xDim, 1), jnp.float32),       # sum(x)   -> scale0
        pltpu.VMEM((xDim, 1), jnp.float32),       # sum(x^2)
        pltpu.VMEM((xDim, xDim), jnp.float32),    # Gram(x)
        pltpu.VMEM((H1, 1), jnp.float32),         # scale1
        pltpu.VMEM((H1, 1), jnp.float32),         # shift1 (b1/beta folded out)
    ]
    if cache_x:
        scratch.append(pltpu.VMEM((n_tiles, xDim, tile_b), jnp.float32))

    yT = pl.pallas_call(
        kernel,
        out_shape=jax.ShapeDtypeStruct((1, B), jnp.float32),
        grid=(2, n_tiles),
        in_specs=[
            pl.BlockSpec((xDim, tile_b), x_index),
            pl.BlockSpec((uDim, tile_b), lambda p, t: (0, t * p)),  # apply pass only
            pl.BlockSpec((H1, xDim), lambda p, t: (0, 0)),          # resident weights
            pl.BlockSpec((H2, H1), lambda p, t: (0, 0)),
            pl.BlockSpec((H2, uDim), lambda p, t: (0, 0)),
            pl.BlockSpec((P, 1), lambda p, t: (0, 0)),
        ],
        out_specs=pl.BlockSpec((1, tile_b), lambda p, t: (0, t * p)),
        scratch_shapes=scratch,
        compiler_params=pltpu.CompilerParams(
            # Phases are ordered and BN statistics accumulate in scratch across
            # batch tiles, so both grid axes stay sequential.
            # TODO(synk): v7x dual-TensorCore — split into a stats kernel (per-
            # core partial sums combined in plain JAX) + an apply kernel whose
            # batch axis is "parallel".
            dimension_semantics=("arbitrary", "arbitrary"),
            vmem_limit_bytes=_VMEM_LIMIT_BYTES),
    )(xT, uT, w1, w2a, w2b, pk)

    return yT.reshape(B, 1)


def init_params(key, xDim, uDim):
    """Deterministic synthetic init matching CriticBN.__init__ (PyTorch layouts)."""
    ks = jax.random.split(key, 6)
    f = jnp.float32

    def uni(k, shape, bound):
        return jax.random.uniform(k, shape, dtype=f, minval=-bound, maxval=bound)

    return {
        "g0": jnp.ones((xDim,), f), "be0": jnp.zeros((xDim,), f),
        "g1": jnp.ones((H1,), f), "be1": jnp.zeros((H1,), f),
        "W1": uni(ks[0], (H1, xDim), 1.0 / np.sqrt(xDim)),
        "b1": uni(ks[1], (H1,), 1.0 / np.sqrt(xDim)),
        "W2": uni(ks[2], (H2, H1 + uDim), 1.0 / np.sqrt(H1 + uDim)),
        "b2": uni(ks[3], (H2,), 1.0 / np.sqrt(H1 + uDim)),
        "W3": uni(ks[4], (1, H2), 3.0e-3),
        "b3": uni(ks[5], (1,), 3.0e-3),
    }


def critic_bn_reference(x, u, p):
    """Plain-JAX reference of the PyTorch forward (training-mode BN), using the
    same bf16-operand / f32-accumulate matmul numerics as the kernel."""
    bf16, f32 = jnp.bfloat16, jnp.float32
    mean0 = jnp.mean(x, axis=0, keepdims=True)
    var0 = jnp.mean((x - mean0) ** 2, axis=0, keepdims=True)
    x_bn = (x - mean0) * jax.lax.rsqrt(var0 + EPS) * p["g0"] + p["be0"]
    h1 = jnp.dot(x_bn.astype(bf16), p["W1"].T.astype(bf16),
                 preferred_element_type=f32) + p["b1"]
    mean1 = jnp.mean(h1, axis=0, keepdims=True)
    var1 = jnp.mean((h1 - mean1) ** 2, axis=0, keepdims=True)
    h1r = jnp.maximum((h1 - mean1) * jax.lax.rsqrt(var1 + EPS) * p["g1"] + p["be1"],
                      0.0)
    h2_in = jnp.concatenate([h1r, u], axis=1)
    h2 = jnp.maximum(jnp.dot(h2_in.astype(bf16), p["W2"].T.astype(bf16),
                             preferred_element_type=f32) + p["b2"], 0.0)
    return jnp.dot(h2, p["W3"].T) + p["b3"]


if __name__ == "__main__":
    B, xDim, uDim = 256, 16, 8            # small demo shapes
    key = jax.random.PRNGKey(0)
    kx, ku, kp = jax.random.split(key, 3)
    x = jax.random.normal(kx, (B, xDim), dtype=jnp.float32)
    u = jax.random.normal(ku, (B, uDim), dtype=jnp.float32)
    params = init_params(kp, xDim, uDim)
    packed = pack_params(params)           # pack/cast once, reuse across calls

    y_ref = critic_bn_reference(x, u, params)

    # Default tiling: B fits a single 256-wide tile (grid = (2, 1)).
    y = jax.block_until_ready(jax.jit(critic_bn_forward)(x, u, packed))
    np.testing.assert_allclose(np.asarray(y), np.asarray(y_ref),
                               rtol=2e-2, atol=2e-3)
    assert y.shape == (B, 1)

    # Multi-tile path: forces 2 tiles of 128 to exercise cross-tile statistics
    # accumulation and the VMEM x-cache (still tiny shapes).
    fwd_tiled = jax.jit(functools.partial(critic_bn_forward, max_tile_b=128))
    y2 = jax.block_until_ready(fwd_tiled(x, u, packed))
    np.testing.assert_allclose(np.asarray(y2), np.asarray(y_ref),
                               rtol=2e-2, atol=2e-3)

    print("KERNEL_OK")
</pallas_src>

<mosaic_0001>
module attributes {stable_mosaic.version = 11 : i64} {
  func.func @kernel(%arg0: i32, %arg1: i32, %arg2: memref<16x256xf32, #tpu.memory_space<vmem>>, %arg3: memref<8x256xbf16, #tpu.memory_space<vmem>>, %arg4: memref<400x16xbf16, #tpu.memory_space<vmem>>, %arg5: memref<300x400xbf16, #tpu.memory_space<vmem>>, %arg6: memref<300x8xbf16, #tpu.memory_space<vmem>>, %arg7: memref<1848x1xf32, #tpu.memory_space<vmem>>, %arg8: memref<1x256xf32, #tpu.memory_space<vmem>>, %arg9: memref<16x1xf32, #tpu.memory_space<vmem>>, %arg10: memref<16x1xf32, #tpu.memory_space<vmem>>, %arg11: memref<16x16xf32, #tpu.memory_space<vmem>>, %arg12: memref<400x1xf32, #tpu.memory_space<vmem>>, %arg13: memref<400x1xf32, #tpu.memory_space<vmem>>) attributes {dimension_semantics = [#tpu.dimension_semantics<arbitrary>, #tpu.dimension_semantics<arbitrary>], iteration_bounds = array<i64: 2, 1>, scalar_prefetch = 0 : i64, scratch_operands = 5 : i64, tpu.core_type = #tpu.core_type<tc>, window_params = [{transform_indices = @transform_0, window_bounds = array<i64: 16, 256>}, {transform_indices = @transform_1, window_bounds = array<i64: 8, 256>}, {pipeline_mode = #tpu.pipeline_mode<synchronous>, transform_indices = @transform_2, window_bounds = array<i64: 400, 16>}, {pipeline_mode = #tpu.pipeline_mode<synchronous>, transform_indices = @transform_3, window_bounds = array<i64: 300, 400>}, {pipeline_mode = #tpu.pipeline_mode<synchronous>, transform_indices = @transform_4, window_bounds = array<i64: 300, 8>}, {pipeline_mode = #tpu.pipeline_mode<synchronous>, transform_indices = @transform_5, window_bounds = array<i64: 1848, 1>}, {transform_indices = @transform_6, window_bounds = array<i64: 1, 256>}]} {
    %c0_i32 = arith.constant 0 : i32
    %0 = arith.cmpi eq, %arg0, %c0_i32 : i32
    %1 = arith.extui %0 : i1 to i32
    %c0_i32_0 = arith.constant 0 : i32
    %2 = arith.cmpi ne, %1, %c0_i32_0 : i32
    scf.if %2 {
      %c0_i32_2 = arith.constant 0 : i32
      %6 = arith.cmpi eq, %arg1, %c0_i32_2 : i32
      %7 = arith.extui %6 : i1 to i32
      %c0_i32_3 = arith.constant 0 : i32
      %8 = arith.cmpi ne, %7, %c0_i32_3 : i32
      scf.if %8 {
        %cst_21 = arith.constant 0.000000e+00 : f32
        %28 = vector.broadcast %cst_21 : f32 to vector<16x1xf32>
        %c0_22 = arith.constant 0 : index
        %c0_23 = arith.constant 0 : index
        %29 = vector.load %arg9[%c0_22, %c0_23] : memref<16x1xf32, #tpu.memory_space<vmem>>, vector<16x1xf32>
        tpu.vector_store %arg9[%c0_22, %c0_23], %28 {strides = array<i32>} : memref<16x1xf32, #tpu.memory_space<vmem>>, vector<16x1xf32>,
        %cst_24 = arith.constant 0.000000e+00 : f32
        %30 = vector.broadcast %cst_24 : f32 to vector<16x1xf32>
        %c0_25 = arith.constant 0 : index
        %c0_26 = arith.constant 0 : index
        %31 = vector.load %arg10[%c0_25, %c0_26] : memref<16x1xf32, #tpu.memory_space<vmem>>, vector<16x1xf32>
        tpu.vector_store %arg10[%c0_25, %c0_26], %30 {strides = array<i32>} : memref<16x1xf32, #tpu.memory_space<vmem>>, vector<16x1xf32>,
        %cst_27 = arith.constant 0.000000e+00 : f32
        %32 = vector.broadcast %cst_27 : f32 to vector<16x16xf32>
        %c0_28 = arith.constant 0 : index
        %c0_29 = arith.constant 0 : index
        %33 = vector.load %arg11[%c0_28, %c0_29] : memref<16x16xf32, #tpu.memory_space<vmem>>, vector<16x16xf32>
        tpu.vector_store %arg11[%c0_28, %c0_29], %32 {strides = array<i32>} : memref<16x16xf32, #tpu.memory_space<vmem>>, vector<16x16xf32>,
      } else {
      }
      %c0 = arith.constant 0 : index
      %c0_4 = arith.constant 0 : index
      %9 = vector.load %arg2[%c0, %c0_4] : memref<16x256xf32, #tpu.memory_space<vmem>>, vector<16x256xf32>
      %c0_5 = arith.constant 0 : index
      %c0_6 = arith.constant 0 : index
      %10 = vector.load %arg9[%c0_5, %c0_6] : memref<16x1xf32, #tpu.memory_space<vmem>>, vector<16x1xf32>
      %cst = arith.constant dense<0.000000e+00> : vector<16xf32>
      %11 = vector.multi_reduction <add>, %9, %cst [1] : vector<16x256xf32> to vector<16xf32>
      %12 = vector.shape_cast %11 : vector<16xf32> to vector<16x1xf32>
      %13 = arith.addf %10, %12 : vector<16x1xf32>
      %c0_7 = arith.constant 0 : index
      %c0_8 = arith.constant 0 : index
      %14 = vector.load %arg9[%c0_7, %c0_8] : memref<16x1xf32, #tpu.memory_space<vmem>>, vector<16x1xf32>
      tpu.vector_store %arg9[%c0_7, %c0_8], %13 {strides = array<i32>} : memref<16x1xf32, #tpu.memory_space<vmem>>, vector<16x1xf32>,
      %c0_9 = arith.constant 0 : index
      %c0_10 = arith.constant 0 : index
      %15 = vector.load %arg10[%c0_9, %c0_10] : memref<16x1xf32, #tpu.memory_space<vmem>>, vector<16x1xf32>
      %16 = arith.mulf %9, %9 : vector<16x256xf32>
      %cst_11 = arith.constant dense<0.000000e+00> : vector<16xf32>
      %17 = vector.multi_reduction <add>, %16, %cst_11 [1] : vector<16x256xf32> to vector<16xf32>
      %18 = vector.shape_cast %17 : vector<16xf32> to vector<16x1xf32>
      %19 = arith.addf %15, %18 : vector<16x1xf32>
      %c0_12 = arith.constant 0 : index
      %c0_13 = arith.constant 0 : index
      %20 = vector.load %arg10[%c0_12, %c0_13] : memref<16x1xf32, #tpu.memory_space<vmem>>, vector<16x1xf32>
      tpu.vector_store %arg10[%c0_12, %c0_13], %19 {strides = array<i32>} : memref<16x1xf32, #tpu.memory_space<vmem>>, vector<16x1xf32>,
      %c0_14 = arith.constant 0 : index
      %c0_15 = arith.constant 0 : index
      %21 = vector.load %arg11[%c0_14, %c0_15] : memref<16x16xf32, #tpu.memory_space<vmem>>, vector<16x16xf32>
      %cst_16 = arith.constant dense<0.000000e+00> : vector<16x16xf32>
      %22 = tpu.matmul %9, %9, %cst_16 {dimension_numbers = #tpu.dot_dimension_numbers<[1], [1], [0], [0], [0, 0, 1, 0], [], []>} : vector<16x256xf32>, vector<16x256xf32>, vector<16x16xf32> -> vector<16x16xf32>
      %23 = arith.addf %21, %22 : vector<16x16xf32>
      %c0_17 = arith.constant 0 : index
      %c0_18 = arith.constant 0 : index
      %24 = vector.load %arg11[%c0_17, %c0_18] : memref<16x16xf32, #tpu.memory_space<vmem>>, vector<16x16xf32>
      tpu.vector_store %arg11[%c0_17, %c0_18], %23 {strides = array<i32>} : memref<16x16xf32, #tpu.memory_space<vmem>>, vector<16x16xf32>,
      %c0_i32_19 = arith.constant 0 : i32
      %25 = arith.cmpi eq, %arg1, %c0_i32_19 : i32
      %26 = arith.extui %25 : i1 to i32
      %c0_i32_20 = arith.constant 0 : i32
      %27 = arith.cmpi ne, %26, %c0_i32_20 : i32
      scf.if %27 {
        %c0_21 = arith.constant 0 : index
        %c0_22 = arith.constant 0 : index
        %28 = vector.load %arg9[%c0_21, %c0_22] : memref<16x1xf32, #tpu.memory_space<vmem>>, vector<16x1xf32>
        %cst_23 = arith.constant 3.906250e-03 : f32
        %29 = vector.broadcast %cst_23 : f32 to vector<16x1xf32>
        %30 = arith.mulf %28, %29 : vector<16x1xf32>
        %c0_24 = arith.constant 0 : index
        %c0_25 = arith.constant 0 : index
        %31 = vector.load %arg10[%c0_24, %c0_25] : memref<16x1xf32, #tpu.memory_space<vmem>>, vector<16x1xf32>
        %cst_26 = arith.constant 3.906250e-03 : f32
        %32 = vector.broadcast %cst_26 : f32 to vector<16x1xf32>
        %33 = arith.mulf %31, %32 : vector<16x1xf32>
        %34 = arith.mulf %30, %30 : vector<16x1xf32>
        %35 = arith.subf %33, %34 : vector<16x1xf32>
        %cst_27 = arith.constant 0.000000e+00 : f32
        %36 = vector.broadcast %cst_27 : f32 to vector<16x1xf32>
        %37 = arith.maximumf %35, %36 : vector<16x1xf32>
        %c0_28 = arith.constant 0 : index
        %c0_29 = arith.constant 0 : index
        %38 = vector.load %arg7[%c0_28, %c0_29] : memref<1848x1xf32, #tpu.memory_space<vmem>>, vector<16x1xf32>
        %cst_30 = arith.constant 9.99999974E-6 : f32
        %39 = vector.broadcast %cst_30 : f32 to vector<16x1xf32>
        %40 = arith.addf %37, %39 : vector<16x1xf32>
        %41 = math.rsqrt %40 : vector<16x1xf32>
        %42 = arith.mulf %38, %41 : vector<16x1xf32>
        %43 = tpu.iota {dimensions = array<i32: 0>} : vector<16x16xi32>
        %44 = tpu.iota {dimensions = array<i32: 1>} : vector<16x16xi32>
        %45 = arith.cmpi eq, %43, %44 : vector<16x16xi32>
        %c0_31 = arith.constant 0 : index
        %c0_32 = arith.constant 0 : index
        %46 = vector.load %arg4[%c0_31, %c0_32] : memref<400x16xbf16, #tpu.memory_space<vmem>>, vector<400x16xbf16>
        %47 = arith.extf %46 : vector<400x16xbf16> to vector<400x16xf32>
        %cst_33 = arith.constant 0.000000e+00 : f32
        %48 = vector.shape_cast %42 : vector<16x1xf32> to vector<16x1xf32>
        %49 = vector.broadcast %48 : vector<16x1xf32> to vector<16x16xf32>
        %50 = vector.broadcast %cst_33 : f32 to vector<16x16xf32>
        %51 = arith.select %45, %49, %50 : vector<16x16xi1>, vector<16x16xf32>
        %cst_34 = arith.constant dense<0.000000e+00> : vector<16xf32>
        %52 = vector.multi_reduction <add>, %51, %cst_34 [0] : vector<16x16xf32> to vector<16xf32>
        %53 = vector.shape_cast %52 : vector<16xf32> to vector<1x16xf32>
        %54 = vector.broadcast %53 : vector<1x16xf32> to vector<400x16xf32>
        %55 = arith.mulf %47, %54 : vector<400x16xf32>
        %cst_35 = arith.constant 0.000000e+00 : f32
        %56 = vector.shape_cast %30 : vector<16x1xf32> to vector<16x1xf32>
        %57 = vector.broadcast %56 : vector<16x1xf32> to vector<16x16xf32>
        %58 = vector.broadcast %cst_35 : f32 to vector<16x16xf32>
        %59 = arith.select %45, %57, %58 : vector<16x16xi1>, vector<16x16xf32>
        %cst_36 = arith.constant dense<0.000000e+00> : vector<16xf32>
        %60 = vector.multi_reduction <add>, %59, %cst_36 [0] : vector<16x16xf32> to vector<16xf32>
        %61 = vector.shape_cast %60 : vector<16xf32> to vector<1x16xf32>
        %62 = vector.broadcast %61 : vector<1x16xf32> to vector<400x16xf32>
        %63 = arith.mulf %55, %62 : vector<400x16xf32>
        %cst_37 = arith.constant dense<0.000000e+00> : vector<400xf32>
        %64 = vector.multi_reduction <add>, %63, %cst_37 [1] : vector<400x16xf32> to vector<400xf32>
        %65 = vector.shape_cast %64 : vector<400xf32> to vector<400x1xf32>
        %c0_38 = arith.constant 0 : index
        %c0_39 = arith.constant 0 : index
        %66 = vector.load %arg11[%c0_38, %c0_39] : memref<16x16xf32, #tpu.memory_space<vmem>>, vector<16x16xf32>
        %cst_40 = arith.constant 3.906250e-03 : f32
        %67 = vector.broadcast %cst_40 : f32 to vector<16x16xf32>
        %68 = arith.mulf %66, %67 : vector<16x16xf32>
        %cst_41 = arith.constant dense<0.000000e+00> : vector<400x16xf32>
        %69 = tpu.matmul %55, %68, %cst_41 {dimension_numbers = #tpu.dot_dimension_numbers<[1], [0], [0], [1], [0, 0, 1, 1], [], []>} : vector<400x16xf32>, vector<16x16xf32>, vector<400x16xf32> -> vector<400x16xf32>
        %70 = arith.mulf %55, %69 : vector<400x16xf32>
        %cst_42 = arith.constant dense<0.000000e+00> : vector<400xf32>
        %71 = vector.multi_reduction <add>, %70, %cst_42 [1] : vector<400x16xf32> to vector<400xf32>
        %72 = vector.shape_cast %71 : vector<400xf32> to vector<400x1xf32>
        %73 = arith.mulf %65, %65 : vector<400x1xf32>
        %74 = arith.subf %72, %73 : vector<400x1xf32>
        %cst_43 = arith.constant 0.000000e+00 : f32
        %75 = vector.broadcast %cst_43 : f32 to vector<400x1xf32>
        %76 = arith.maximumf %74, %75 : vector<400x1xf32>
        %c432 = arith.constant 432 : index
        %c0_44 = arith.constant 0 : index
        %77 = vector.load %arg7[%c432, %c0_44] : memref<1848x1xf32, #tpu.memory_space<vmem>>, vector<400x1xf32>
        %cst_45 = arith.constant 9.99999974E-6 : f32
        %78 = vector.broadcast %cst_45 : f32 to vector<400x1xf32>
        %79 = arith.addf %76, %78 : vector<400x1xf32>
        %80 = math.rsqrt %79 : vector<400x1xf32>
        %81 = arith.mulf %77, %80 : vector<400x1xf32>
        %c0_46 = arith.constant 0 : index
        %c0_47 = arith.constant 0 : index
        %82 = vector.load %arg9[%c0_46, %c0_47] : memref<16x1xf32, #tpu.memory_space<vmem>>, vector<16x1xf32>
        tpu.vector_store %arg9[%c0_46, %c0_47], %42 {strides = array<i32>} : memref<16x1xf32, #tpu.memory_space<vmem>>, vector<16x1xf32>,
        %c0_48 = arith.constant 0 : index
        %c0_49 = arith.constant 0 : index
        %83 = vector.load %arg12[%c0_48, %c0_49] : memref<400x1xf32, #tpu.memory_space<vmem>>, vector<400x1xf32>
        tpu.vector_store %arg12[%c0_48, %c0_49], %81 {strides = array<i32>} : memref<400x1xf32, #tpu.memory_space<vmem>>, vector<400x1xf32>,
        %c832 = arith.constant 832 : index
        %c0_50 = arith.constant 0 : index
        %84 = vector.load %arg7[%c832, %c0_50] : memref<1848x1xf32, #tpu.memory_space<vmem>>, vector<400x1xf32>
        %85 = arith.mulf %65, %81 : vector<400x1xf32>
        %86 = arith.subf %84, %85 : vector<400x1xf32>
        %c0_51 = arith.constant 0 : index
        %c0_52 = arith.constant 0 : index
        %87 = vector.load %arg13[%c0_51, %c0_52] : memref<400x1xf32, #tpu.memory_space<vmem>>, vector<400x1xf32>
        tpu.vector_store %arg13[%c0_51, %c0_52], %86 {strides = array<i32>} : memref<400x1xf32, #tpu.memory_space<vmem>>, vector<400x1xf32>,
      } else {
      }
    } else {
    }
    %c1_i32 = arith.constant 1 : i32
    %3 = arith.cmpi eq, %arg0, %c1_i32 : i32
    %4 = arith.extui %3 : i1 to i32
    %c0_i32_1 = arith.constant 0 : i32
    %5 = arith.cmpi ne, %4, %c0_i32_1 : i32
    scf.if %5 {
      %c0 = arith.constant 0 : index
      %c0_2 = arith.constant 0 : index
      %6 = vector.load %arg2[%c0, %c0_2] : memref<16x256xf32, #tpu.memory_space<vmem>>, vector<16x256xf32>
      %c0_3 = arith.constant 0 : index
      %c0_4 = arith.constant 0 : index
      %7 = vector.load %arg9[%c0_3, %c0_4] : memref<16x1xf32, #tpu.memory_space<vmem>>, vector<16x1xf32>
      %8 = vector.broadcast %7 : vector<16x1xf32> to vector<16x256xf32>
      %9 = arith.mulf %6, %8 : vector<16x256xf32>
      %10 = arith.truncf %9 : vector<16x256xf32> to vector<16x256xbf16>
      %c0_5 = arith.constant 0 : index
      %c0_6 = arith.constant 0 : index
      %11 = vector.load %arg4[%c0_5, %c0_6] : memref<400x16xbf16, #tpu.memory_space<vmem>>, vector<400x16xbf16>
      %cst = arith.constant dense<0.000000e+00> : vector<400x256xf32>
      %12 = tpu.matmul %11, %10, %cst {dimension_numbers = #tpu.dot_dimension_numbers<[1], [0], [0], [1], [0, 0, 1, 1], [], []>} : vector<400x16xbf16>, vector<16x256xbf16>, vector<400x256xf32> -> vector<400x256xf32>
      %c0_7 = arith.constant 0 : index
      %c0_8 = arith.constant 0 : index
      %13 = vector.load %arg12[%c0_7, %c0_8] : memref<400x1xf32, #tpu.memory_space<vmem>>, vector<400x1xf32>
      %14 = vector.broadcast %13 : vector<400x1xf32> to vector<400x256xf32>
      %15 = arith.mulf %12, %14 : vector<400x256xf32>
      %c0_9 = arith.constant 0 : index
      %c0_10 = arith.constant 0 : index
      %16 = vector.load %arg13[%c0_9, %c0_10] : memref<400x1xf32, #tpu.memory_space<vmem>>, vector<400x1xf32>
      %17 = vector.broadcast %16 : vector<400x1xf32> to vector<400x256xf32>
      %18 = arith.addf %15, %17 : vector<400x256xf32>
      %cst_11 = arith.constant 0.000000e+00 : f32
      %19 = vector.broadcast %cst_11 : f32 to vector<400x256xf32>
      %20 = arith.maximumf %18, %19 : vector<400x256xf32>
      %c0_12 = arith.constant 0 : index
      %c0_13 = arith.constant 0 : index
      %21 = vector.load %arg5[%c0_12, %c0_13] : memref<300x400xbf16, #tpu.memory_space<vmem>>, vector<300x400xbf16>
      %22 = arith.truncf %20 : vector<400x256xf32> to vector<400x256xbf16>
      %cst_14 = arith.constant dense<0.000000e+00> : vector<300x256xf32>
      %23 = tpu.matmul %21, %22, %cst_14 {dimension_numbers = #tpu.dot_dimension_numbers<[1], [0], [0], [1], [0, 0, 1, 1], [], []>} : vector<300x400xbf16>, vector<400x256xbf16>, vector<300x256xf32> -> vector<300x256xf32>
      %c0_15 = arith.constant 0 : index
      %c0_16 = arith.constant 0 : index
      %24 = vector.load %arg6[%c0_15, %c0_16] : memref<300x8xbf16, #tpu.memory_space<vmem>>, vector<300x8xbf16>
      %c0_17 = arith.constant 0 : index
      %c0_18 = arith.constant 0 : index
      %25 = vector.load %arg3[%c0_17, %c0_18] : memref<8x256xbf16, #tpu.memory_space<vmem>>, vector<8x256xbf16>
      %cst_19 = arith.constant dense<0.000000e+00> : vector<300x256xf32>
      %26 = tpu.matmul %24, %25, %cst_19 {dimension_numbers = #tpu.dot_dimension_numbers<[1], [0], [0], [1], [0, 0, 1, 1], [], []>} : vector<300x8xbf16>, vector<8x256xbf16>, vector<300x256xf32> -> vector<300x256xf32>
      %27 = arith.addf %23, %26 : vector<300x256xf32>
      %c1232 = arith.constant 1232 : index
      %c0_20 = arith.constant 0 : index
      %28 = vector.load %arg7[%c1232, %c0_20] : memref<1848x1xf32, #tpu.memory_space<vmem>>, vector<300x1xf32>
      %29 = vector.broadcast %28 : vector<300x1xf32> to vector<300x256xf32>
      %30 = arith.addf %27, %29 : vector<300x256xf32>
      %cst_21 = arith.constant 0.000000e+00 : f32
      %31 = vector.broadcast %cst_21 : f32 to vector<300x256xf32>
      %32 = arith.maximumf %30, %31 : vector<300x256xf32>
      %c1536 = arith.constant 1536 : index
      %c0_22 = arith.constant 0 : index
      %33 = vector.load %arg7[%c1536, %c0_22] : memref<1848x1xf32, #tpu.memory_space<vmem>>, vector<300x1xf32>
      %34 = vector.broadcast %33 : vector<300x1xf32> to vector<300x256xf32>
      %35 = arith.mulf %32, %34 : vector<300x256xf32>
      %cst_23 = arith.constant dense<0.000000e+00> : vector<256xf32>
      %36 = vector.multi_reduction <add>, %35, %cst_23 [0] : vector<300x256xf32> to vector<256xf32>
      %37 = vector.shape_cast %36 : vector<256xf32> to vector<1x256xf32>
      %c1840 = arith.constant 1840 : index
      %c0_24 = arith.constant 0 : index
      %38 = vector.load %arg7[%c1840, %c0_24] : memref<1848x1xf32, #tpu.memory_space<vmem>>, vector<1x1xf32>
      %39 = vector.broadcast %38 : vector<1x1xf32> to vector<1x256xf32>
      %40 = arith.addf %37, %39 : vector<1x256xf32>
      %c0_25 = arith.constant 0 : index
      %c0_26 = arith.constant 0 : index
      %41 = vector.load %arg8[%c0_25, %c0_26] : memref<1x256xf32, #tpu.memory_space<vmem>>, vector<1x256xf32>
      tpu.vector_store %arg8[%c0_25, %c0_26], %40 {strides = array<i32>} : memref<1x256xf32, #tpu.memory_space<vmem>>, vector<1x256xf32>,
    } else {
    }
    return
  }
  func.func @transform_0(%arg0: i32, %arg1: i32) -> (i32, i32) {
    %c0_i32 = arith.constant 0 : i32
    %c0_i32_0 = arith.constant 0 : i32
    return %c0_i32, %arg1 : i32, i32
  }
  func.func @transform_1(%arg0: i32, %arg1: i32) -> (i32, i32) {
    %0 = arith.muli %arg1, %arg0 : i32
    %c0_i32 = arith.constant 0 : i32
    %c0_i32_0 = arith.constant 0 : i32
    return %c0_i32, %0 : i32, i32
  }
  func.func @transform_2(%arg0: i32, %arg1: i32) -> (i32, i32) {
    %c0_i32 = arith.constant 0 : i32
    %c0_i32_0 = arith.constant 0 : i32
    %c0_i32_1 = arith.constant 0 : i32
    return %c0_i32, %c0_i32_0 : i32, i32
  }
  func.func @transform_3(%arg0: i32, %arg1: i32) -> (i32, i32) {
    %c0_i32 = arith.constant 0 : i32
    %c0_i32_0 = arith.constant 0 : i32
    %c0_i32_1 = arith.constant 0 : i32
    return %c0_i32, %c0_i32_0 : i32, i32
  }
  func.func @transform_4(%arg0: i32, %arg1: i32) -> (i32, i32) {
    %c0_i32 = arith.constant 0 : i32
    %c0_i32_0 = arith.constant 0 : i32
    %c0_i32_1 = arith.constant 0 : i32
    return %c0_i32, %c0_i32_0 : i32, i32
  }
  func.func @transform_5(%arg0: i32, %arg1: i32) -> (i32, i32) {
    %c0_i32 = arith.constant 0 : i32
    %c0_i32_0 = arith.constant 0 : i32
    %c0_i32_1 = arith.constant 0 : i32
    return %c0_i32, %c0_i32_0 : i32, i32
  }
  func.func @transform_6(%arg0: i32, %arg1: i32) -> (i32, i32) {
    %0 = arith.muli %arg1, %arg0 : i32
    %c0_i32 = arith.constant 0 : i32
    %c0_i32_0 = arith.constant 0 : i32
    return %c0_i32, %0 : i32, i32
  }
}

</mosaic_0001>

<llo_original>
// kernel: critic_bn_forward.1
$region0: #{critic_bn_forward.1}
  #allocation0 [shape = 'u32[]', space=smem, size = 0x4, offset = 0x4, fixed_abs, tag = 'smem constant byte address 0x4 - core index']
  #allocation1 [shape = 'u32[144,128]{1,0:T(1,128)}', space=vmem, size = 0x12000, scoped, tag = 'internal scratch']
  #allocation2 [shape = 'f32[16,1]{1,0:T(8,128)}', space=vmem, size = 0x2000, scoped, tag = 'scratch operand']
  #allocation3 [shape = 'f32[16,1]{1,0:T(8,128)}', space=vmem, size = 0x2000, scoped, tag = 'scratch operand']
  #allocation4 [shape = 'f32[16,16]{1,0:T(8,128)}', space=vmem, size = 0x2000, scoped, tag = 'scratch operand']
  #allocation5 [shape = 'f32[400,1]{1,0:T(8,128)}', space=vmem, size = 0x32000, scoped, tag = 'scratch operand']
  #allocation6 [shape = 'f32[400,1]{1,0:T(8,128)}', space=vmem, size = 0x32000, scoped, tag = 'scratch operand']
  %s0 = inlined_call_operand.vmem [shape: f32[16,256], index: 0, kind: input, shape index: {}]
  %s1 = inlined_call_operand.vmem [shape: bf16[8,256], index: 1, kind: input, shape index: {}]
  %s2 = inlined_call_operand.vmem [shape: bf16[400,16], index: 2, kind: input, shape index: {}]
  %s3 = inlined_call_operand.vmem [shape: bf16[300,400], index: 3, kind: input, shape index: {}]
  %s4 = inlined_call_operand.vmem [shape: bf16[300,8], index: 4, kind: input, shape index: {}]
  %s5 = inlined_call_operand.vmem [shape: f32[1848,1], index: 5, kind: input, shape index: {}]
  %s6 = inlined_call_operand.hbm [shape: f32[1,256], index: 6, kind: output, shape index: {}]
  %s7 = sld [smem:[#allocation0]]
  $region73: #{critic_bn_forward.1} parent=0
    _
  %s9 = ssub.s32 1, %s7
  %s10 = scalar_select 0, %s9, %s7
  $region1: #{critic_bn_forward.1} parent=0
    #allocation7 [shape = 'u8[2048]{0}', space=vmem, size = 0x800, scoped, tag = 'output window, operand 0']
    #allocation8 [shape = 's32[2]{0}', space=sflag, size = 0x8, scoped, tag = 'scoped memory for critic_bn_forward.1']
    %11 = vsyncpa [#allocation8], 0
    %s12 = scalar_lea.sflag [#allocation8], 1
    %13 = vsyncpa %s12, 0
    loop: start=0, step=1, limit=4
    $region2: #{critic_bn_forward.1} parent=1 // loop_pre_header
      _
    $region3: #{critic_bn_forward.1} parent=1 // loop_header
      %s15 = sphi 0, %s19
      %p16 = scmp.ge.s32.totalorder %s15, 4
      %s22 = sphi 0, %s34
      %s23 = sphi 0, %s30
      %s24 = sphi 0, %s22
      %s25 = sphi 0, %s23
      %s26 = sphi 0, %s24
      %s27 = sphi 0, %s25
      %s37 = sphi 0, %s39
      %s40 = sphi 0, %s37
      %s41 = sphi 0, %s40
      %s57 = sphi 0, %s41
      %s65 = sphi 0, %s67
      %s68 = sphi 0, %s65
      %s69 = sphi 0, %s68
      %s85 = sphi 0, %s69
      %s89 = sphi 0, %s89
      %s91 = sphi 0, %s89
      %s92 = sphi 0, %s91
      %s106 = sphi 0, %s92
      %s110 = sphi 0, %s110
      %s112 = sphi 0, %s110
      %s113 = sphi 0, %s112
      %s127 = sphi 0, %s113
      %s131 = sphi 0, %s131
      %s133 = sphi 0, %s131
      %s134 = sphi 0, %s133
      %s148 = sphi 0, %s134
      %s152 = sphi 0, %s152
      %s154 = sphi 0, %s152
      %s155 = sphi 0, %s154
      %s169 = sphi 0, %s155
      %s177 = sphi 0, %s179
      %s180 = sphi 0, %s177
      %s181 = sphi 0, %s180
      %s197 = sphi 0, %s181
    $region4: #{critic_bn_forward.1} parent=1 // loop_header_branch
      %18 = sbr.rel (%p16) target = $region8
    $region5: #{critic_bn_forward.1} parent=1 // loop_body
      %s20 = ssub.s32 %s15, 1
      %s21 = ssub.s32 %s15, 2
      %s28 = sadd.s32 1, %s23
      %p29 = scmp.ge.s32.totalorder %s28, 1
      %s30 = scalar_select %p29, 0, %s28
      %s31 = sadd.s32 1, %s22
      %s32 = scalar_select %p29, %s31, %s22
      %p33 = scmp.ge.s32.totalorder %s32, 2
      %s34 = scalar_select %p33, 0, %s32
      %s35 = ssub.s32 %s23, %s30
      %p36 = scmp.eq.s32.totalorder %s35, 0
      %s38 = sadd.s32 %s37, 1
      %s39 = scalar_select %p36, %s37, %s38
      %p42 = pneg %p36
      %p43 = scmp.eq.s32.totalorder %s15, 1
      %p44 = por %p42, %p43
      %p45 = scmp.ne.s32.totalorder %s37, %s40
      %p46 = scmp.eq.s32.totalorder %s15, 0
      %p47 = por %p45, %p46
      %p48 = scmp.ne.s32.totalorder %s37, %s40
      %p49 = scmp.eq.s32.totalorder %s20, 1
      %p50 = por %p48, %p49
      %p51 = scmp.ne.s32.totalorder %s40, %s41
      %p52 = scmp.eq.s32.totalorder %s20, 0
      %p53 = por %p51, %p52
      %p54 = scmp.ne.s32.totalorder %s40, %s41
      %p55 = scmp.eq.s32.totalorder %s21, 1
      %p56 = por %p54, %p55
      %p58 = scmp.ne.s32.totalorder %s41, %s57
      %p59 = scmp.eq.s32.totalorder %s21, 0
      %p60 = por %p58, %p59
      %s61 = smul.u32 %s23, %s22
      %s62 = smul.u32 %s30, %s34
      %s63 = ssub.s32 %s61, %s62
      %p64 = scmp.eq.s32.totalorder %s63, 0
      %s66 = sadd.s32 %s65, 1
      %s67 = scalar_select %p64, %s65, %s66
      %p70 = pneg %p64
      %p71 = scmp.eq.s32.totalorder %s15, 1
      %p72 = por %p70, %p71
      %p73 = scmp.ne.s32.totalorder %s65, %s68
      %p74 = scmp.eq.s32.totalorder %s15, 0
      %p75 = por %p73, %p74
      %p76 = scmp.ne.s32.totalorder %s65, %s68
      %p77 = scmp.eq.s32.totalorder %s20, 1
      %p78 = por %p76, %p77
      %p79 = scmp.ne.s32.totalorder %s68, %s69
      %p80 = scmp.eq.s32.totalorder %s20, 0
      %p81 = por %p79, %p80
      %p82 = scmp.ne.s32.totalorder %s68, %s69
      %p83 = scmp.eq.s32.totalorder %s21, 1
      %p84 = por %p82, %p83
      %p86 = scmp.ne.s32.totalorder %s69, %s85
      %p87 = scmp.eq.s32.totalorder %s21, 0
      %p88 = por %p86, %p87
      %s90 = sadd.s32 %s89, 1
      %p93 = scmp.eq.s32.totalorder %s15, 1
      %p94 = scmp.ne.s32.totalorder %s89, %s91
      %p95 = scmp.eq.s32.totalorder %s15, 0
      %p96 = por %p94, %p95
      %p97 = scmp.ne.s32.totalorder %s89, %s91
      %p98 = scmp.eq.s32.totalorder %s20, 1
      %p99 = por %p97, %p98
      %p100 = scmp.ne.s32.totalorder %s91, %s92
      %p101 = scmp.eq.s32.totalorder %s20, 0
      %p102 = por %p100, %p101
      %p103 = scmp.ne.s32.totalorder %s91, %s92
      %p104 = scmp.eq.s32.totalorder %s21, 1
      %p105 = por %p103, %p104
      %p107 = scmp.ne.s32.totalorder %s92, %s106
      %p108 = scmp.eq.s32.totalorder %s21, 0
      %p109 = por %p107, %p108
      %s111 = sadd.s32 %s110, 1
      %p114 = scmp.eq.s32.totalorder %s15, 1
      %p115 = scmp.ne.s32.totalorder %s110, %s112
      %p116 = scmp.eq.s32.totalorder %s15, 0
      %p117 = por %p115, %p116
      %p118 = scmp.ne.s32.totalorder %s110, %s112
      %p119 = scmp.eq.s32.totalorder %s20, 1
      %p120 = por %p118, %p119
      %p121 = scmp.ne.s32.totalorder %s112, %s113
      %p122 = scmp.eq.s32.totalorder %s20, 0
      %p123 = por %p121, %p122
      %p124 = scmp.ne.s32.totalorder %s112, %s113
      %p125 = scmp.eq.s32.totalorder %s21, 1
      %p126 = por %p124, %p125
      %p128 = scmp.ne.s32.totalorder %s113, %s127
      %p129 = scmp.eq.s32.totalorder %s21, 0
      %p130 = por %p128, %p129
      %s132 = sadd.s32 %s131, 1
      %p135 = scmp.eq.s32.totalorder %s15, 1
      %p136 = scmp.ne.s32.totalorder %s131, %s133
      %p137 = scmp.eq.s32.totalorder %s15, 0
      %p138 = por %p136, %p137
      %p139 = scmp.ne.s32.totalorder %s131, %s133
      %p140 = scmp.eq.s32.totalorder %s20, 1
      %p141 = por %p139, %p140
      %p142 = scmp.ne.s32.totalorder %s133, %s134
      %p143 = scmp.eq.s32.totalorder %s20, 0
      %p144 = por %p142, %p143
      %p145 = scmp.ne.s32.totalorder %s133, %s134
      %p146 = scmp.eq.s32.totalorder %s21, 1
      %p147 = por %p145, %p146
      %p149 = scmp.ne.s32.totalorder %s134, %s148
      %p150 = scmp.eq.s32.totalorder %s21, 0
      %p151 = por %p149, %p150
      %s153 = sadd.s32 %s152, 1
      %p156 = scmp.eq.s32.totalorder %s15, 1
      %p157 = scmp.ne.s32.totalorder %s152, %s154
      %p158 = scmp.eq.s32.totalorder %s15, 0
      %p159 = por %p157, %p158
      %p160 = scmp.ne.s32.totalorder %s152, %s154
      %p161 = scmp.eq.s32.totalorder %s20, 1
      %p162 = por %p160, %p161
      %p163 = scmp.ne.s32.totalorder %s154, %s155
      %p164 = scmp.eq.s32.totalorder %s20, 0
      %p165 = por %p163, %p164
      %p166 = scmp.ne.s32.totalorder %s154, %s155
      %p167 = scmp.eq.s32.totalorder %s21, 1
      %p168 = por %p166, %p167
      %p170 = scmp.ne.s32.totalorder %s155, %s169
      %p171 = scmp.eq.s32.totalorder %s21, 0
      %p172 = por %p170, %p171
      %s173 = smul.u32 %s23, %s22
      %s174 = smul.u32 %s30, %s34
      %s175 = ssub.s32 %s173, %s174
      %p176 = scmp.eq.s32.totalorder %s175, 0
      %s178 = sadd.s32 %s177, 1
      %s179 = scalar_select %p176, %s177, %s178
      %p182 = pneg %p176
      %p183 = scmp.eq.s32.totalorder %s15, 1
      %p184 = por %p182, %p183
      %p185 = scmp.ne.s32.totalorder %s177, %s180
      %p186 = scmp.eq.s32.totalorder %s15, 0
      %p187 = por %p185, %p186
      %p188 = scmp.ne.s32.totalorder %s177, %s180
      %p189 = scmp.eq.s32.totalorder %s20, 1
      %p190 = por %p188, %p189
      %p191 = scmp.ne.s32.totalorder %s180, %s181
      %p192 = scmp.eq.s32.totalorder %s20, 0
      %p193 = por %p191, %p192
      %p194 = scmp.ne.s32.totalorder %s180, %s181
      %p195 = scmp.eq.s32.totalorder %s21, 1
      %p196 = por %p194, %p195
      %p198 = scmp.ne.s32.totalorder %s181, %s197
      %p199 = scmp.eq.s32.totalorder %s21, 0
      %p200 = por %p198, %p199
      %p201 = scmp.le.s32.totalorder 1, %s15
      %p202 = scmp.lt.s32.totalorder %s15, 3
      %p203 = pnand %p201, %p202
      %p204 = pneg %p203
      // Predicated region
      $region9: #{critic_bn_forward.1} parent=5 // pred_check
        _
      $region10: #{critic_bn_forward.1} parent=5 // pred_check_branch
        %206 = sbr.rel (%p203) target = $region12
      $region11: #{critic_bn_forward.1} parent=5 // pred_region
        %s207 = ssub.s32 %s15, 1
        // Predicated region
        $region13: #{critic_bn_forward.1} parent=11 // pred_check
          %p208 = pneg %p53
        $region14: #{critic_bn_forward.1} parent=11 // pred_check_branch
          %210 = sbr.rel (%p208) target = $region16
        $region15: #{critic_bn_forward.1} parent=11 // pred_region
          %s211 = smul.u32 2, %s25
          %p212 = scmp.lt.s32.totalorder %s211, 1
          %s213 = scalar_select %p212, %s211, 1
          %s214 = smul.addr %s213, 8
          %s215 = scalar_lea.vmem %s0, %s214
          %s216 = smul.u32 2, %s25
        $region16: #{critic_bn_forward.1} parent=11 // pred_fallthru
          _
        // Predicated region
        $region17: #{critic_bn_forward.1} parent=11 // pred_check
          %p217 = pneg %p102
        $region18: #{critic_bn_forward.1} parent=11 // pred_check_branch
          %219 = sbr.rel (%p217) target = $region20
        $region19: #{critic_bn_forward.1} parent=11 // pred_region
          _
        $region20: #{critic_bn_forward.1} parent=11 // pred_fallthru
          _
        // Predicated region
        $region21: #{critic_bn_forward.1} parent=11 // pred_check
          %p220 = pneg %p123
        $region22: #{critic_bn_forward.1} parent=11 // pred_check_branch
          %222 = sbr.rel (%p220) target = $region24
        $region23: #{critic_bn_forward.1} parent=11 // pred_region
          _
        $region24: #{critic_bn_forward.1} parent=11 // pred_fallthru
          _
        // Predicated region
        $region25: #{critic_bn_forward.1} parent=11 // pred_check
          %p223 = pneg %p144
        $region26: #{critic_bn_forward.1} parent=11 // pred_check_branch
          %225 = sbr.rel (%p223) target = $region28
        $region27: #{critic_bn_forward.1} parent=11 // pred_region
          _
        $region28: #{critic_bn_forward.1} parent=11 // pred_fallthru
          _
        // Predicated region
        $region29: #{critic_bn_forward.1} parent=11 // pred_check
          %p226 = pneg %p165
        $region30: #{critic_bn_forward.1} parent=11 // pred_check_branch
          %228 = sbr.rel (%p226) target = $region32
        $region31: #{critic_bn_forward.1} parent=11 // pred_region
          _
        $region32: #{critic_bn_forward.1} parent=11 // pred_fallthru
          _
      $region12: #{critic_bn_forward.1} parent=5 // pred_fallthru
        _
      %p229 = scmp.lt.s32.totalorder %s15, 2
      // Predicated region
      $region33: #{critic_bn_forward.1} parent=5 // pred_check
        %p230 = pneg %p229
      $region34: #{critic_bn_forward.1} parent=5 // pred_check_branch
        %232 = sbr.rel (%p230) target = $region36
      $region35: #{critic_bn_forward.1} parent=5 // pred_region
        // Predicated region
        $region37: #{critic_bn_forward.1} parent=35 // pred_check
          %p233 = pneg %p75
        $region38: #{critic_bn_forward.1} parent=35 // pred_check_branch
          %235 = sbr.rel (%p233) target = $region40
        $region39: #{critic_bn_forward.1} parent=35 // pred_region
          %s236 = smul.u32 %s23, %s22
          %s237 = smul.u32 2, %s236
          %p238 = scmp.lt.s32.totalorder %s237, 1
          %s239 = scalar_select %p238, %s237, 1
          %s240 = smul.addr %s239, 4
          %s241 = scalar_lea.vmem %s1, %s240
          %s242 = smul.u32 %s23, %s22
          %s243 = smul.u32 2, %s242
        $region40: #{critic_bn_forward.1} parent=35 // pred_fallthru
          _
      $region36: #{critic_bn_forward.1} parent=5 // pred_fallthru
        _
      %p244 = scmp.le.s32.totalorder 1, %s15
      %p245 = scmp.lt.s32.totalorder %s15, 3
      %p246 = pnand %p244, %p245
      %p247 = pneg %p246
      // Predicated region
      $region41: #{critic_bn_forward.1} parent=5 // pred_check
        _
      $region42: #{critic_bn_forward.1} parent=5 // pred_check_branch
        %249 = sbr.rel (%p246) target = $region44
      $region43: #{critic_bn_forward.1} parent=5 // pred_region
        %s250 = ssub.s32 %s15, 1
        %s251 = smul.u32 2, %s25
        %p252 = scmp.lt.s32.totalorder %s251, 1
        %s253 = scalar_select %p252, %s251, 1
        %s254 = smul.addr %s253, 8
        %s255 = scalar_lea.vmem %s0, %s254
        %p256 = pneg %p53
        %p257 = pneg %p50
        %s258 = smul.u32 %s25, %s24
        %s259 = smul.u32 2, %s258
        %p260 = scmp.lt.s32.totalorder %s259, 1
        %s261 = scalar_select %p260, %s259, 1
        %s262 = smul.addr %s261, 4
        %s263 = scalar_lea.vmem %s1, %s262
        %p264 = pneg %p81
        %p265 = pneg %p78
        %p266 = pneg %p102
        %p267 = pneg %p99
        %p268 = pneg %p123
        %p269 = pneg %p120
        %p270 = pneg %p144
        %p271 = pneg %p141
        %p272 = pneg %p165
        %p273 = pneg %p162
        %p274 = pneg %p193
        %p275 = pneg %p190
        %s276 = sand.u32 %s180, 1
        %s277 = scalar_lea.sflag [#allocation8], %s276
        %s278 = sand.u32 %s180, 1
        %s279 = smul.addr %s278, 2
        %s280 = scalar_lea.vmem [#allocation7], %s279
        %s281 = smul.u32 2, %s25
        %p282 = scmp.lt.s32.totalorder %s281, 1
        %s283 = scalar_select %p282, %s281, 1
        %s284 = smul.addr %s283, 8
        %s285 = scalar_lea.vmem %s0, %s284
        %s286 = smul.u32 2, %s25
        %s287 = smul.u32 %s25, %s24
        %s288 = smul.u32 2, %s287
        %p289 = scmp.lt.s32.totalorder %s288, 1
        %s290 = scalar_select %p289, %s288, 1
        %s291 = smul.addr %s290, 4
        %s292 = scalar_lea.vmem %s1, %s291
        %s293 = smul.u32 %s25, %s24
        %s294 = smul.u32 2, %s293
        %s295 = smul.u32 %s25, %s24
        %s296 = smul.u32 2, %s295
        %p298 = scmp.eq.s32.totalorder %s24, 0
        // Predicated region
        $region45: #{critic_bn_forward.1} parent=43 // pred_check
          %p299 = pneg %p298
        $region46: #{critic_bn_forward.1} parent=43 // pred_check_branch
          %301 = sbr.rel (%p299) target = $region48
        $region47: #{critic_bn_forward.1} parent=43 // pred_region
          %p302 = scmp.eq.s32.totalorder %s25, 0
          // Predicated region
          $region49: #{critic_bn_forward.1} parent=47 // pred_check
            %p303 = pneg %p302
          $region50: #{critic_bn_forward.1} parent=47 // pred_check_branch
            %305 = sbr.rel (%p303) target = $region52
          $region51: #{critic_bn_forward.1} parent=47 // pred_region
            %vm306 = vcmask 7168
            %307 = vst.msk [vmem:[#allocation2] sm:$0xff] %vm306, 0.0
            %308 = vst.msk [vmem:[#allocation2 + $0x8] sm:$0xff] %vm306, 0.0
            %309 = vst.msk [vmem:[#allocation3] sm:$0xff] %vm306, 0.0
            %310 = vst.msk [vmem:[#allocation3 + $0x8] sm:$0xff] %vm306, 0.0
            %vm311 = vcmask 130048
            %312 = vst.msk [vmem:[#allocation4] sm:$0xff] %vm311, 0.0
            %313 = vst.msk [vmem:[#allocation4 + $0x8] sm:$0xff] %vm311, 0.0
          $region52: #{critic_bn_forward.1} parent=47 // pred_fallthru
            _
          %v314 = vld [vmem:[%s285] sm:$0xff]
          %v315 = vld [vmem:[%s285 + $0x8] sm:$0xff]
          %v316 = vld [vmem:[%s285 + $0x10] sm:$0xff]
          %v317 = vld [vmem:[%s285 + $0x18] sm:$0xff]
          %v318 = vld [vmem:[#allocation2] sm:$0xff]
          %v319 = vld [vmem:[#allocation2 + $0x8] sm:$0xff]
          %v320 = vadd.f32 %v314, %v315
          %321 = vadd.xlane.f32.xlu0 %v320
          %v322 = vpop.xlane.xlu0 %321
          %v323 = vadd.f32 %v316, %v317
          %324 = vadd.xlane.f32.xlu0 %v323
          %v325 = vpop.xlane.xlu0 %324
          %v326 = vadd.f32 %v318, %v322
          %v327 = vadd.f32 %v319, %v325
          %vm328 = vcmask 7168
          %329 = vst.msk [vmem:[#allocation2] sm:$0xff] %vm328, %v326
          %330 = vst.msk [vmem:[#allocation2 + $0x8] sm:$0xff] %vm328, %v327
          %v331 = vld [vmem:[#allocation3] sm:$0xff]
          %v332 = vld [vmem:[#allocation3 + $0x8] sm:$0xff]
          %v333 = vmul.f32 %v314, %v314
          %v334 = vmul.f32 %v315, %v315
          %v335 = vmul.f32 %v316, %v316
          %v336 = vmul.f32 %v317, %v317
          %v337 = vadd.f32 %v333, %v334
          %338 = vadd.xlane.f32.xlu0 %v337
          %v339 = vpop.xlane.xlu0 %338
          %v340 = vadd.f32 %v335, %v336
          %341 = vadd.xlane.f32.xlu0 %v340
          %v342 = vpop.xlane.xlu0 %341
          %v343 = vadd.f32 %v331, %v339
          %v344 = vadd.f32 %v332, %v342
          %345 = vst.msk [vmem:[#allocation3] sm:$0xff] %vm328, %v343
          %346 = vst.msk [vmem:[#allocation3 + $0x8] sm:$0xff] %vm328, %v344
          %v347 = vld [vmem:[#allocation4] sm:$0xff]
          %v348 = vld [vmem:[#allocation4 + $0x8] sm:$0xff]
          %349 = vmatprep.subr.mxu0 %v315
          %350 = vmatpush1.xpose.msra.mxu0 %v314
          %351 = vmatprep.subr.mxu0 %v317
          %352 = vmatpush1.xpose.msra.mxu0 %v316
          %353 = vmatprep.subr.mxu0 0.0
          %354 = vmatpush1.xpose.msra.mxu0 0.0
          %355 = vmatprep.subr.mxu0 0.0
          %356 = vmatpush1.xpose.msra.mxu0 0.0
          %357 = vmatprep.subr.mxu0 0.0
          %358 = vmatpush1.xpose.msra.mxu0 0.0
          %359 = vmatprep.subr.mxu0 0.0
          %360 = vmatpush1.xpose.msra.mxu0 0.0
          %361 = vmatprep.subr.mxu0 0.0
          %362 = vmatpush1.xpose.msra.mxu0 0.0
          %363 = vmatprep.subr.mxu0 0.0
          %364 = vmatpush1.xpose.msra.mxu0 0.0
          %365 = vmatprep.subr.mxu0 0.0
          %366 = vmatpush1.xpose.msra.mxu0 0.0
          %367 = vmatprep.subr.mxu0 0.0
          %368 = vmatpush1.xpose.msra.mxu0 0.0
          %369 = vmatprep.subr.mxu0 0.0
          %370 = vmatpush1.xpose.msra.mxu0 0.0
          %371 = vmatprep.subr.mxu0 0.0
          %372 = vmatpush1.xpose.msra.mxu0 0.0
          %373 = vmatprep.subr.mxu0 0.0
          %374 = vmatpush1.xpose.msra.mxu0 0.0
          %375 = vmatprep.subr.mxu0 0.0
          %376 = vmatpush1.xpose.msra.mxu0 0.0
          %377 = vmatprep.subr.mxu0 0.0
          %378 = vmatpush1.xpose.msra.mxu0 0.0
          %379 = vmatprep.subr.mxu0 0.0
          %380 = vmatpush1.xpose.msra.mxu0 0.0
          %381 = vmatprep.subr.mxu0 0.0
          %382 = vmatpush1.xpose.msra.mxu0 0.0
          %383 = vmatprep.subr.mxu0 0.0
          %384 = vmatpush1.xpose.msra.mxu0 0.0
          %385 = vmatprep.subr.mxu0 0.0
          %386 = vmatpush1.xpose.msra.mxu0 0.0
          %387 = vmatprep.subr.mxu0 0.0
          %388 = vmatpush1.xpose.msra.mxu0 0.0
          %389 = vmatprep.subr.mxu0 0.0
          %390 = vmatpush1.xpose.msra.mxu0 0.0
          %391 = vmatprep.subr.mxu0 0.0
          %392 = vmatpush1.xpose.msra.mxu0 0.0
          %393 = vmatprep.subr.mxu0 0.0
          %394 = vmatpush1.xpose.msra.mxu0 0.0
          %395 = vmatprep.subr.mxu0 0.0
          %396 = vmatpush1.xpose.msra.mxu0 0.0
          %397 = vmatprep.subr.mxu0 0.0
          %398 = vmatpush1.xpose.msra.mxu0 0.0
          %399 = vmatprep.subr.mxu0 0.0
          %400 = vmatpush1.xpose.msra.mxu0 0.0
          %401 = vmatprep.subr.mxu0 0.0
          %402 = vmatpush1.xpose.msra.mxu0 0.0
          %403 = vmatprep.subr.mxu0 0.0
          %404 = vmatpush1.xpose.msra.mxu0 0.0
          %405 = vmatprep.subr.mxu0 0.0
          %406 = vmatpush1.xpose.msra.mxu0 0.0
          %407 = vmatprep.subr.mxu0 0.0
          %408 = vmatpush1.xpose.msra.mxu0 0.0
          %409 = vmatprep.subr.mxu0 0.0
          %410 = vmatpush1.xpose.msra.mxu0 0.0
          %411 = vmatprep.subr.mxu0 0.0
          %412 = vmatpush1.xpose.msra.mxu0 0.0
          %413 = vmatprep.mubr.f32.mxu0 %v315
          %414 = vmatmul.mubr.f32.gmra.mrb[0].mxu0 %v314
          %v415 = vpop.f32.mrb[0].mxu0
          %v416 = vadd.f32 0.0, %v415
          %v417 = vpop.f32.mrb[0].mxu0
          %418 = vmatprep.mubr.f32.mxu0 %v317
          %419 = vmatmul.mubr.f32.gmra.mrb[0].mxu0 %v316
          %v420 = vpop.f32.mrb[0].mxu0
          %v421 = vadd.f32 0.0, %v420
          %v422 = vpop.f32.mrb[0].mxu0
          %423 = vdwg.mxu0
          %v424 = vadd.f32 %v347, %v416
          %v425 = vadd.f32 %v348, %v421
          %vm426 = vcmask 130048
          %427 = vst.msk [vmem:[#allocation4] sm:$0xff] %vm426, %v424
          %428 = vst.msk [vmem:[#allocation4 + $0x8] sm:$0xff] %vm426, %v425
          // Predicated region
          $region53: #{critic_bn_forward.1} parent=47 // pred_check
            %p429 = pneg %p302
          $region54: #{critic_bn_forward.1} parent=47 // pred_check_branch
            %431 = sbr.rel (%p429) target = $region56
          $region55: #{critic_bn_forward.1} parent=47 // pred_region
            %v432 = vld [vmem:[#allocation2] sm:$0xff]
            %v433 = vld [vmem:[#allocation2 + $0x8] sm:$0xff]
            %v434 = vmul.f32 %v432, 0.00390625
            %v435 = vmul.f32 %v433, 0.00390625
            %v436 = vld [vmem:[#allocation3] sm:$0xff]
            %v437 = vld [vmem:[#allocation3 + $0x8] sm:$0xff]
            %v438 = vmul.f32 %v436, 0.00390625
            %v439 = vmul.f32 %v437, 0.00390625
            %v440 = vmul.f32 %v434, %v434
            %v441 = vmul.f32 %v435, %v435
            %v442 = vsub.f32 %v438, %v440
            %v443 = vsub.f32 %v439, %v441
            %v444 = vmax.f32 %v442, 0.0
            %v445 = vmax.f32 %v443, 0.0
            %v446 = vld [vmem:[%s5] sm:$0xff]
            %v447 = vld [vmem:[%s5 + $0x8] sm:$0xff]
            %v448 = vadd.f32 %v444, 1e-05
            %v449 = vadd.f32 %v445, 1e-05
            %v450 = vrsqrt.pop %v448
            %v451 = vrsqrt.pop %v449
            %v452 = vmul.f32 %v446, %v450
            %v453 = vmul.f32 %v447, %v451
            %v454 = vlaneseq
            %v455 = vshrl.u32 %v454, 7
            %v456 = vadd.s32 %v455, 8
            %v457 = vlaneseq
            %v458 = vand.u32 %v457, 127
            %vm459 = vcmp.eq.s32.totalorder %v455, %v458
            %vm460 = vcmp.eq.s32.totalorder %v456, %v458
            %v461 = vld [vmem:[%s2] sm:$0xf]
            %v462 = vld [vmem:[%s2 + $0x4] sm:$0xf]
            %v463 = vld [vmem:[%s2 + $0x8] sm:$0xf]
            %v464 = vld [vmem:[%s2 + $0xc] sm:$0xf]
            %v465 = vld [vmem:[%s2 + $0x10] sm:$0xf]
            %v466 = vld [vmem:[%s2 + $0x14] sm:$0xf]
            %v467 = vld [vmem:[%s2 + $0x18] sm:$0xf]
            %v468 = vld [vmem:[%s2 + $0x1c] sm:$0xf]
            %v469 = vld [vmem:[%s2 + $0x20] sm:$0xf]
            %v470 = vld [vmem:[%s2 + $0x24] sm:$0xf]
            %v471 = vld [vmem:[%s2 + $0x28] sm:$0xf]
            %v472 = vld [vmem:[%s2 + $0x2c] sm:$0xf]
            %v473 = vld [vmem:[%s2 + $0x30] sm:$0xf]
            %v474 = vld [vmem:[%s2 + $0x34] sm:$0xf]
            %v475 = vld [vmem:[%s2 + $0x38] sm:$0xf]
            %v476 = vld [vmem:[%s2 + $0x3c] sm:$0xf]
            %v477 = vld [vmem:[%s2 + $0x40] sm:$0xf]
            %v478 = vld [vmem:[%s2 + $0x44] sm:$0xf]
            %v479 = vld [vmem:[%s2 + $0x48] sm:$0xf]
            %v480 = vld [vmem:[%s2 + $0x4c] sm:$0xf]
            %v481 = vld [vmem:[%s2 + $0x50] sm:$0xf]
            %v482 = vld [vmem:[%s2 + $0x54] sm:$0xf]
            %v483 = vld [vmem:[%s2 + $0x58] sm:$0xf]
            %v484 = vld [vmem:[%s2 + $0x5c] sm:$0xf]
            %v485 = vld [vmem:[%s2 + $0x60] sm:$0xf]
            %v486 = vld [vmem:[%s2 + $0x64] sm:$0xf]
            %v487 = vld [vmem:[%s2 + $0x68] sm:$0xf]
            %v488 = vld [vmem:[%s2 + $0x6c] sm:$0xf]
            %v489 = vld [vmem:[%s2 + $0x70] sm:$0xf]
            %v490 = vld [vmem:[%s2 + $0x74] sm:$0xf]
            %v491 = vld [vmem:[%s2 + $0x78] sm:$0xf]
            %v492 = vld [vmem:[%s2 + $0x7c] sm:$0xf]
            %v493 = vld [vmem:[%s2 + $0x80] sm:$0xf]
            %v494 = vld [vmem:[%s2 + $0x84] sm:$0xf]
            %v495 = vld [vmem:[%s2 + $0x88] sm:$0xf]
            %v496 = vld [vmem:[%s2 + $0x8c] sm:$0xf]
            %v497 = vld [vmem:[%s2 + $0x90] sm:$0xf]
            %v498 = vld [vmem:[%s2 + $0x94] sm:$0xf]
            %v499 = vld [vmem:[%s2 + $0x98] sm:$0xf]
            %v500 = vld [vmem:[%s2 + $0x9c] sm:$0xf]
            %v501 = vld [vmem:[%s2 + $0xa0] sm:$0xf]
            %v502 = vld [vmem:[%s2 + $0xa4] sm:$0xf]
            %v503 = vld [vmem:[%s2 + $0xa8] sm:$0xf]
            %v504 = vld [vmem:[%s2 + $0xac] sm:$0xf]
            %v505 = vld [vmem:[%s2 + $0xb0] sm:$0xf]
            %v506 = vld [vmem:[%s2 + $0xb4] sm:$0xf]
            %v507 = vld [vmem:[%s2 + $0xb8] sm:$0xf]
            %v508 = vld [vmem:[%s2 + $0xbc] sm:$0xf]
            %v509 = vld [vmem:[%s2 + $0xc0] sm:$0xf]
            %v510 = vld [vmem:[%s2 + $0xc4] sm:$0xf]
            %v511 = vunpack.c.l.bf16 %v461
            %v512 = vunpack.c.l.bf16 %v462
            %v513 = vunpack.c.l.bf16 %v463
            %v514 = vunpack.c.l.bf16 %v464
            %v515 = vunpack.c.l.bf16 %v465
            %v516 = vunpack.c.l.bf16 %v466
            %v517 = vunpack.c.l.bf16 %v467
            %v518 = vunpack.c.l.bf16 %v468
            %v519 = vunpack.c.l.bf16 %v469
            %v520 = vunpack.c.l.bf16 %v470
            %v521 = vunpack.c.l.bf16 %v471
            %v522 = vunpack.c.l.bf16 %v472
            %v523 = vunpack.c.l.bf16 %v473
            %v524 = vunpack.c.l.bf16 %v474
            %v525 = vunpack.c.l.bf16 %v475
            %v526 = vunpack.c.l.bf16 %v476
            %v527 = vunpack.c.l.bf16 %v477
            %v528 = vunpack.c.l.bf16 %v478
            %v529 = vunpack.c.l.bf16 %v479
            %v530 = vunpack.c.l.bf16 %v480
            %v531 = vunpack.c.l.bf16 %v481
            %v532 = vunpack.c.l.bf16 %v482
            %v533 = vunpack.c.l.bf16 %v483
            %v534 = vunpack.c.l.bf16 %v484
            %v535 = vunpack.c.l.bf16 %v485
            %v536 = vunpack.c.l.bf16 %v486
            %v537 = vunpack.c.l.bf16 %v487
            %v538 = vunpack.c.l.bf16 %v488
            %v539 = vunpack.c.l.bf16 %v489
            %v540 = vunpack.c.l.bf16 %v490
            %v541 = vunpack.c.l.bf16 %v491
            %v542 = vunpack.c.l.bf16 %v492
            %v543 = vunpack.c.l.bf16 %v493
            %v544 = vunpack.c.l.bf16 %v494
            %v545 = vunpack.c.l.bf16 %v495
            %v546 = vunpack.c.l.bf16 %v496
            %v547 = vunpack.c.l.bf16 %v497
            %v548 = vunpack.c.l.bf16 %v498
            %v549 = vunpack.c.l.bf16 %v499
            %v550 = vunpack.c.l.bf16 %v500
            %v551 = vunpack.c.l.bf16 %v501
            %v552 = vunpack.c.l.bf16 %v502
            %v553 = vunpack.c.l.bf16 %v503
            %v554 = vunpack.c.l.bf16 %v504
            %v555 = vunpack.c.l.bf16 %v505
            %v556 = vunpack.c.l.bf16 %v506
            %v557 = vunpack.c.l.bf16 %v507
            %v558 = vunpack.c.l.bf16 %v508
            %v559 = vunpack.c.l.bf16 %v509
            %v560 = vunpack.c.l.bf16 %v510
            %562 = vset.pattern.permute.xlu0 0
            %563 = vperm.xlu0 %562, %v452
            %v564 = vpop.permute.xlu0 %563
            %567 = vset.pattern.permute.xlu0 0
            %568 = vperm.xlu0 %567, %v453
            %v569 = vpop.permute.xlu0 %568
            %v571 = vsel %vm459, %v564, 0.0
            %v572 = vsel %vm460, %v569, 0.0
            %v573 = vsel %vm426, %v571, 0.0
            %v574 = vsel %vm426, %v572, 0.0
            %v575 = vadd.f32 %v573, %v574
            %v576 = vrot.slane %v575, 4
            %v577 = vadd.f32 %v575, %v576
            %v578 = vrot.slane %v577, 2
            %v579 = vadd.f32 %v577, %v578
            %v580 = vrot.slane %v579, 1
            %v581 = vadd.f32 %v579, %v580
            %v582 = vmul.f32 %v511, %v581
            %v583 = vmul.f32 %v512, %v581
            %v584 = vmul.f32 %v513, %v581
            %v585 = vmul.f32 %v514, %v581
            %v586 = vmul.f32 %v515, %v581
            %v587 = vmul.f32 %v516, %v581
            %v588 = vmul.f32 %v517, %v581
            %v589 = vmul.f32 %v518, %v581
            %v590 = vmul.f32 %v519, %v581
            %v591 = vmul.f32 %v520, %v581
            %v592 = vmul.f32 %v521, %v581
            %v593 = vmul.f32 %v522, %v581
            %v594 = vmul.f32 %v523, %v581
            %v595 = vmul.f32 %v524, %v581
            %v596 = vmul.f32 %v525, %v581
            %v597 = vmul.f32 %v526, %v581
            %v598 = vmul.f32 %v527, %v581
            %v599 = vmul.f32 %v528, %v581
            %v600 = vmul.f32 %v529, %v581
            %v601 = vmul.f32 %v530, %v581
            %v602 = vmul.f32 %v531, %v581
            %v603 = vmul.f32 %v532, %v581
            %v604 = vmul.f32 %v533, %v581
            %v605 = vmul.f32 %v534, %v581
            %v606 = vmul.f32 %v535, %v581
            %v607 = vmul.f32 %v536, %v581
            %v608 = vmul.f32 %v537, %v581
            %v609 = vmul.f32 %v538, %v581
            %v610 = vmul.f32 %v539, %v581
            %v611 = vmul.f32 %v540, %v581
            %v612 = vmul.f32 %v541, %v581
            %v613 = vmul.f32 %v542, %v581
            %v614 = vmul.f32 %v543, %v581
            %v615 = vmul.f32 %v544, %v581
            %v616 = vmul.f32 %v545, %v581
            %v617 = vmul.f32 %v546, %v581
            %v618 = vmul.f32 %v547, %v581
            %v619 = vmul.f32 %v548, %v581
            %v620 = vmul.f32 %v549, %v581
            %v621 = vmul.f32 %v550, %v581
            %v622 = vmul.f32 %v551, %v581
            %v623 = vmul.f32 %v552, %v581
            %v624 = vmul.f32 %v553, %v581
            %v625 = vmul.f32 %v554, %v581
            %v626 = vmul.f32 %v555, %v581
            %v627 = vmul.f32 %v556, %v581
            %v628 = vmul.f32 %v557, %v581
            %v629 = vmul.f32 %v558, %v581
            %v630 = vmul.f32 %v559, %v581
            %v631 = vmul.f32 %v560, %v581
            %633 = vset.pattern.permute.xlu0 0
            %634 = vperm.xlu0 %633, %v434
            %v635 = vpop.permute.xlu0 %634
            %638 = vset.pattern.permute.xlu0 0
            %639 = vperm.xlu0 %638, %v435
            %v640 = vpop.permute.xlu0 %639
            %v642 = vsel %vm459, %v635, 0.0
            %v643 = vsel %vm460, %v640, 0.0
            %v644 = vsel %vm426, %v642, 0.0
            %v645 = vsel %vm426, %v643, 0.0
            %v646 = vadd.f32 %v644, %v645
            %v647 = vrot.slane %v646, 4
            %v648 = vadd.f32 %v646, %v647
            %v649 = vrot.slane %v648, 2
            %v650 = vadd.f32 %v648, %v649
            %v651 = vrot.slane %v650, 1
            %v652 = vadd.f32 %v650, %v651
            %v653 = vmul.f32 %v582, %v652
            %v654 = vmul.f32 %v583, %v652
            %v655 = vmul.f32 %v584, %v652
            %v656 = vmul.f32 %v585, %v652
            %v657 = vmul.f32 %v586, %v652
            %v658 = vmul.f32 %v587, %v652
            %v659 = vmul.f32 %v588, %v652
            %v660 = vmul.f32 %v589, %v652
            %v661 = vmul.f32 %v590, %v652
            %v662 = vmul.f32 %v591, %v652
            %v663 = vmul.f32 %v592, %v652
            %v664 = vmul.f32 %v593, %v652
            %v665 = vmul.f32 %v594, %v652
            %v666 = vmul.f32 %v595, %v652
            %v667 = vmul.f32 %v596, %v652
            %v668 = vmul.f32 %v597, %v652
            %v669 = vmul.f32 %v598, %v652
            %v670 = vmul.f32 %v599, %v652
            %v671 = vmul.f32 %v600, %v652
            %v672 = vmul.f32 %v601, %v652
            %v673 = vmul.f32 %v602, %v652
            %v674 = vmul.f32 %v603, %v652
            %v675 = vmul.f32 %v604, %v652
            %v676 = vmul.f32 %v605, %v652
            %v677 = vmul.f32 %v606, %v652
            %v678 = vmul.f32 %v607, %v652
            %v679 = vmul.f32 %v608, %v652
            %v680 = vmul.f32 %v609, %v652
            %v681 = vmul.f32 %v610, %v652
            %v682 = vmul.f32 %v611, %v652
            %v683 = vmul.f32 %v612, %v652
            %v684 = vmul.f32 %v613, %v652
            %v685 = vmul.f32 %v614, %v652
            %v686 = vmul.f32 %v615, %v652
            %v687 = vmul.f32 %v616, %v652
            %v688 = vmul.f32 %v617, %v652
            %v689 = vmul.f32 %v618, %v652
            %v690 = vmul.f32 %v619, %v652
            %v691 = vmul.f32 %v620, %v652
            %v692 = vmul.f32 %v621, %v652
            %v693 = vmul.f32 %v622, %v652
            %v694 = vmul.f32 %v623, %v652
            %v695 = vmul.f32 %v624, %v652
            %v696 = vmul.f32 %v625, %v652
            %v697 = vmul.f32 %v626, %v652
            %v698 = vmul.f32 %v627, %v652
            %v699 = vmul.f32 %v628, %v652
            %v700 = vmul.f32 %v629, %v652
            %v701 = vmul.f32 %v630, %v652
            %v702 = vmul.f32 %v631, %v652
            %v703 = vsel %vm426, %v653, 0.0
            %704 = vadd.xlane.f32.xlu0 %v703
            %v705 = vpop.xlane.xlu0 %704
            %v706 = vsel %vm426, %v654, 0.0
            %707 = vadd.xlane.f32.xlu0 %v706
            %v708 = vpop.xlane.xlu0 %707
            %v709 = vsel %vm426, %v655, 0.0
            %710 = vadd.xlane.f32.xlu0 %v709
            %v711 = vpop.xlane.xlu0 %710
            %v712 = vsel %vm426, %v656, 0.0
            %713 = vadd.xlane.f32.xlu0 %v712
            %v714 = vpop.xlane.xlu0 %713
            %v715 = vsel %vm426, %v657, 0.0
            %716 = vadd.xlane.f32.xlu0 %v715
            %v717 = vpop.xlane.xlu0 %716
            %v718 = vsel %vm426, %v658, 0.0
            %719 = vadd.xlane.f32.xlu0 %v718
            %v720 = vpop.xlane.xlu0 %719
            %v721 = vsel %vm426, %v659, 0.0
            %722 = vadd.xlane.f32.xlu0 %v721
            %v723 = vpop.xlane.xlu0 %722
            %v724 = vsel %vm426, %v660, 0.0
            %725 = vadd.xlane.f32.xlu0 %v724
            %v726 = vpop.xlane.xlu0 %725
            %v727 = vsel %vm426, %v661, 0.0
            %728 = vadd.xlane.f32.xlu0 %v727
            %v729 = vpop.xlane.xlu0 %728
            %v730 = vsel %vm426, %v662, 0.0
            %731 = vadd.xlane.f32.xlu0 %v730
            %v732 = vpop.xlane.xlu0 %731
            %v733 = vsel %vm426, %v663, 0.0
            %734 = vadd.xlane.f32.xlu0 %v733
            %v735 = vpop.xlane.xlu0 %734
            %v736 = vsel %vm426, %v664, 0.0
            %737 = vadd.xlane.f32.xlu0 %v736
            %v738 = vpop.xlane.xlu0 %737
            %v739 = vsel %vm426, %v665, 0.0
            %740 = vadd.xlane.f32.xlu0 %v739
            %v741 = vpop.xlane.xlu0 %740
            %v742 = vsel %vm426, %v666, 0.0
            %743 = vadd.xlane.f32.xlu0 %v742
            %v744 = vpop.xlane.xlu0 %743
            %v745 = vsel %vm426, %v667, 0.0
            %746 = vadd.xlane.f32.xlu0 %v745
            %v747 = vpop.xlane.xlu0 %746
            %v748 = vsel %vm426, %v668, 0.0
            %749 = vadd.xlane.f32.xlu0 %v748
            %v750 = vpop.xlane.xlu0 %749
            %v751 = vsel %vm426, %v669, 0.0
            %752 = vadd.xlane.f32.xlu0 %v751
            %v753 = vpop.xlane.xlu0 %752
            %v754 = vsel %vm426, %v670, 0.0
            %755 = vadd.xlane.f32.xlu0 %v754
            %v756 = vpop.xlane.xlu0 %755
            %v757 = vsel %vm426, %v671, 0.0
            %758 = vadd.xlane.f32.xlu0 %v757
            %v759 = vpop.xlane.xlu0 %758
            %v760 = vsel %vm426, %v672, 0.0
            %761 = vadd.xlane.f32.xlu0 %v760
            %v762 = vpop.xlane.xlu0 %761
            %v763 = vsel %vm426, %v673, 0.0
            %764 = vadd.xlane.f32.xlu0 %v763
            %v765 = vpop.xlane.xlu0 %764
            %v766 = vsel %vm426, %v674, 0.0
            %767 = vadd.xlane.f32.xlu0 %v766
            %v768 = vpop.xlane.xlu0 %767
            %v769 = vsel %vm426, %v675, 0.0
            %770 = vadd.xlane.f32.xlu0 %v769
            %v771 = vpop.xlane.xlu0 %770
            %v772 = vsel %vm426, %v676, 0.0
            %773 = vadd.xlane.f32.xlu0 %v772
            %v774 = vpop.xlane.xlu0 %773
            %v775 = vsel %vm426, %v677, 0.0
            %776 = vadd.xlane.f32.xlu0 %v775
            %v777 = vpop.xlane.xlu0 %776
            %v778 = vsel %vm426, %v678, 0.0
            %779 = vadd.xlane.f32.xlu0 %v778
            %v780 = vpop.xlane.xlu0 %779
            %v781 = vsel %vm426, %v679, 0.0
            %782 = vadd.xlane.f32.xlu0 %v781
            %v783 = vpop.xlane.xlu0 %782
            %v784 = vsel %vm426, %v680, 0.0
            %785 = vadd.xlane.f32.xlu0 %v784
            %v786 = vpop.xlane.xlu0 %785
            %v787 = vsel %vm426, %v681, 0.0
            %788 = vadd.xlane.f32.xlu0 %v787
            %v789 = vpop.xlane.xlu0 %788
            %v790 = vsel %vm426, %v682, 0.0
            %791 = vadd.xlane.f32.xlu0 %v790
            %v792 = vpop.xlane.xlu0 %791
            %v793 = vsel %vm426, %v683, 0.0
            %794 = vadd.xlane.f32.xlu0 %v793
            %v795 = vpop.xlane.xlu0 %794
            %v796 = vsel %vm426, %v684, 0.0
            %797 = vadd.xlane.f32.xlu0 %v796
            %v798 = vpop.xlane.xlu0 %797
            %v799 = vsel %vm426, %v685, 0.0
            %800 = vadd.xlane.f32.xlu0 %v799
            %v801 = vpop.xlane.xlu0 %800
            %v802 = vsel %vm426, %v686, 0.0
            %803 = vadd.xlane.f32.xlu0 %v802
            %v804 = vpop.xlane.xlu0 %803
            %v805 = vsel %vm426, %v687, 0.0
            %806 = vadd.xlane.f32.xlu0 %v805
            %v807 = vpop.xlane.xlu0 %806
            %v808 = vsel %vm426, %v688, 0.0
            %809 = vadd.xlane.f32.xlu0 %v808
            %v810 = vpop.xlane.xlu0 %809
            %v811 = vsel %vm426, %v689, 0.0
            %812 = vadd.xlane.f32.xlu0 %v811
            %v813 = vpop.xlane.xlu0 %812
            %v814 = vsel %vm426, %v690, 0.0
            %815 = vadd.xlane.f32.xlu0 %v814
            %v816 = vpop.xlane.xlu0 %815
            %v817 = vsel %vm426, %v691, 0.0
            %818 = vadd.xlane.f32.xlu0 %v817
            %v819 = vpop.xlane.xlu0 %818
            %v820 = vsel %vm426, %v692, 0.0
            %821 = vadd.xlane.f32.xlu0 %v820
            %v822 = vpop.xlane.xlu0 %821
            %v823 = vsel %vm426, %v693, 0.0
            %824 = vadd.xlane.f32.xlu0 %v823
            %v825 = vpop.xlane.xlu0 %824
            %v826 = vsel %vm426, %v694, 0.0
            %827 = vadd.xlane.f32.xlu0 %v826
            %v828 = vpop.xlane.xlu0 %827
            %v829 = vsel %vm426, %v695, 0.0
            %830 = vadd.xlane.f32.xlu0 %v829
            %v831 = vpop.xlane.xlu0 %830
            %v832 = vsel %vm426, %v696, 0.0
            %833 = vadd.xlane.f32.xlu0 %v832
            %v834 = vpop.xlane.xlu0 %833
            %v835 = vsel %vm426, %v697, 0.0
            %836 = vadd.xlane.f32.xlu0 %v835
            %v837 = vpop.xlane.xlu0 %836
            %v838 = vsel %vm426, %v698, 0.0
            %839 = vadd.xlane.f32.xlu0 %v838
            %v840 = vpop.xlane.xlu0 %839
            %v841 = vsel %vm426, %v699, 0.0
            %842 = vadd.xlane.f32.xlu0 %v841
            %v843 = vpop.xlane.xlu0 %842
            %v844 = vsel %vm426, %v700, 0.0
            %845 = vadd.xlane.f32.xlu0 %v844
            %v846 = vpop.xlane.xlu0 %845
            %v847 = vsel %vm426, %v701, 0.0
            %848 = vadd.xlane.f32.xlu0 %v847
            %v849 = vpop.xlane.xlu0 %848
            %v850 = vsel %vm426, %v702, 0.0
            %851 = vadd.xlane.f32.xlu0 %v850
            %v852 = vpop.xlane.xlu0 %851
            %v853 = vld [vmem:[#allocation4] sm:$0xff]
            %v854 = vld [vmem:[#allocation4 + $0x8] sm:$0xff]
            %v855 = vmul.f32 %v853, 0.00390625
            %v856 = vmul.f32 %v854, 0.00390625
            %v858 = vsel %vm426, %v582, 0
            %v861 = vsel %vm426, %v583, 0
            %v864 = vsel %vm426, %v584, 0
            %v867 = vsel %vm426, %v585, 0
            %v870 = vsel %vm426, %v586, 0
            %v873 = vsel %vm426, %v587, 0
            %v876 = vsel %vm426, %v588, 0
            %v879 = vsel %vm426, %v589, 0
            %v882 = vsel %vm426, %v590, 0
            %v885 = vsel %vm426, %v591, 0
            %v888 = vsel %vm426, %v592, 0
            %v891 = vsel %vm426, %v593, 0
            %v894 = vsel %vm426, %v594, 0
            %v897 = vsel %vm426, %v595, 0
            %v900 = vsel %vm426, %v596, 0
            %v903 = vsel %vm426, %v597, 0
            %v906 = vsel %vm426, %v598, 0
            %v909 = vsel %vm426, %v599, 0
            %v912 = vsel %vm426, %v600, 0
            %v915 = vsel %vm426, %v601, 0
            %v918 = vsel %vm426, %v602, 0
            %v921 = vsel %vm426, %v603, 0
            %v924 = vsel %vm426, %v604, 0
            %v927 = vsel %vm426, %v605, 0
            %v930 = vsel %vm426, %v606, 0
            %v933 = vsel %vm426, %v607, 0
            %v936 = vsel %vm426, %v608, 0
            %v939 = vsel %vm426, %v609, 0
            %v942 = vsel %vm426, %v610, 0
            %v945 = vsel %vm426, %v611, 0
            %v948 = vsel %vm426, %v612, 0
            %v951 = vsel %vm426, %v613, 0
            %v954 = vsel %vm426, %v614, 0
            %v957 = vsel %vm426, %v615, 0
            %v960 = vsel %vm426, %v616, 0
            %v963 = vsel %vm426, %v617, 0
            %v966 = vsel %vm426, %v618, 0
            %v969 = vsel %vm426, %v619, 0
            %v972 = vsel %vm426, %v620, 0
            %v975 = vsel %vm426, %v621, 0
            %v978 = vsel %vm426, %v622, 0
            %v981 = vsel %vm426, %v623, 0
            %v984 = vsel %vm426, %v624, 0
            %v987 = vsel %vm426, %v625, 0
            %v990 = vsel %vm426, %v626, 0
            %v993 = vsel %vm426, %v627, 0
            %v996 = vsel %vm426, %v628, 0
            %v999 = vsel %vm426, %v629, 0
            %v1002 = vsel %vm426, %v630, 0
            %v1005 = vsel %vm426, %v631, 0
            %1007 = vmatprep.subr.mxu0 0.0
            %1008 = vmatpush1.msra.mxu0 %v855
            %1009 = vmatprep.subr.mxu0 0.0
            %1010 = vmatpush1.msra.mxu0 %v856
            %1011 = vmatprep.subr.mxu0 0.0
            %1012 = vmatpush1.msra.mxu0 0.0
            %1013 = vmatprep.subr.mxu0 0.0
            %1014 = vmatpush1.msra.mxu0 0.0
            %1015 = vmatprep.subr.mxu0 0.0
            %1016 = vmatpush1.msra.mxu0 0.0
            %1017 = vmatprep.subr.mxu0 0.0
            %1018 = vmatpush1.msra.mxu0 0.0
            %1019 = vmatprep.subr.mxu0 0.0
            %1020 = vmatpush1.msra.mxu0 0.0
            %1021 = vmatprep.subr.mxu0 0.0
            %1022 = vmatpush1.msra.mxu0 0.0
            %1023 = vmatprep.subr.mxu0 0.0
            %1024 = vmatpush1.msra.mxu0 0.0
            %1025 = vmatprep.subr.mxu0 0.0
            %1026 = vmatpush1.msra.mxu0 0.0
            %1027 = vmatprep.subr.mxu0 0.0
            %1028 = vmatpush1.msra.mxu0 0.0
            %1029 = vmatprep.subr.mxu0 0.0
            %1030 = vmatpush1.msra.mxu0 0.0
            %1031 = vmatprep.subr.mxu0 0.0
            %1032 = vmatpush1.msra.mxu0 0.0
            %1033 = vmatprep.subr.mxu0 0.0
            %1034 = vmatpush1.msra.mxu0 0.0
            %1035 = vmatprep.subr.mxu0 0.0
            %1036 = vmatpush1.msra.mxu0 0.0
            %1037 = vmatprep.subr.mxu0 0.0
            %1038 = vmatpush1.msra.mxu0 0.0
            %1039 = vmatprep.subr.mxu0 0.0
            %1040 = vmatpush1.msra.mxu0 0.0
            %1041 = vmatprep.subr.mxu0 0.0
            %1042 = vmatpush1.msra.mxu0 0.0
            %1043 = vmatprep.subr.mxu0 0.0
            %1044 = vmatpush1.msra.mxu0 0.0
            %1045 = vmatprep.subr.mxu0 0.0
            %1046 = vmatpush1.msra.mxu0 0.0
            %1047 = vmatprep.subr.mxu0 0.0
            %1048 = vmatpush1.msra.mxu0 0.0
            %1049 = vmatprep.subr.mxu0 0.0
            %1050 = vmatpush1.msra.mxu0 0.0
            %1051 = vmatprep.subr.mxu0 0.0
            %1052 = vmatpush1.msra.mxu0 0.0
            %1053 = vmatprep.subr.mxu0 0.0
            %1054 = vmatpush1.msra.mxu0 0.0
            %1055 = vmatprep.subr.mxu0 0.0
            %1056 = vmatpush1.msra.mxu0 0.0
            %1057 = vmatprep.subr.mxu0 0.0
            %1058 = vmatpush1.msra.mxu0 0.0
            %1059 = vmatprep.subr.mxu0 0.0
            %1060 = vmatpush1.msra.mxu0 0.0
            %1061 = vmatprep.subr.mxu0 0.0
            %1062 = vmatpush1.msra.mxu0 0.0
            %1063 = vmatprep.subr.mxu0 0.0
            %1064 = vmatpush1.msra.mxu0 0.0
            %1065 = vmatprep.subr.mxu0 0.0
            %1066 = vmatpush1.msra.mxu0 0.0
            %1067 = vmatprep.subr.mxu0 0.0
            %1068 = vmatpush1.msra.mxu0 0.0
            %1069 = vmatprep.subr.mxu0 0.0
            %1070 = vmatpush1.msra.mxu0 0.0
            %1071 = vmatprep.mubr.f32.mxu0 0.0
            %1072 = vmatmul.mubr.f32.gmra.mrb[0].mxu0 %v858
            %v1073 = vpop.f32.mrb[0].mxu0
            %v1074 = vadd.f32 0.0, %v1073
            %v1075 = vpop.f32.mrb[0].mxu0
            %1076 = vmatprep.mubr.f32.mxu0 0.0
            %1077 = vmatmul.mubr.f32.gmra.mrb[0].mxu0 %v861
            %v1078 = vpop.f32.mrb[0].mxu0
            %v1079 = vadd.f32 0.0, %v1078
            %v1080 = vpop.f32.mrb[0].mxu0
            %1081 = vmatprep.mubr.f32.mxu0 0.0
            %1082 = vmatmul.mubr.f32.gmra.mrb[0].mxu0 %v864
            %v1083 = vpop.f32.mrb[0].mxu0
            %v1084 = vadd.f32 0.0, %v1083
            %v1085 = vpop.f32.mrb[0].mxu0
            %1086 = vmatprep.mubr.f32.mxu0 0.0
            %1087 = vmatmul.mubr.f32.gmra.mrb[0].mxu0 %v867
            %v1088 = vpop.f32.mrb[0].mxu0
            %v1089 = vadd.f32 0.0, %v1088
            %v1090 = vpop.f32.mrb[0].mxu0
            %1091 = vmatprep.mubr.f32.mxu0 0.0
            %1092 = vmatmul.mubr.f32.gmra.mrb[0].mxu0 %v870
            %v1093 = vpop.f32.mrb[0].mxu0
            %v1094 = vadd.f32 0.0, %v1093
            %v1095 = vpop.f32.mrb[0].mxu0
            %1096 = vmatprep.mubr.f32.mxu0 0.0
            %1097 = vmatmul.mubr.f32.gmra.mrb[0].mxu0 %v873
            %v1098 = vpop.f32.mrb[0].mxu0
            %v1099 = vadd.f32 0.0, %v1098
            %v1100 = vpop.f32.mrb[0].mxu0
            %1101 = vmatprep.mubr.f32.mxu0 0.0
            %1102 = vmatmul.mubr.f32.gmra.mrb[0].mxu0 %v876
            %v1103 = vpop.f32.mrb[0].mxu0
            %v1104 = vadd.f32 0.0, %v1103
            %v1105 = vpop.f32.mrb[0].mxu0
            %1106 = vmatprep.mubr.f32.mxu0 0.0
            %1107 = vmatmul.mubr.f32.gmra.mrb[0].mxu0 %v879
            %v1108 = vpop.f32.mrb[0].mxu0
            %v1109 = vadd.f32 0.0, %v1108
            %v1110 = vpop.f32.mrb[0].mxu0
            %1111 = vmatprep.mubr.f32.mxu0 0.0
            %1112 = vmatmul.mubr.f32.gmra.mrb[0].mxu0 %v882
            %v1113 = vpop.f32.mrb[0].mxu0
            %v1114 = vadd.f32 0.0, %v1113
            %v1115 = vpop.f32.mrb[0].mxu0
            %1116 = vmatprep.mubr.f32.mxu0 0.0
            %1117 = vmatmul.mubr.f32.gmra.mrb[0].mxu0 %v885
            %v1118 = vpop.f32.mrb[0].mxu0
            %v1119 = vadd.f32 0.0, %v1118
            %v1120 = vpop.f32.mrb[0].mxu0
            %1121 = vmatprep.mubr.f32.mxu0 0.0
            %1122 = vmatmul.mubr.f32.gmra.mrb[0].mxu0 %v888
            %v1123 = vpop.f32.mrb[0].mxu0
            %v1124 = vadd.f32 0.0, %v1123
            %v1125 = vpop.f32.mrb[0].mxu0
            %1126 = vmatprep.mubr.f32.mxu0 0.0
            %1127 = vmatmul.mubr.f32.gmra.mrb[0].mxu0 %v891
            %v1128 = vpop.f32.mrb[0].mxu0
            %v1129 = vadd.f32 0.0, %v1128
            %v1130 = vpop.f32.mrb[0].mxu0
            %1131 = vmatprep.mubr.f32.mxu0 0.0
            %1132 = vmatmul.mubr.f32.gmra.mrb[0].mxu0 %v894
            %v1133 = vpop.f32.mrb[0].mxu0
            %v1134 = vadd.f32 0.0, %v1133
            %v1135 = vpop.f32.mrb[0].mxu0
            %1136 = vmatprep.mubr.f32.mxu0 0.0
            %1137 = vmatmul.mubr.f32.gmra.mrb[0].mxu0 %v897
            %v1138 = vpop.f32.mrb[0].mxu0
            %v1139 = vadd.f32 0.0, %v1138
            %v1140 = vpop.f32.mrb[0].mxu0
            %1141 = vmatprep.mubr.f32.mxu0 0.0
            %1142 = vmatmul.mubr.f32.gmra.mrb[0].mxu0 %v900
            %v1143 = vpop.f32.mrb[0].mxu0
            %v1144 = vadd.f32 0.0, %v1143
            %v1145 = vpop.f32.mrb[0].mxu0
            %1146 = vmatprep.mubr.f32.mxu0 0.0
            %1147 = vmatmul.mubr.f32.gmra.mrb[0].mxu0 %v903
            %v1148 = vpop.f32.mrb[0].mxu0
            %v1149 = vadd.f32 0.0, %v1148
            %v1150 = vpop.f32.mrb[0].mxu0
            %1151 = vmatprep.mubr.f32.mxu0 0.0
            %1152 = vmatmul.mubr.f32.gmra.mrb[0].mxu0 %v906
            %v1153 = vpop.f32.mrb[0].mxu0
            %v1154 = vadd.f32 0.0, %v1153
            %v1155 = vpop.f32.mrb[0].mxu0
            %1156 = vmatprep.mubr.f32.mxu0 0.0
            %1157 = vmatmul.mubr.f32.gmra.mrb[0].mxu0 %v909
            %v1158 = vpop.f32.mrb[0].mxu0
            %v1159 = vadd.f32 0.0, %v1158
            %v1160 = vpop.f32.mrb[0].mxu0
            %1161 = vmatprep.mubr.f32.mxu0 0.0
            %1162 = vmatmul.mubr.f32.gmra.mrb[0].mxu0 %v912
            %v1163 = vpop.f32.mrb[0].mxu0
            %v1164 = vadd.f32 0.0, %v1163
            %v1165 = vpop.f32.mrb[0].mxu0
            %1166 = vmatprep.mubr.f32.mxu0 0.0
            %1167 = vmatmul.mubr.f32.gmra.mrb[0].mxu0 %v915
            %v1168 = vpop.f32.mrb[0].mxu0
            %v1169 = vadd.f32 0.0, %v1168
            %v1170 = vpop.f32.mrb[0].mxu0
            %1171 = vmatprep.mubr.f32.mxu0 0.0
            %1172 = vmatmul.mubr.f32.gmra.mrb[0].mxu0 %v918
            %v1173 = vpop.f32.mrb[0].mxu0
            %v1174 = vadd.f32 0.0, %v1173
            %v1175 = vpop.f32.mrb[0].mxu0
            %1176 = vmatprep.mubr.f32.mxu0 0.0
            %1177 = vmatmul.mubr.f32.gmra.mrb[0].mxu0 %v921
            %v1178 = vpop.f32.mrb[0].mxu0
            %v1179 = vadd.f32 0.0, %v1178
            %v1180 = vpop.f32.mrb[0].mxu0
            %1181 = vmatprep.mubr.f32.mxu0 0.0
            %1182 = vmatmul.mubr.f32.gmra.mrb[0].mxu0 %v924
            %v1183 = vpop.f32.mrb[0].mxu0
            %v1184 = vadd.f32 0.0, %v1183
            %v1185 = vpop.f32.mrb[0].mxu0
            %1186 = vmatprep.mubr.f32.mxu0 0.0
            %1187 = vmatmul.mubr.f32.gmra.mrb[0].mxu0 %v927
            %v1188 = vpop.f32.mrb[0].mxu0
            %v1189 = vadd.f32 0.0, %v1188
            %v1190 = vpop.f32.mrb[0].mxu0
            %1191 = vmatprep.mubr.f32.mxu0 0.0
            %1192 = vmatmul.mubr.f32.gmra.mrb[0].mxu0 %v930
            %v1193 = vpop.f32.mrb[0].mxu0
            %v1194 = vadd.f32 0.0, %v1193
            %v1195 = vpop.f32.mrb[0].mxu0
            %1196 = vmatprep.mubr.f32.mxu0 0.0
            %1197 = vmatmul.mubr.f32.gmra.mrb[0].mxu0 %v933
            %v1198 = vpop.f32.mrb[0].mxu0
            %v1199 = vadd.f32 0.0, %v1198
            %v1200 = vpop.f32.mrb[0].mxu0
            %1201 = vmatprep.mubr.f32.mxu0 0.0
            %1202 = vmatmul.mubr.f32.gmra.mrb[0].mxu0 %v936
            %v1203 = vpop.f32.mrb[0].mxu0
            %v1204 = vadd.f32 0.0, %v1203
            %v1205 = vpop.f32.mrb[0].mxu0
            %1206 = vmatprep.mubr.f32.mxu0 0.0
            %1207 = vmatmul.mubr.f32.gmra.mrb[0].mxu0 %v939
            %v1208 = vpop.f32.mrb[0].mxu0
            %v1209 = vadd.f32 0.0, %v1208
            %v1210 = vpop.f32.mrb[0].mxu0
            %1211 = vmatprep.mubr.f32.mxu0 0.0
            %1212 = vmatmul.mubr.f32.gmra.mrb[0].mxu0 %v942
            %v1213 = vpop.f32.mrb[0].mxu0
            %v1214 = vadd.f32 0.0, %v1213
            %v1215 = vpop.f32.mrb[0].mxu0
            %1216 = vmatprep.mubr.f32.mxu0 0.0
            %1217 = vmatmul.mubr.f32.gmra.mrb[0].mxu0 %v945
            %v1218 = vpop.f32.mrb[0].mxu0
            %v1219 = vadd.f32 0.0, %v1218
            %v1220 = vpop.f32.mrb[0].mxu0
            %1221 = vmatprep.mubr.f32.mxu0 0.0
            %1222 = vmatmul.mubr.f32.gmra.mrb[0].mxu0 %v948
            %v1223 = vpop.f32.mrb[0].mxu0
            %v1224 = vadd.f32 0.0, %v1223
            %v1225 = vpop.f32.mrb[0].mxu0
            %1226 = vmatprep.mubr.f32.mxu0 0.0
            %1227 = vmatmul.mubr.f32.gmra.mrb[0].mxu0 %v951
            %v1228 = vpop.f32.mrb[0].mxu0
            %v1229 = vadd.f32 0.0, %v1228
            %v1230 = vpop.f32.mrb[0].mxu0
            %1231 = vmatprep.mubr.f32.mxu0 0.0
            %1232 = vmatmul.mubr.f32.gmra.mrb[0].mxu0 %v954
            %v1233 = vpop.f32.mrb[0].mxu0
            %v1234 = vadd.f32 0.0, %v1233
            %v1235 = vpop.f32.mrb[0].mxu0
            %1236 = vmatprep.mubr.f32.mxu0 0.0
            %1237 = vmatmul.mubr.f32.gmra.mrb[0].mxu0 %v957
            %v1238 = vpop.f32.mrb[0].mxu0
            %v1239 = vadd.f32 0.0, %v1238
            %v1240 = vpop.f32.mrb[0].mxu0
            %1241 = vmatprep.mubr.f32.mxu0 0.0
            %1242 = vmatmul.mubr.f32.gmra.mrb[0].mxu0 %v960
            %v1243 = vpop.f32.mrb[0].mxu0
            %v1244 = vadd.f32 0.0, %v1243
            %v1245 = vpop.f32.mrb[0].mxu0
            %1246 = vmatprep.mubr.f32.mxu0 0.0
            %1247 = vmatmul.mubr.f32.gmra.mrb[0].mxu0 %v963
            %v1248 = vpop.f32.mrb[0].mxu0
            %v1249 = vadd.f32 0.0, %v1248
            %v1250 = vpop.f32.mrb[0].mxu0
            %1251 = vmatprep.mubr.f32.mxu0 0.0
            %1252 = vmatmul.mubr.f32.gmra.mrb[0].mxu0 %v966
            %v1253 = vpop.f32.mrb[0].mxu0
            %v1254 = vadd.f32 0.0, %v1253
            %v1255 = vpop.f32.mrb[0].mxu0
            %1256 = vmatprep.mubr.f32.mxu0 0.0
            %1257 = vmatmul.mubr.f32.gmra.mrb[0].mxu0 %v969
            %v1258 = vpop.f32.mrb[0].mxu0
            %v1259 = vadd.f32 0.0, %v1258
            %v1260 = vpop.f32.mrb[0].mxu0
            %1261 = vmatprep.mubr.f32.mxu0 0.0
            %1262 = vmatmul.mubr.f32.gmra.mrb[0].mxu0 %v972
            %v1263 = vpop.f32.mrb[0].mxu0
            %v1264 = vadd.f32 0.0, %v1263
            %v1265 = vpop.f32.mrb[0].mxu0
            %1266 = vmatprep.mubr.f32.mxu0 0.0
            %1267 = vmatmul.mubr.f32.gmra.mrb[0].mxu0 %v975
            %v1268 = vpop.f32.mrb[0].mxu0
            %v1269 = vadd.f32 0.0, %v1268
            %v1270 = vpop.f32.mrb[0].mxu0
            %1271 = vmatprep.mubr.f32.mxu0 0.0
            %1272 = vmatmul.mubr.f32.gmra.mrb[0].mxu0 %v978
            %v1273 = vpop.f32.mrb[0].mxu0
            %v1274 = vadd.f32 0.0, %v1273
            %v1275 = vpop.f32.mrb[0].mxu0
            %1276 = vmatprep.mubr.f32.mxu0 0.0
            %1277 = vmatmul.mubr.f32.gmra.mrb[0].mxu0 %v981
            %v1278 = vpop.f32.mrb[0].mxu0
            %v1279 = vadd.f32 0.0, %v1278
            %v1280 = vpop.f32.mrb[0].mxu0
            %1281 = vmatprep.mubr.f32.mxu0 0.0
            %1282 = vmatmul.mubr.f32.gmra.mrb[0].mxu0 %v984
            %v1283 = vpop.f32.mrb[0].mxu0
            %v1284 = vadd.f32 0.0, %v1283
            %v1285 = vpop.f32.mrb[0].mxu0
            %1286 = vmatprep.mubr.f32.mxu0 0.0
            %1287 = vmatmul.mubr.f32.gmra.mrb[0].mxu0 %v987
            %v1288 = vpop.f32.mrb[0].mxu0
            %v1289 = vadd.f32 0.0, %v1288
            %v1290 = vpop.f32.mrb[0].mxu0
            %1291 = vmatprep.mubr.f32.mxu0 0.0
            %1292 = vmatmul.mubr.f32.gmra.mrb[0].mxu0 %v990
            %v1293 = vpop.f32.mrb[0].mxu0
            %v1294 = vadd.f32 0.0, %v1293
            %v1295 = vpop.f32.mrb[0].mxu0
            %1296 = vmatprep.mubr.f32.mxu0 0.0
            %1297 = vmatmul.mubr.f32.gmra.mrb[0].mxu0 %v993
            %v1298 = vpop.f32.mrb[0].mxu0
            %v1299 = vadd.f32 0.0, %v1298
            %v1300 = vpop.f32.mrb[0].mxu0
            %1301 = vmatprep.mubr.f32.mxu0 0.0
            %1302 = vmatmul.mubr.f32.gmra.mrb[0].mxu0 %v996
            %v1303 = vpop.f32.mrb[0].mxu0
            %v1304 = vadd.f32 0.0, %v1303
            %v1305 = vpop.f32.mrb[0].mxu0
            %1306 = vmatprep.mubr.f32.mxu0 0.0
            %1307 = vmatmul.mubr.f32.gmra.mrb[0].mxu0 %v999
            %v1308 = vpop.f32.mrb[0].mxu0
            %v1309 = vadd.f32 0.0, %v1308
            %v1310 = vpop.f32.mrb[0].mxu0
            %1311 = vmatprep.mubr.f32.mxu0 0.0
            %1312 = vmatmul.mubr.f32.gmra.mrb[0].mxu0 %v1002
            %v1313 = vpop.f32.mrb[0].mxu0
            %v1314 = vadd.f32 0.0, %v1313
            %v1315 = vpop.f32.mrb[0].mxu0
            %1316 = vmatprep.mubr.f32.mxu0 0.0
            %1317 = vmatmul.mubr.f32.gmra.mrb[0].mxu0 %v1005
            %v1318 = vpop.f32.mrb[0].mxu0
            %v1319 = vadd.f32 0.0, %v1318
            %v1320 = vpop.f32.mrb[0].mxu0
            %1321 = vdwg.mxu0
            %v1322 = vmul.f32 %v582, %v1074
            %v1323 = vmul.f32 %v583, %v1079
            %v1324 = vmul.f32 %v584, %v1084
            %v1325 = vmul.f32 %v585, %v1089
            %v1326 = vmul.f32 %v586, %v1094
            %v1327 = vmul.f32 %v587, %v1099
            %v1328 = vmul.f32 %v588, %v1104
            %v1329 = vmul.f32 %v589, %v1109
            %v1330 = vmul.f32 %v590, %v1114
            %v1331 = vmul.f32 %v591, %v1119
            %v1332 = vmul.f32 %v592, %v1124
            %v1333 = vmul.f32 %v593, %v1129
            %v1334 = vmul.f32 %v594, %v1134
            %v1335 = vmul.f32 %v595, %v1139
            %v1336 = vmul.f32 %v596, %v1144
            %v1337 = vmul.f32 %v597, %v1149
            %v1338 = vmul.f32 %v598, %v1154
            %v1339 = vmul.f32 %v599, %v1159
            %v1340 = vmul.f32 %v600, %v1164
            %v1341 = vmul.f32 %v601, %v1169
            %v1342 = vmul.f32 %v602, %v1174
            %v1343 = vmul.f32 %v603, %v1179
            %v1344 = vmul.f32 %v604, %v1184
            %v1345 = vmul.f32 %v605, %v1189
            %v1346 = vmul.f32 %v606, %v1194
            %v1347 = vmul.f32 %v607, %v1199
            %v1348 = vmul.f32 %v608, %v1204
            %v1349 = vmul.f32 %v609, %v1209
            %v1350 = vmul.f32 %v610, %v1214
            %v1351 = vmul.f32 %v611, %v1219
            %v1352 = vmul.f32 %v612, %v1224
            %v1353 = vmul.f32 %v613, %v1229
            %v1354 = vmul.f32 %v614, %v1234
            %v1355 = vmul.f32 %v615, %v1239
            %v1356 = vmul.f32 %v616, %v1244
            %v1357 = vmul.f32 %v617, %v1249
            %v1358 = vmul.f32 %v618, %v1254
            %v1359 = vmul.f32 %v619, %v1259
            %v1360 = vmul.f32 %v620, %v1264
            %v1361 = vmul.f32 %v621, %v1269
            %v1362 = vmul.f32 %v622, %v1274
            %v1363 = vmul.f32 %v623, %v1279
            %v1364 = vmul.f32 %v624, %v1284
            %v1365 = vmul.f32 %v625, %v1289
            %v1366 = vmul.f32 %v626, %v1294
            %v1367 = vmul.f32 %v627, %v1299
            %v1368 = vmul.f32 %v628, %v1304
            %v1369 = vmul.f32 %v629, %v1309
            %v1370 = vmul.f32 %v630, %v1314
            %v1371 = vmul.f32 %v631, %v1319
            %v1372 = vsel %vm426, %v1322, 0.0
            %1373 = vadd.xlane.f32.xlu0 %v1372
            %v1374 = vpop.xlane.xlu0 %1373
            %v1375 = vsel %vm426, %v1323, 0.0
            %1376 = vadd.xlane.f32.xlu0 %v1375
            %v1377 = vpop.xlane.xlu0 %1376
            %v1378 = vsel %vm426, %v1324, 0.0
            %1379 = vadd.xlane.f32.xlu0 %v1378
            %v1380 = vpop.xlane.xlu0 %1379
            %v1381 = vsel %vm426, %v1325, 0.0
            %1382 = vadd.xlane.f32.xlu0 %v1381
            %v1383 = vpop.xlane.xlu0 %1382
            %v1384 = vsel %vm426, %v1326, 0.0
            %1385 = vadd.xlane.f32.xlu0 %v1384
            %v1386 = vpop.xlane.xlu0 %1385
            %v1387 = vsel %vm426, %v1327, 0.0
            %1388 = vadd.xlane.f32.xlu0 %v1387
            %v1389 = vpop.xlane.xlu0 %1388
            %v1390 = vsel %vm426, %v1328, 0.0
            %1391 = vadd.xlane.f32.xlu0 %v1390
            %v1392 = vpop.xlane.xlu0 %1391
            %v1393 = vsel %vm426, %v1329, 0.0
            %1394 = vadd.xlane.f32.xlu0 %v1393
            %v1395 = vpop.xlane.xlu0 %1394
            %v1396 = vsel %vm426, %v1330, 0.0
            %1397 = vadd.xlane.f32.xlu0 %v1396
            %v1398 = vpop.xlane.xlu0 %1397
            %v1399 = vsel %vm426, %v1331, 0.0
            %1400 = vadd.xlane.f32.xlu0 %v1399
            %v1401 = vpop.xlane.xlu0 %1400
            %v1402 = vsel %vm426, %v1332, 0.0
            %1403 = vadd.xlane.f32.xlu0 %v1402
            %v1404 = vpop.xlane.xlu0 %1403
            %v1405 = vsel %vm426, %v1333, 0.0
            %1406 = vadd.xlane.f32.xlu0 %v1405
            %v1407 = vpop.xlane.xlu0 %1406
            %v1408 = vsel %vm426, %v1334, 0.0
            %1409 = vadd.xlane.f32.xlu0 %v1408
            %v1410 = vpop.xlane.xlu0 %1409
            %v1411 = vsel %vm426, %v1335, 0.0
            %1412 = vadd.xlane.f32.xlu0 %v1411
            %v1413 = vpop.xlane.xlu0 %1412
            %v1414 = vsel %vm426, %v1336, 0.0
            %1415 = vadd.xlane.f32.xlu0 %v1414
            %v1416 = vpop.xlane.xlu0 %1415
            %v1417 = vsel %vm426, %v1337, 0.0
            %1418 = vadd.xlane.f32.xlu0 %v1417
            %v1419 = vpop.xlane.xlu0 %1418
            %v1420 = vsel %vm426, %v1338, 0.0
            %1421 = vadd.xlane.f32.xlu0 %v1420
            %v1422 = vpop.xlane.xlu0 %1421
            %v1423 = vsel %vm426, %v1339, 0.0
            %1424 = vadd.xlane.f32.xlu0 %v1423
            %v1425 = vpop.xlane.xlu0 %1424
            %v1426 = vsel %vm426, %v1340, 0.0
            %1427 = vadd.xlane.f32.xlu0 %v1426
            %v1428 = vpop.xlane.xlu0 %1427
            %v1429 = vsel %vm426, %v1341, 0.0
            %1430 = vadd.xlane.f32.xlu0 %v1429
            %v1431 = vpop.xlane.xlu0 %1430
            %v1432 = vsel %vm426, %v1342, 0.0
            %1433 = vadd.xlane.f32.xlu0 %v1432
            %v1434 = vpop.xlane.xlu0 %1433
            %v1435 = vsel %vm426, %v1343, 0.0
            %1436 = vadd.xlane.f32.xlu0 %v1435
            %v1437 = vpop.xlane.xlu0 %1436
            %v1438 = vsel %vm426, %v1344, 0.0
            %1439 = vadd.xlane.f32.xlu0 %v1438
            %v1440 = vpop.xlane.xlu0 %1439
            %v1441 = vsel %vm426, %v1345, 0.0
            %1442 = vadd.xlane.f32.xlu0 %v1441
            %v1443 = vpop.xlane.xlu0 %1442
            %v1444 = vsel %vm426, %v1346, 0.0
            %1445 = vadd.xlane.f32.xlu0 %v1444
            %v1446 = vpop.xlane.xlu0 %1445
            %v1447 = vsel %vm426, %v1347, 0.0
            %1448 = vadd.xlane.f32.xlu0 %v1447
            %v1449 = vpop.xlane.xlu0 %1448
            %v1450 = vsel %vm426, %v1348, 0.0
            %1451 = vadd.xlane.f32.xlu0 %v1450
            %v1452 = vpop.xlane.xlu0 %1451
            %v1453 = vsel %vm426, %v1349, 0.0
            %1454 = vadd.xlane.f32.xlu0 %v1453
            %v1455 = vpop.xlane.xlu0 %1454
            %v1456 = vsel %vm426, %v1350, 0.0
            %1457 = vadd.xlane.f32.xlu0 %v1456
            %v1458 = vpop.xlane.xlu0 %1457
            %v1459 = vsel %vm426, %v1351, 0.0
            %1460 = vadd.xlane.f32.xlu0 %v1459
            %v1461 = vpop.xlane.xlu0 %1460
            %v1462 = vsel %vm426, %v1352, 0.0
            %1463 = vadd.xlane.f32.xlu0 %v1462
            %v1464 = vpop.xlane.xlu0 %1463
            %v1465 = vsel %vm426, %v1353, 0.0
            %1466 = vadd.xlane.f32.xlu0 %v1465
            %v1467 = vpop.xlane.xlu0 %1466
            %v1468 = vsel %vm426, %v1354, 0.0
            %1469 = vadd.xlane.f32.xlu0 %v1468
            %v1470 = vpop.xlane.xlu0 %1469
            %v1471 = vsel %vm426, %v1355, 0.0
            %1472 = vadd.xlane.f32.xlu0 %v1471
            %v1473 = vpop.xlane.xlu0 %1472
            %v1474 = vsel %vm426, %v1356, 0.0
            %1475 = vadd.xlane.f32.xlu0 %v1474
            %v1476 = vpop.xlane.xlu0 %1475
            %v1477 = vsel %vm426, %v1357, 0.0
            %1478 = vadd.xlane.f32.xlu0 %v1477
            %v1479 = vpop.xlane.xlu0 %1478
            %v1480 = vsel %vm426, %v1358, 0.0
            %1481 = vadd.xlane.f32.xlu0 %v1480
            %v1482 = vpop.xlane.xlu0 %1481
            %v1483 = vsel %vm426, %v1359, 0.0
            %1484 = vadd.xlane.f32.xlu0 %v1483
            %v1485 = vpop.xlane.xlu0 %1484
            %v1486 = vsel %vm426, %v1360, 0.0
            %1487 = vadd.xlane.f32.xlu0 %v1486
            %v1488 = vpop.xlane.xlu0 %1487
            %v1489 = vsel %vm426, %v1361, 0.0
            %1490 = vadd.xlane.f32.xlu0 %v1489
            %v1491 = vpop.xlane.xlu0 %1490
            %v1492 = vsel %vm426, %v1362, 0.0
            %1493 = vadd.xlane.f32.xlu0 %v1492
            %v1494 = vpop.xlane.xlu0 %1493
            %v1495 = vsel %vm426, %v1363, 0.0
            %1496 = vadd.xlane.f32.xlu0 %v1495
            %v1497 = vpop.xlane.xlu0 %1496
            %v1498 = vsel %vm426, %v1364, 0.0
            %1499 = vadd.xlane.f32.xlu0 %v1498
            %v1500 = vpop.xlane.xlu0 %1499
            %v1501 = vsel %vm426, %v1365, 0.0
            %1502 = vadd.xlane.f32.xlu0 %v1501
            %v1503 = vpop.xlane.xlu0 %1502
            %v1504 = vsel %vm426, %v1366, 0.0
            %1505 = vadd.xlane.f32.xlu0 %v1504
            %v1506 = vpop.xlane.xlu0 %1505
            %v1507 = vsel %vm426, %v1367, 0.0
            %1508 = vadd.xlane.f32.xlu0 %v1507
            %v1509 = vpop.xlane.xlu0 %1508
            %v1510 = vsel %vm426, %v1368, 0.0
            %1511 = vadd.xlane.f32.xlu0 %v1510
            %v1512 = vpop.xlane.xlu0 %1511
            %v1513 = vsel %vm426, %v1369, 0.0
            %1514 = vadd.xlane.f32.xlu0 %v1513
            %v1515 = vpop.xlane.xlu0 %1514
            %v1516 = vsel %vm426, %v1370, 0.0
            %1517 = vadd.xlane.f32.xlu0 %v1516
            %v1518 = vpop.xlane.xlu0 %1517
            %v1519 = vsel %vm426, %v1371, 0.0
            %1520 = vadd.xlane.f32.xlu0 %v1519
            %v1521 = vpop.xlane.xlu0 %1520
            %v1522 = vmul.f32 %v705, %v705
            %v1523 = vmul.f32 %v708, %v708
            %v1524 = vmul.f32 %v711, %v711
            %v1525 = vmul.f32 %v714, %v714
            %v1526 = vmul.f32 %v717, %v717
            %v1527 = vmul.f32 %v720, %v720
            %v1528 = vmul.f32 %v723, %v723
            %v1529 = vmul.f32 %v726, %v726
            %v1530 = vmul.f32 %v729, %v729
            %v1531 = vmul.f32 %v732, %v732
            %v1532 = vmul.f32 %v735, %v735
            %v1533 = vmul.f32 %v738, %v738
            %v1534 = vmul.f32 %v741, %v741
            %v1535 = vmul.f32 %v744, %v744
            %v1536 = vmul.f32 %v747, %v747
            %v1537 = vmul.f32 %v750, %v750
            %v1538 = vmul.f32 %v753, %v753
            %v1539 = vmul.f32 %v756, %v756
            %v1540 = vmul.f32 %v759, %v759
            %v1541 = vmul.f32 %v762, %v762
            %v1542 = vmul.f32 %v765, %v765
            %v1543 = vmul.f32 %v768, %v768
            %v1544 = vmul.f32 %v771, %v771
            %v1545 = vmul.f32 %v774, %v774
            %v1546 = vmul.f32 %v777, %v777
            %v1547 = vmul.f32 %v780, %v780
            %v1548 = vmul.f32 %v783, %v783
            %v1549 = vmul.f32 %v786, %v786
            %v1550 = vmul.f32 %v789, %v789
            %v1551 = vmul.f32 %v792, %v792
            %v1552 = vmul.f32 %v795, %v795
            %v1553 = vmul.f32 %v798, %v798
            %v1554 = vmul.f32 %v801, %v801
            %v1555 = vmul.f32 %v804, %v804
            %v1556 = vmul.f32 %v807, %v807
            %v1557 = vmul.f32 %v810, %v810
            %v1558 = vmul.f32 %v813, %v813
            %v1559 = vmul.f32 %v816, %v816
            %v1560 = vmul.f32 %v819, %v819
            %v1561 = vmul.f32 %v822, %v822
            %v1562 = vmul.f32 %v825, %v825
            %v1563 = vmul.f32 %v828, %v828
            %v1564 = vmul.f32 %v831, %v831
            %v1565 = vmul.f32 %v834, %v834
            %v1566 = vmul.f32 %v837, %v837
            %v1567 = vmul.f32 %v840, %v840
            %v1568 = vmul.f32 %v843, %v843
            %v1569 = vmul.f32 %v846, %v846
            %v1570 = vmul.f32 %v849, %v849
            %v1571 = vmul.f32 %v852, %v852
            %v1572 = vsub.f32 %v1374, %v1522
            %v1573 = vsub.f32 %v1377, %v1523
            %v1574 = vsub.f32 %v1380, %v1524
            %v1575 = vsub.f32 %v1383, %v1525
            %v1576 = vsub.f32 %v1386, %v1526
            %v1577 = vsub.f32 %v1389, %v1527
            %v1578 = vsub.f32 %v1392, %v1528
            %v1579 = vsub.f32 %v1395, %v1529
            %v1580 = vsub.f32 %v1398, %v1530
            %v1581 = vsub.f32 %v1401, %v1531
            %v1582 = vsub.f32 %v1404, %v1532
            %v1583 = vsub.f32 %v1407, %v1533
            %v1584 = vsub.f32 %v1410, %v1534
            %v1585 = vsub.f32 %v1413, %v1535
            %v1586 = vsub.f32 %v1416, %v1536
            %v1587 = vsub.f32 %v1419, %v1537
            %v1588 = vsub.f32 %v1422, %v1538
            %v1589 = vsub.f32 %v1425, %v1539
            %v1590 = vsub.f32 %v1428, %v1540
            %v1591 = vsub.f32 %v1431, %v1541
            %v1592 = vsub.f32 %v1434, %v1542
            %v1593 = vsub.f32 %v1437, %v1543
            %v1594 = vsub.f32 %v1440, %v1544
            %v1595 = vsub.f32 %v1443, %v1545
            %v1596 = vsub.f32 %v1446, %v1546
            %v1597 = vsub.f32 %v1449, %v1547
            %v1598 = vsub.f32 %v1452, %v1548
            %v1599 = vsub.f32 %v1455, %v1549
            %v1600 = vsub.f32 %v1458, %v1550
            %v1601 = vsub.f32 %v1461, %v1551
            %v1602 = vsub.f32 %v1464, %v1552
            %v1603 = vsub.f32 %v1467, %v1553
            %v1604 = vsub.f32 %v1470, %v1554
            %v1605 = vsub.f32 %v1473, %v1555
            %v1606 = vsub.f32 %v1476, %v1556
            %v1607 = vsub.f32 %v1479, %v1557
            %v1608 = vsub.f32 %v1482, %v1558
            %v1609 = vsub.f32 %v1485, %v1559
            %v1610 = vsub.f32 %v1488, %v1560
            %v1611 = vsub.f32 %v1491, %v1561
            %v1612 = vsub.f32 %v1494, %v1562
            %v1613 = vsub.f32 %v1497, %v1563
            %v1614 = vsub.f32 %v1500, %v1564
            %v1615 = vsub.f32 %v1503, %v1565
            %v1616 = vsub.f32 %v1506, %v1566
            %v1617 = vsub.f32 %v1509, %v1567
            %v1618 = vsub.f32 %v1512, %v1568
            %v1619 = vsub.f32 %v1515, %v1569
            %v1620 = vsub.f32 %v1518, %v1570
            %v1621 = vsub.f32 %v1521, %v1571
            %v1622 = vmax.f32 %v1572, 0.0
            %v1623 = vmax.f32 %v1573, 0.0
            %v1624 = vmax.f32 %v1574, 0.0
            %v1625 = vmax.f32 %v1575, 0.0
            %v1626 = vmax.f32 %v1576, 0.0
            %v1627 = vmax.f32 %v1577, 0.0
            %v1628 = vmax.f32 %v1578, 0.0
            %v1629 = vmax.f32 %v1579, 0.0
            %v1630 = vmax.f32 %v1580, 0.0
            %v1631 = vmax.f32 %v1581, 0.0
            %v1632 = vmax.f32 %v1582, 0.0
            %v1633 = vmax.f32 %v1583, 0.0
            %v1634 = vmax.f32 %v1584, 0.0
            %v1635 = vmax.f32 %v1585, 0.0
            %v1636 = vmax.f32 %v1586, 0.0
            %v1637 = vmax.f32 %v1587, 0.0
            %v1638 = vmax.f32 %v1588, 0.0
            %v1639 = vmax.f32 %v1589, 0.0
            %v1640 = vmax.f32 %v1590, 0.0
            %v1641 = vmax.f32 %v1591, 0.0
            %v1642 = vmax.f32 %v1592, 0.0
            %v1643 = vmax.f32 %v1593, 0.0
            %v1644 = vmax.f32 %v1594, 0.0
            %v1645 = vmax.f32 %v1595, 0.0
            %v1646 = vmax.f32 %v1596, 0.0
            %v1647 = vmax.f32 %v1597, 0.0
            %v1648 = vmax.f32 %v1598, 0.0
            %v1649 = vmax.f32 %v1599, 0.0
            %v1650 = vmax.f32 %v1600, 0.0
            %v1651 = vmax.f32 %v1601, 0.0
            %v1652 = vmax.f32 %v1602, 0.0
            %v1653 = vmax.f32 %v1603, 0.0
            %v1654 = vmax.f32 %v1604, 0.0
            %v1655 = vmax.f32 %v1605, 0.0
            %v1656 = vmax.f32 %v1606, 0.0
            %v1657 = vmax.f32 %v1607, 0.0
            %v1658 = vmax.f32 %v1608, 0.0
            %v1659 = vmax.f32 %v1609, 0.0
            %v1660 = vmax.f32 %v1610, 0.0
            %v1661 = vmax.f32 %v1611, 0.0
            %v1662 = vmax.f32 %v1612, 0.0
            %v1663 = vmax.f32 %v1613, 0.0
            %v1664 = vmax.f32 %v1614, 0.0
            %v1665 = vmax.f32 %v1615, 0.0
            %v1666 = vmax.f32 %v1616, 0.0
            %v1667 = vmax.f32 %v1617, 0.0
            %v1668 = vmax.f32 %v1618, 0.0
            %v1669 = vmax.f32 %v1619, 0.0
            %v1670 = vmax.f32 %v1620, 0.0
            %v1671 = vmax.f32 %v1621, 0.0
            %v1672 = vld [vmem:[%s5 + $0x1b0] sm:$0xff]
            %v1673 = vld [vmem:[%s5 + $0x1b8] sm:$0xff]
            %v1674 = vld [vmem:[%s5 + $0x1c0] sm:$0xff]
            %v1675 = vld [vmem:[%s5 + $0x1c8] sm:$0xff]
            %v1676 = vld [vmem:[%s5 + $0x1d0] sm:$0xff]
            %v1677 = vld [vmem:[%s5 + $0x1d8] sm:$0xff]
            %v1678 = vld [vmem:[%s5 + $0x1e0] sm:$0xff]
            %v1679 = vld [vmem:[%s5 + $0x1e8] sm:$0xff]
            %v1680 = vld [vmem:[%s5 + $0x1f0] sm:$0xff]
            %v1681 = vld [vmem:[%s5 + $0x1f8] sm:$0xff]
            %v1682 = vld [vmem:[%s5 + $0x200] sm:$0xff]
            %v1683 = vld [vmem:[%s5 + $0x208] sm:$0xff]
            %v1684 = vld [vmem:[%s5 + $0x210] sm:$0xff]
            %v1685 = vld [vmem:[%s5 + $0x218] sm:$0xff]
            %v1686 = vld [vmem:[%s5 + $0x220] sm:$0xff]
            %v1687 = vld [vmem:[%s5 + $0x228] sm:$0xff]
            %v1688 = vld [vmem:[%s5 + $0x230] sm:$0xff]
            %v1689 = vld [vmem:[%s5 + $0x238] sm:$0xff]
            %v1690 = vld [vmem:[%s5 + $0x240] sm:$0xff]
            %v1691 = vld [vmem:[%s5 + $0x248] sm:$0xff]
            %v1692 = vld [vmem:[%s5 + $0x250] sm:$0xff]
            %v1693 = vld [vmem:[%s5 + $0x258] sm:$0xff]
            %v1694 = vld [vmem:[%s5 + $0x260] sm:$0xff]
            %v1695 = vld [vmem:[%s5 + $0x268] sm:$0xff]
            %v1696 = vld [vmem:[%s5 + $0x270] sm:$0xff]
            %v1697 = vld [vmem:[%s5 + $0x278] sm:$0xff]
            %v1698 = vld [vmem:[%s5 + $0x280] sm:$0xff]
            %v1699 = vld [vmem:[%s5 + $0x288] sm:$0xff]
            %v1700 = vld [vmem:[%s5 + $0x290] sm:$0xff]
            %v1701 = vld [vmem:[%s5 + $0x298] sm:$0xff]
            %v1702 = vld [vmem:[%s5 + $0x2a0] sm:$0xff]
            %v1703 = vld [vmem:[%s5 + $0x2a8] sm:$0xff]
            %v1704 = vld [vmem:[%s5 + $0x2b0] sm:$0xff]
            %v1705 = vld [vmem:[%s5 + $0x2b8] sm:$0xff]
            %v1706 = vld [vmem:[%s5 + $0x2c0] sm:$0xff]
            %v1707 = vld [vmem:[%s5 + $0x2c8] sm:$0xff]
            %v1708 = vld [vmem:[%s5 + $0x2d0] sm:$0xff]
            %v1709 = vld [vmem:[%s5 + $0x2d8] sm:$0xff]
            %v1710 = vld [vmem:[%s5 + $0x2e0] sm:$0xff]
            %v1711 = vld [vmem:[%s5 + $0x2e8] sm:$0xff]
            %v1712 = vld [vmem:[%s5 + $0x2f0] sm:$0xff]
            %v1713 = vld [vmem:[%s5 + $0x2f8] sm:$0xff]
            %v1714 = vld [vmem:[%s5 + $0x300] sm:$0xff]
            %v1715 = vld [vmem:[%s5 + $0x308] sm:$0xff]
            %v1716 = vld [vmem:[%s5 + $0x310] sm:$0xff]
            %v1717 = vld [vmem:[%s5 + $0x318] sm:$0xff]
            %v1718 = vld [vmem:[%s5 + $0x320] sm:$0xff]
            %v1719 = vld [vmem:[%s5 + $0x328] sm:$0xff]
            %v1720 = vld [vmem:[%s5 + $0x330] sm:$0xff]
            %v1721 = vld [vmem:[%s5 + $0x338] sm:$0xff]
            %v1722 = vadd.f32 %v1622, 1e-05
            %v1723 = vadd.f32 %v1623, 1e-05
            %v1724 = vadd.f32 %v1624, 1e-05
            %v1725 = vadd.f32 %v1625, 1e-05
            %v1726 = vadd.f32 %v1626, 1e-05
            %v1727 = vadd.f32 %v1627, 1e-05
            %v1728 = vadd.f32 %v1628, 1e-05
            %v1729 = vadd.f32 %v1629, 1e-05
            %v1730 = vadd.f32 %v1630, 1e-05
            %v1731 = vadd.f32 %v1631, 1e-05
            %v1732 = vadd.f32 %v1632, 1e-05
            %v1733 = vadd.f32 %v1633, 1e-05
            %v1734 = vadd.f32 %v1634, 1e-05
            %v1735 = vadd.f32 %v1635, 1e-05
            %v1736 = vadd.f32 %v1636, 1e-05
            %v1737 = vadd.f32 %v1637, 1e-05
            %v1738 = vadd.f32 %v1638, 1e-05
            %v1739 = vadd.f32 %v1639, 1e-05
            %v1740 = vadd.f32 %v1640, 1e-05
            %v1741 = vadd.f32 %v1641, 1e-05
            %v1742 = vadd.f32 %v1642, 1e-05
            %v1743 = vadd.f32 %v1643, 1e-05
            %v1744 = vadd.f32 %v1644, 1e-05
            %v1745 = vadd.f32 %v1645, 1e-05
            %v1746 = vadd.f32 %v1646, 1e-05
            %v1747 = vadd.f32 %v1647, 1e-05
            %v1748 = vadd.f32 %v1648, 1e-05
            %v1749 = vadd.f32 %v1649, 1e-05
            %v1750 = vadd.f32 %v1650, 1e-05
            %v1751 = vadd.f32 %v1651, 1e-05
            %v1752 = vadd.f32 %v1652, 1e-05
            %v1753 = vadd.f32 %v1653, 1e-05
            %v1754 = vadd.f32 %v1654, 1e-05
            %v1755 = vadd.f32 %v1655, 1e-05
            %v1756 = vadd.f32 %v1656, 1e-05
            %v1757 = vadd.f32 %v1657, 1e-05
            %v1758 = vadd.f32 %v1658, 1e-05
            %v1759 = vadd.f32 %v1659, 1e-05
            %v1760 = vadd.f32 %v1660, 1e-05
            %v1761 = vadd.f32 %v1661, 1e-05
            %v1762 = vadd.f32 %v1662, 1e-05
            %v1763 = vadd.f32 %v1663, 1e-05
            %v1764 = vadd.f32 %v1664, 1e-05
            %v1765 = vadd.f32 %v1665, 1e-05
            %v1766 = vadd.f32 %v1666, 1e-05
            %v1767 = vadd.f32 %v1667, 1e-05
            %v1768 = vadd.f32 %v1668, 1e-05
            %v1769 = vadd.f32 %v1669, 1e-05
            %v1770 = vadd.f32 %v1670, 1e-05
            %v1771 = vadd.f32 %v1671, 1e-05
            %v1772 = vrsqrt.pop %v1722
            %v1773 = vrsqrt.pop %v1723
            %v1774 = vrsqrt.pop %v1724
            %v1775 = vrsqrt.pop %v1725
            %v1776 = vrsqrt.pop %v1726
            %v1777 = vrsqrt.pop %v1727
            %v1778 = vrsqrt.pop %v1728
            %v1779 = vrsqrt.pop %v1729
            %v1780 = vrsqrt.pop %v1730
            %v1781 = vrsqrt.pop %v1731
            %v1782 = vrsqrt.pop %v1732
            %v1783 = vrsqrt.pop %v1733
            %v1784 = vrsqrt.pop %v1734
            %v1785 = vrsqrt.pop %v1735
            %v1786 = vrsqrt.pop %v1736
            %v1787 = vrsqrt.pop %v1737
            %v1788 = vrsqrt.pop %v1738
            %v1789 = vrsqrt.pop %v1739
            %v1790 = vrsqrt.pop %v1740
            %v1791 = vrsqrt.pop %v1741
            %v1792 = vrsqrt.pop %v1742
            %v1793 = vrsqrt.pop %v1743
            %v1794 = vrsqrt.pop %v1744
            %v1795 = vrsqrt.pop %v1745
            %v1796 = vrsqrt.pop %v1746
            %v1797 = vrsqrt.pop %v1747
            %v1798 = vrsqrt.pop %v1748
            %v1799 = vrsqrt.pop %v1749
            %v1800 = vrsqrt.pop %v1750
            %v1801 = vrsqrt.pop %v1751
            %v1802 = vrsqrt.pop %v1752
            %v1803 = vrsqrt.pop %v1753
            %v1804 = vrsqrt.pop %v1754
            %v1805 = vrsqrt.pop %v1755
            %v1806 = vrsqrt.pop %v1756
            %v1807 = vrsqrt.pop %v1757
            %v1808 = vrsqrt.pop %v1758
            %v1809 = vrsqrt.pop %v1759
            %v1810 = vrsqrt.pop %v1760
            %v1811 = vrsqrt.pop %v1761
            %v1812 = vrsqrt.pop %v1762
            %v1813 = vrsqrt.pop %v1763
            %v1814 = vrsqrt.pop %v1764
            %v1815 = vrsqrt.pop %v1765
            %v1816 = vrsqrt.pop %v1766
            %v1817 = vrsqrt.pop %v1767
            %v1818 = vrsqrt.pop %v1768
            %v1819 = vrsqrt.pop %v1769
            %v1820 = vrsqrt.pop %v1770
            %v1821 = vrsqrt.pop %v1771
            %v1822 = vmul.f32 %v1672, %v1772
            %v1823 = vmul.f32 %v1673, %v1773
            %v1824 = vmul.f32 %v1674, %v1774
            %v1825 = vmul.f32 %v1675, %v1775
            %v1826 = vmul.f32 %v1676, %v1776
            %v1827 = vmul.f32 %v1677, %v1777
            %v1828 = vmul.f32 %v1678, %v1778
            %v1829 = vmul.f32 %v1679, %v1779
            %v1830 = vmul.f32 %v1680, %v1780
            %v1831 = vmul.f32 %v1681, %v1781
            %v1832 = vmul.f32 %v1682, %v1782
            %v1833 = vmul.f32 %v1683, %v1783
            %v1834 = vmul.f32 %v1684, %v1784
            %v1835 = vmul.f32 %v1685, %v1785
            %v1836 = vmul.f32 %v1686, %v1786
            %v1837 = vmul.f32 %v1687, %v1787
            %v1838 = vmul.f32 %v1688, %v1788
            %v1839 = vmul.f32 %v1689, %v1789
            %v1840 = vmul.f32 %v1690, %v1790
            %v1841 = vmul.f32 %v1691, %v1791
            %v1842 = vmul.f32 %v1692, %v1792
            %v1843 = vmul.f32 %v1693, %v1793
            %v1844 = vmul.f32 %v1694, %v1794
            %v1845 = vmul.f32 %v1695, %v1795
            %v1846 = vmul.f32 %v1696, %v1796
            %v1847 = vmul.f32 %v1697, %v1797
            %v1848 = vmul.f32 %v1698, %v1798
            %v1849 = vmul.f32 %v1699, %v1799
            %v1850 = vmul.f32 %v1700, %v1800
            %v1851 = vmul.f32 %v1701, %v1801
            %v1852 = vmul.f32 %v1702, %v1802
            %v1853 = vmul.f32 %v1703, %v1803
            %v1854 = vmul.f32 %v1704, %v1804
            %v1855 = vmul.f32 %v1705, %v1805
            %v1856 = vmul.f32 %v1706, %v1806
            %v1857 = vmul.f32 %v1707, %v1807
            %v1858 = vmul.f32 %v1708, %v1808
            %v1859 = vmul.f32 %v1709, %v1809
            %v1860 = vmul.f32 %v1710, %v1810
            %v1861 = vmul.f32 %v1711, %v1811
            %v1862 = vmul.f32 %v1712, %v1812
            %v1863 = vmul.f32 %v1713, %v1813
            %v1864 = vmul.f32 %v1714, %v1814
            %v1865 = vmul.f32 %v1715, %v1815
            %v1866 = vmul.f32 %v1716, %v1816
            %v1867 = vmul.f32 %v1717, %v1817
            %v1868 = vmul.f32 %v1718, %v1818
            %v1869 = vmul.f32 %v1719, %v1819
            %v1870 = vmul.f32 %v1720, %v1820
            %v1871 = vmul.f32 %v1721, %v1821
            %1872 = vst.msk [vmem:[#allocation2] sm:$0xff] %vm328, %v452
            %1873 = vst.msk [vmem:[#allocation2 + $0x8] sm:$0xff] %vm328, %v453
            %1874 = vst.msk [vmem:[#allocation5] sm:$0xff] %vm328, %v1822
            %1875 = vst.msk [vmem:[#allocation5 + $0x8] sm:$0xff] %vm328, %v1823
            %1876 = vst.msk [vmem:[#allocation5 + $0x10] sm:$0xff] %vm328, %v1824
            %1877 = vst.msk [vmem:[#allocation5 + $0x18] sm:$0xff] %vm328, %v1825
            %1878 = vst.msk [vmem:[#allocation5 + $0x20] sm:$0xff] %vm328, %v1826
            %1879 = vst.msk [vmem:[#allocation5 + $0x28] sm:$0xff] %vm328, %v1827
            %1880 = vst.msk [vmem:[#allocation5 + $0x30] sm:$0xff] %vm328, %v1828
            %1881 = vst.msk [vmem:[#allocation5 + $0x38] sm:$0xff] %vm328, %v1829
            %1882 = vst.msk [vmem:[#allocation5 + $0x40] sm:$0xff] %vm328, %v1830
            %1883 = vst.msk [vmem:[#allocation5 + $0x48] sm:$0xff] %vm328, %v1831
            %1884 = vst.msk [vmem:[#allocation5 + $0x50] sm:$0xff] %vm328, %v1832
            %1885 = vst.msk [vmem:[#allocation5 + $0x58] sm:$0xff] %vm328, %v1833
            %1886 = vst.msk [vmem:[#allocation5 + $0x60] sm:$0xff] %vm328, %v1834
            %1887 = vst.msk [vmem:[#allocation5 + $0x68] sm:$0xff] %vm328, %v1835
            %1888 = vst.msk [vmem:[#allocation5 + $0x70] sm:$0xff] %vm328, %v1836
            %1889 = vst.msk [vmem:[#allocation5 + $0x78] sm:$0xff] %vm328, %v1837
            %1890 = vst.msk [vmem:[#allocation5 + $0x80] sm:$0xff] %vm328, %v1838
            %1891 = vst.msk [vmem:[#allocation5 + $0x88] sm:$0xff] %vm328, %v1839
            %1892 = vst.msk [vmem:[#allocation5 + $0x90] sm:$0xff] %vm328, %v1840
            %1893 = vst.msk [vmem:[#allocation5 + $0x98] sm:$0xff] %vm328, %v1841
            %1894 = vst.msk [vmem:[#allocation5 + $0xa0] sm:$0xff] %vm328, %v1842
            %1895 = vst.msk [vmem:[#allocation5 + $0xa8] sm:$0xff] %vm328, %v1843
            %1896 = vst.msk [vmem:[#allocation5 + $0xb0] sm:$0xff] %vm328, %v1844
            %1897 = vst.msk [vmem:[#allocation5 + $0xb8] sm:$0xff] %vm328, %v1845
            %1898 = vst.msk [vmem:[#allocation5 + $0xc0] sm:$0xff] %vm328, %v1846
            %1899 = vst.msk [vmem:[#allocation5 + $0xc8] sm:$0xff] %vm328, %v1847
            %1900 = vst.msk [vmem:[#allocation5 + $0xd0] sm:$0xff] %vm328, %v1848
            %1901 = vst.msk [vmem:[#allocation5 + $0xd8] sm:$0xff] %vm328, %v1849
            %1902 = vst.msk [vmem:[#allocation5 + $0xe0] sm:$0xff] %vm328, %v1850
            %1903 = vst.msk [vmem:[#allocation5 + $0xe8] sm:$0xff] %vm328, %v1851
            %1904 = vst.msk [vmem:[#allocation5 + $0xf0] sm:$0xff] %vm328, %v1852
            %1905 = vst.msk [vmem:[#allocation5 + $0xf8] sm:$0xff] %vm328, %v1853
            %1906 = vst.msk [vmem:[#allocation5 + $0x100] sm:$0xff] %vm328, %v1854
            %1907 = vst.msk [vmem:[#allocation5 + $0x108] sm:$0xff] %vm328, %v1855
            %1908 = vst.msk [vmem:[#allocation5 + $0x110] sm:$0xff] %vm328, %v1856
            %1909 = vst.msk [vmem:[#allocation5 + $0x118] sm:$0xff] %vm328, %v1857
            %1910 = vst.msk [vmem:[#allocation5 + $0x120] sm:$0xff] %vm328, %v1858
            %1911 = vst.msk [vmem:[#allocation5 + $0x128] sm:$0xff] %vm328, %v1859
            %1912 = vst.msk [vmem:[#allocation5 + $0x130] sm:$0xff] %vm328, %v1860
            %1913 = vst.msk [vmem:[#allocation5 + $0x138] sm:$0xff] %vm328, %v1861
            %1914 = vst.msk [vmem:[#allocation5 + $0x140] sm:$0xff] %vm328, %v1862
            %1915 = vst.msk [vmem:[#allocation5 + $0x148] sm:$0xff] %vm328, %v1863
            %1916 = vst.msk [vmem:[#allocation5 + $0x150] sm:$0xff] %vm328, %v1864
            %1917 = vst.msk [vmem:[#allocation5 + $0x158] sm:$0xff] %vm328, %v1865
            %1918 = vst.msk [vmem:[#allocation5 + $0x160] sm:$0xff] %vm328, %v1866
            %1919 = vst.msk [vmem:[#allocation5 + $0x168] sm:$0xff] %vm328, %v1867
            %1920 = vst.msk [vmem:[#allocation5 + $0x170] sm:$0xff] %vm328, %v1868
            %1921 = vst.msk [vmem:[#allocation5 + $0x178] sm:$0xff] %vm328, %v1869
            %1922 = vst.msk [vmem:[#allocation5 + $0x180] sm:$0xff] %vm328, %v1870
            %1923 = vst.msk [vmem:[#allocation5 + $0x188] sm:$0xff] %vm328, %v1871
            %v1924 = vld [vmem:[%s5 + $0x340] sm:$0xff]
            %v1925 = vld [vmem:[%s5 + $0x348] sm:$0xff]
            %v1926 = vld [vmem:[%s5 + $0x350] sm:$0xff]
            %v1927 = vld [vmem:[%s5 + $0x358] sm:$0xff]
            %v1928 = vld [vmem:[%s5 + $0x360] sm:$0xff]
            %v1929 = vld [vmem:[%s5 + $0x368] sm:$0xff]
            %v1930 = vld [vmem:[%s5 + $0x370] sm:$0xff]
            %v1931 = vld [vmem:[%s5 + $0x378] sm:$0xff]
            %v1932 = vld [vmem:[%s5 + $0x380] sm:$0xff]
            %v1933 = vld [vmem:[%s5 + $0x388] sm:$0xff]
            %v1934 = vld [vmem:[%s5 + $0x390] sm:$0xff]
            %v1935 = vld [vmem:[%s5 + $0x398] sm:$0xff]
            %v1936 = vld [vmem:[%s5 + $0x3a0] sm:$0xff]
            %v1937 = vld [vmem:[%s5 + $0x3a8] sm:$0xff]
            %v1938 = vld [vmem:[%s5 + $0x3b0] sm:$0xff]
            %v1939 = vld [vmem:[%s5 + $0x3b8] sm:$0xff]
            %v1940 = vld [vmem:[%s5 + $0x3c0] sm:$0xff]
            %v1941 = vld [vmem:[%s5 + $0x3c8] sm:$0xff]
            %v1942 = vld [vmem:[%s5 + $0x3d0] sm:$0xff]
            %v1943 = vld [vmem:[%s5 + $0x3d8] sm:$0xff]
            %v1944 = vld [vmem:[%s5 + $0x3e0] sm:$0xff]
            %v1945 = vld [vmem:[%s5 + $0x3e8] sm:$0xff]
            %v1946 = vld [vmem:[%s5 + $0x3f0] sm:$0xff]
            %v1947 = vld [vmem:[%s5 + $0x3f8] sm:$0xff]
            %v1948 = vld [vmem:[%s5 + $0x400] sm:$0xff]
            %v1949 = vld [vmem:[%s5 + $0x408] sm:$0xff]
            %v1950 = vld [vmem:[%s5 + $0x410] sm:$0xff]
            %v1951 = vld [vmem:[%s5 + $0x418] sm:$0xff]
            %v1952 = vld [vmem:[%s5 + $0x420] sm:$0xff]
            %v1953 = vld [vmem:[%s5 + $0x428] sm:$0xff]
            %v1954 = vld [vmem:[%s5 + $0x430] sm:$0xff]
            %v1955 = vld [vmem:[%s5 + $0x438] sm:$0xff]
            %v1956 = vld [vmem:[%s5 + $0x440] sm:$0xff]
            %v1957 = vld [vmem:[%s5 + $0x448] sm:$0xff]
            %v1958 = vld [vmem:[%s5 + $0x450] sm:$0xff]
            %v1959 = vld [vmem:[%s5 + $0x458] sm:$0xff]
            %v1960 = vld [vmem:[%s5 + $0x460] sm:$0xff]
            %v1961 = vld [vmem:[%s5 + $0x468] sm:$0xff]
            %v1962 = vld [vmem:[%s5 + $0x470] sm:$0xff]
            %v1963 = vld [vmem:[%s5 + $0x478] sm:$0xff]
            %v1964 = vld [vmem:[%s5 + $0x480] sm:$0xff]
            %v1965 = vld [vmem:[%s5 + $0x488] sm:$0xff]
            %v1966 = vld [vmem:[%s5 + $0x490] sm:$0xff]
            %v1967 = vld [vmem:[%s5 + $0x498] sm:$0xff]
            %v1968 = vld [vmem:[%s5 + $0x4a0] sm:$0xff]
            %v1969 = vld [vmem:[%s5 + $0x4a8] sm:$0xff]
            %v1970 = vld [vmem:[%s5 + $0x4b0] sm:$0xff]
            %v1971 = vld [vmem:[%s5 + $0x4b8] sm:$0xff]
            %v1972 = vld [vmem:[%s5 + $0x4c0] sm:$0xff]
            %v1973 = vld [vmem:[%s5 + $0x4c8] sm:$0xff]
            %v1974 = vmul.f32 %v705, %v1822
            %v1975 = vmul.f32 %v708, %v1823
            %v1976 = vmul.f32 %v711, %v1824
            %v1977 = vmul.f32 %v714, %v1825
            %v1978 = vmul.f32 %v717, %v1826
            %v1979 = vmul.f32 %v720, %v1827
            %v1980 = vmul.f32 %v723, %v1828
            %v1981 = vmul.f32 %v726, %v1829
            %v1982 = vmul.f32 %v729, %v1830
            %v1983 = vmul.f32 %v732, %v1831
            %v1984 = vmul.f32 %v735, %v1832
            %v1985 = vmul.f32 %v738, %v1833
            %v1986 = vmul.f32 %v741, %v1834
            %v1987 = vmul.f32 %v744, %v1835
            %v1988 = vmul.f32 %v747, %v1836
            %v1989 = vmul.f32 %v750, %v1837
            %v1990 = vmul.f32 %v753, %v1838
            %v1991 = vmul.f32 %v756, %v1839
            %v1992 = vmul.f32 %v759, %v1840
            %v1993 = vmul.f32 %v762, %v1841
            %v1994 = vmul.f32 %v765, %v1842
            %v1995 = vmul.f32 %v768, %v1843
            %v1996 = vmul.f32 %v771, %v1844
            %v1997 = vmul.f32 %v774, %v1845
            %v1998 = vmul.f32 %v777, %v1846
            %v1999 = vmul.f32 %v780, %v1847
            %v2000 = vmul.f32 %v783, %v1848
            %v2001 = vmul.f32 %v786, %v1849
            %v2002 = vmul.f32 %v789, %v1850
            %v2003 = vmul.f32 %v792, %v1851
            %v2004 = vmul.f32 %v795, %v1852
            %v2005 = vmul.f32 %v798, %v1853
            %v2006 = vmul.f32 %v801, %v1854
            %v2007 = vmul.f32 %v804, %v1855
            %v2008 = vmul.f32 %v807, %v1856
            %v2009 = vmul.f32 %v810, %v1857
            %v2010 = vmul.f32 %v813, %v1858
            %v2011 = vmul.f32 %v816, %v1859
            %v2012 = vmul.f32 %v819, %v1860
            %v2013 = vmul.f32 %v822, %v1861
            %v2014 = vmul.f32 %v825, %v1862
            %v2015 = vmul.f32 %v828, %v1863
            %v2016 = vmul.f32 %v831, %v1864
            %v2017 = vmul.f32 %v834, %v1865
            %v2018 = vmul.f32 %v837, %v1866
            %v2019 = vmul.f32 %v840, %v1867
            %v2020 = vmul.f32 %v843, %v1868
            %v2021 = vmul.f32 %v846, %v1869
            %v2022 = vmul.f32 %v849, %v1870
            %v2023 = vmul.f32 %v852, %v1871
            %v2024 = vsub.f32 %v1924, %v1974
            %v2025 = vsub.f32 %v1925, %v1975
            %v2026 = vsub.f32 %v1926, %v1976
            %v2027 = vsub.f32 %v1927, %v1977
            %v2028 = vsub.f32 %v1928, %v1978
            %v2029 = vsub.f32 %v1929, %v1979
            %v2030 = vsub.f32 %v1930, %v1980
            %v2031 = vsub.f32 %v1931, %v1981
            %v2032 = vsub.f32 %v1932, %v1982
            %v2033 = vsub.f32 %v1933, %v1983
            %v2034 = vsub.f32 %v1934, %v1984
            %v2035 = vsub.f32 %v1935, %v1985
            %v2036 = vsub.f32 %v1936, %v1986
            %v2037 = vsub.f32 %v1937, %v1987
            %v2038 = vsub.f32 %v1938, %v1988
            %v2039 = vsub.f32 %v1939, %v1989
            %v2040 = vsub.f32 %v1940, %v1990
            %v2041 = vsub.f32 %v1941, %v1991
            %v2042 = vsub.f32 %v1942, %v1992
            %v2043 = vsub.f32 %v1943, %v1993
            %v2044 = vsub.f32 %v1944, %v1994
            %v2045 = vsub.f32 %v1945, %v1995
            %v2046 = vsub.f32 %v1946, %v1996
            %v2047 = vsub.f32 %v1947, %v1997
            %v2048 = vsub.f32 %v1948, %v1998
            %v2049 = vsub.f32 %v1949, %v1999
            %v2050 = vsub.f32 %v1950, %v2000
            %v2051 = vsub.f32 %v1951, %v2001
            %v2052 = vsub.f32 %v1952, %v2002
            %v2053 = vsub.f32 %v1953, %v2003
            %v2054 = vsub.f32 %v1954, %v2004
            %v2055 = vsub.f32 %v1955, %v2005
            %v2056 = vsub.f32 %v1956, %v2006
            %v2057 = vsub.f32 %v1957, %v2007
            %v2058 = vsub.f32 %v1958, %v2008
            %v2059 = vsub.f32 %v1959, %v2009
            %v2060 = vsub.f32 %v1960, %v2010
            %v2061 = vsub.f32 %v1961, %v2011
            %v2062 = vsub.f32 %v1962, %v2012
            %v2063 = vsub.f32 %v1963, %v2013
            %v2064 = vsub.f32 %v1964, %v2014
            %v2065 = vsub.f32 %v1965, %v2015
            %v2066 = vsub.f32 %v1966, %v2016
            %v2067 = vsub.f32 %v1967, %v2017
            %v2068 = vsub.f32 %v1968, %v2018
            %v2069 = vsub.f32 %v1969, %v2019
            %v2070 = vsub.f32 %v1970, %v2020
            %v2071 = vsub.f32 %v1971, %v2021
            %v2072 = vsub.f32 %v1972, %v2022
            %v2073 = vsub.f32 %v1973, %v2023
            %2074 = vst.msk [vmem:[#allocation6] sm:$0xff] %vm328, %v2024
            %2075 = vst.msk [vmem:[#allocation6 + $0x8] sm:$0xff] %vm328, %v2025
            %2076 = vst.msk [vmem:[#allocation6 + $0x10] sm:$0xff] %vm328, %v2026
            %2077 = vst.msk [vmem:[#allocation6 + $0x18] sm:$0xff] %vm328, %v2027
            %2078 = vst.msk [vmem:[#allocation6 + $0x20] sm:$0xff] %vm328, %v2028
            %2079 = vst.msk [vmem:[#allocation6 + $0x28] sm:$0xff] %vm328, %v2029
            %2080 = vst.msk [vmem:[#allocation6 + $0x30] sm:$0xff] %vm328, %v2030
            %2081 = vst.msk [vmem:[#allocation6 + $0x38] sm:$0xff] %vm328, %v2031
            %2082 = vst.msk [vmem:[#allocation6 + $0x40] sm:$0xff] %vm328, %v2032
            %2083 = vst.msk [vmem:[#allocation6 + $0x48] sm:$0xff] %vm328, %v2033
            %2084 = vst.msk [vmem:[#allocation6 + $0x50] sm:$0xff] %vm328, %v2034
            %2085 = vst.msk [vmem:[#allocation6 + $0x58] sm:$0xff] %vm328, %v2035
            %2086 = vst.msk [vmem:[#allocation6 + $0x60] sm:$0xff] %vm328, %v2036
            %2087 = vst.msk [vmem:[#allocation6 + $0x68] sm:$0xff] %vm328, %v2037
            %2088 = vst.msk [vmem:[#allocation6 + $0x70] sm:$0xff] %vm328, %v2038
            %2089 = vst.msk [vmem:[#allocation6 + $0x78] sm:$0xff] %vm328, %v2039
            %2090 = vst.msk [vmem:[#allocation6 + $0x80] sm:$0xff] %vm328, %v2040
            %2091 = vst.msk [vmem:[#allocation6 + $0x88] sm:$0xff] %vm328, %v2041
            %2092 = vst.msk [vmem:[#allocation6 + $0x90] sm:$0xff] %vm328, %v2042
            %2093 = vst.msk [vmem:[#allocation6 + $0x98] sm:$0xff] %vm328, %v2043
            %2094 = vst.msk [vmem:[#allocation6 + $0xa0] sm:$0xff] %vm328, %v2044
            %2095 = vst.msk [vmem:[#allocation6 + $0xa8] sm:$0xff] %vm328, %v2045
            %2096 = vst.msk [vmem:[#allocation6 + $0xb0] sm:$0xff] %vm328, %v2046
            %2097 = vst.msk [vmem:[#allocation6 + $0xb8] sm:$0xff] %vm328, %v2047
            %2098 = vst.msk [vmem:[#allocation6 + $0xc0] sm:$0xff] %vm328, %v2048
            %2099 = vst.msk [vmem:[#allocation6 + $0xc8] sm:$0xff] %vm328, %v2049
            %2100 = vst.msk [vmem:[#allocation6 + $0xd0] sm:$0xff] %vm328, %v2050
            %2101 = vst.msk [vmem:[#allocation6 + $0xd8] sm:$0xff] %vm328, %v2051
            %2102 = vst.msk [vmem:[#allocation6 + $0xe0] sm:$0xff] %vm328, %v2052
            %2103 = vst.msk [vmem:[#allocation6 + $0xe8] sm:$0xff] %vm328, %v2053
            %2104 = vst.msk [vmem:[#allocation6 + $0xf0] sm:$0xff] %vm328, %v2054
            %2105 = vst.msk [vmem:[#allocation6 + $0xf8] sm:$0xff] %vm328, %v2055
            %2106 = vst.msk [vmem:[#allocation6 + $0x100] sm:$0xff] %vm328, %v2056
            %2107 = vst.msk [vmem:[#allocation6 + $0x108] sm:$0xff] %vm328, %v2057
            %2108 = vst.msk [vmem:[#allocation6 + $0x110] sm:$0xff] %vm328, %v2058
            %2109 = vst.msk [vmem:[#allocation6 + $0x118] sm:$0xff] %vm328, %v2059
            %2110 = vst.msk [vmem:[#allocation6 + $0x120] sm:$0xff] %vm328, %v2060
            %2111 = vst.msk [vmem:[#allocation6 + $0x128] sm:$0xff] %vm328, %v2061
            %2112 = vst.msk [vmem:[#allocation6 + $0x130] sm:$0xff] %vm328, %v2062
            %2113 = vst.msk [vmem:[#allocation6 + $0x138] sm:$0xff] %vm328, %v2063
            %2114 = vst.msk [vmem:[#allocation6 + $0x140] sm:$0xff] %vm328, %v2064
            %2115 = vst.msk [vmem:[#allocation6 + $0x148] sm:$0xff] %vm328, %v2065
            %2116 = vst.msk [vmem:[#allocation6 + $0x150] sm:$0xff] %vm328, %v2066
            %2117 = vst.msk [vmem:[#allocation6 + $0x158] sm:$0xff] %vm328, %v2067
            %2118 = vst.msk [vmem:[#allocation6 + $0x160] sm:$0xff] %vm328, %v2068
            %2119 = vst.msk [vmem:[#allocation6 + $0x168] sm:$0xff] %vm328, %v2069
            %2120 = vst.msk [vmem:[#allocation6 + $0x170] sm:$0xff] %vm328, %v2070
            %2121 = vst.msk [vmem:[#allocation6 + $0x178] sm:$0xff] %vm328, %v2071
            %2122 = vst.msk [vmem:[#allocation6 + $0x180] sm:$0xff] %vm328, %v2072
            %2123 = vst.msk [vmem:[#allocation6 + $0x188] sm:$0xff] %vm328, %v2073
          $region56: #{critic_bn_forward.1} parent=47 // pred_fallthru
            _
        $region48: #{critic_bn_forward.1} parent=43 // pred_fallthru
          _
        %p2124 = scmp.eq.s32.totalorder %s24, 1
        // Predicated region
        $region57: #{critic_bn_forward.1} parent=43 // pred_check
          %p2125 = pneg %p2124
        $region58: #{critic_bn_forward.1} parent=43 // pred_check_branch
          %2127 = sbr.rel (%p2125) target = $region60
        $region59: #{critic_bn_forward.1} parent=43 // pred_region
          %v2128 = vld [vmem:[%s285] sm:$0xff]
          %v2129 = vld [vmem:[%s285 + $0x8] sm:$0xff]
          %v2130 = vld [vmem:[%s285 + $0x10] sm:$0xff]
          %v2131 = vld [vmem:[%s285 + $0x18] sm:$0xff]
          %v2132 = vld [vmem:[#allocation2] sm:$0xff]
          %v2133 = vld [vmem:[#allocation2 + $0x8] sm:$0xff]
          %2135 = vset.pattern.permute.xlu0 0
          %2136 = vperm.xlu0 %2135, %v2132
          %v2137 = vpop.permute.xlu0 %2136
          %2140 = vset.pattern.permute.xlu0 0
          %2141 = vperm.xlu0 %2140, %v2133
          %v2142 = vpop.permute.xlu0 %2141
          %v2144 = vmul.f32 %v2128, %v2137
          %v2145 = vmul.f32 %v2129, %v2137
          %v2146 = vmul.f32 %v2130, %v2142
          %v2147 = vmul.f32 %v2131, %v2142
          %v2148 = vpack.c.bf16 %v2146, %v2144
          %v2149 = vpack.c.bf16 %v2147, %v2145
          %v2150 = vld [vmem:[%s2] sm:$0xf]
          %v2151 = vld [vmem:[%s2 + $0x4] sm:$0xf]
          %v2152 = vld [vmem:[%s2 + $0x8] sm:$0xf]
          %v2153 = vld [vmem:[%s2 + $0xc] sm:$0xf]
          %v2154 = vld [vmem:[%s2 + $0x10] sm:$0xf]
          %v2155 = vld [vmem:[%s2 + $0x14] sm:$0xf]
          %v2156 = vld [vmem:[%s2 + $0x18] sm:$0xf]
          %v2157 = vld [vmem:[%s2 + $0x1c] sm:$0xf]
          %v2158 = vld [vmem:[%s2 + $0x20] sm:$0xf]
          %v2159 = vld [vmem:[%s2 + $0x24] sm:$0xf]
          %v2160 = vld [vmem:[%s2 + $0x28] sm:$0xf]
          %v2161 = vld [vmem:[%s2 + $0x2c] sm:$0xf]
          %v2162 = vld [vmem:[%s2 + $0x30] sm:$0xf]
          %v2163 = vld [vmem:[%s2 + $0x34] sm:$0xf]
          %v2164 = vld [vmem:[%s2 + $0x38] sm:$0xf]
          %v2165 = vld [vmem:[%s2 + $0x3c] sm:$0xf]
          %v2166 = vld [vmem:[%s2 + $0x40] sm:$0xf]
          %v2167 = vld [vmem:[%s2 + $0x44] sm:$0xf]
          %v2168 = vld [vmem:[%s2 + $0x48] sm:$0xf]
          %v2169 = vld [vmem:[%s2 + $0x4c] sm:$0xf]
          %v2170 = vld [vmem:[%s2 + $0x50] sm:$0xf]
          %v2171 = vld [vmem:[%s2 + $0x54] sm:$0xf]
          %v2172 = vld [vmem:[%s2 + $0x58] sm:$0xf]
          %v2173 = vld [vmem:[%s2 + $0x5c] sm:$0xf]
          %v2174 = vld [vmem:[%s2 + $0x60] sm:$0xf]
          %v2175 = vld [vmem:[%s2 + $0x64] sm:$0xf]
          %v2176 = vld [vmem:[%s2 + $0x68] sm:$0xf]
          %v2177 = vld [vmem:[%s2 + $0x6c] sm:$0xf]
          %v2178 = vld [vmem:[%s2 + $0x70] sm:$0xf]
          %v2179 = vld [vmem:[%s2 + $0x74] sm:$0xf]
          %v2180 = vld [vmem:[%s2 + $0x78] sm:$0xf]
          %v2181 = vld [vmem:[%s2 + $0x7c] sm:$0xf]
          %v2182 = vld [vmem:[%s2 + $0x80] sm:$0xf]
          %v2183 = vld [vmem:[%s2 + $0x84] sm:$0xf]
          %v2184 = vld [vmem:[%s2 + $0x88] sm:$0xf]
          %v2185 = vld [vmem:[%s2 + $0x8c] sm:$0xf]
          %v2186 = vld [vmem:[%s2 + $0x90] sm:$0xf]
          %v2187 = vld [vmem:[%s2 + $0x94] sm:$0xf]
          %v2188 = vld [vmem:[%s2 + $0x98] sm:$0xf]
          %v2189 = vld [vmem:[%s2 + $0x9c] sm:$0xf]
          %v2190 = vld [vmem:[%s2 + $0xa0] sm:$0xf]
          %v2191 = vld [vmem:[%s2 + $0xa4] sm:$0xf]
          %v2192 = vld [vmem:[%s2 + $0xa8] sm:$0xf]
          %v2193 = vld [vmem:[%s2 + $0xac] sm:$0xf]
          %v2194 = vld [vmem:[%s2 + $0xb0] sm:$0xf]
          %v2195 = vld [vmem:[%s2 + $0xb4] sm:$0xf]
          %v2196 = vld [vmem:[%s2 + $0xb8] sm:$0xf]
          %v2197 = vld [vmem:[%s2 + $0xbc] sm:$0xf]
          %v2198 = vld [vmem:[%s2 + $0xc0] sm:$0xf]
          %v2199 = vld [vmem:[%s2 + $0xc4] sm:$0xf]
          %v2250 = vunpack.c.l.b16 %v2150
          %v2251 = vunpack.c.l.b16 %v2151
          %v2252 = vunpack.c.l.b16 %v2152
          %v2253 = vunpack.c.l.b16 %v2153
          %v2254 = vunpack.c.l.b16 %v2154
          %v2255 = vunpack.c.l.b16 %v2155
          %v2256 = vunpack.c.l.b16 %v2156
          %v2257 = vunpack.c.l.b16 %v2157
          %v2258 = vunpack.c.l.b16 %v2158
          %v2259 = vunpack.c.l.b16 %v2159
          %v2260 = vunpack.c.l.b16 %v2160
          %v2261 = vunpack.c.l.b16 %v2161
          %v2262 = vunpack.c.l.b16 %v2162
          %v2263 = vunpack.c.l.b16 %v2163
          %v2264 = vunpack.c.l.b16 %v2164
          %v2265 = vunpack.c.l.b16 %v2165
          %v2266 = vunpack.c.l.b16 %v2166
          %v2267 = vunpack.c.l.b16 %v2167
          %v2268 = vunpack.c.l.b16 %v2168
          %v2269 = vunpack.c.l.b16 %v2169
          %v2270 = vunpack.c.l.b16 %v2170
          %v2271 = vunpack.c.l.b16 %v2171
          %v2272 = vunpack.c.l.b16 %v2172
          %v2273 = vunpack.c.l.b16 %v2173
          %v2274 = vunpack.c.l.b16 %v2174
          %v2275 = vunpack.c.l.b16 %v2175
          %v2276 = vunpack.c.l.b16 %v2176
          %v2277 = vunpack.c.l.b16 %v2177
          %v2278 = vunpack.c.l.b16 %v2178
          %v2279 = vunpack.c.l.b16 %v2179
          %v2280 = vunpack.c.l.b16 %v2180
          %v2281 = vunpack.c.l.b16 %v2181
          %v2282 = vunpack.c.l.b16 %v2182
          %v2283 = vunpack.c.l.b16 %v2183
          %v2284 = vunpack.c.l.b16 %v2184
          %v2285 = vunpack.c.l.b16 %v2185
          %v2286 = vunpack.c.l.b16 %v2186
          %v2287 = vunpack.c.l.b16 %v2187
          %v2288 = vunpack.c.l.b16 %v2188
          %v2289 = vunpack.c.l.b16 %v2189
          %v2290 = vunpack.c.l.b16 %v2190
          %v2291 = vunpack.c.l.b16 %v2191
          %v2292 = vunpack.c.l.b16 %v2192
          %v2293 = vunpack.c.l.b16 %v2193
          %v2294 = vunpack.c.l.b16 %v2194
          %v2295 = vunpack.c.l.b16 %v2195
          %v2296 = vunpack.c.l.b16 %v2196
          %v2297 = vunpack.c.l.b16 %v2197
          %v2298 = vunpack.c.l.b16 %v2198
          %v2299 = vunpack.c.l.b16 %v2199
          %v2300 = vpack.c.b16 %v2251, %v2250
          %v2301 = vpack.c.b16 %v2253, %v2252
          %v2302 = vpack.c.b16 %v2255, %v2254
          %v2303 = vpack.c.b16 %v2257, %v2256
          %v2304 = vpack.c.b16 %v2259, %v2258
          %v2305 = vpack.c.b16 %v2261, %v2260
          %v2306 = vpack.c.b16 %v2263, %v2262
          %v2307 = vpack.c.b16 %v2265, %v2264
          %v2308 = vpack.c.b16 %v2267, %v2266
          %v2309 = vpack.c.b16 %v2269, %v2268
          %v2310 = vpack.c.b16 %v2271, %v2270
          %v2311 = vpack.c.b16 %v2273, %v2272
          %v2312 = vpack.c.b16 %v2275, %v2274
          %v2313 = vpack.c.b16 %v2277, %v2276
          %v2314 = vpack.c.b16 %v2279, %v2278
          %v2315 = vpack.c.b16 %v2281, %v2280
          %v2316 = vpack.c.b16 %v2283, %v2282
          %v2317 = vpack.c.b16 %v2285, %v2284
          %v2318 = vpack.c.b16 %v2287, %v2286
          %v2319 = vpack.c.b16 %v2289, %v2288
          %v2320 = vpack.c.b16 %v2291, %v2290
          %v2321 = vpack.c.b16 %v2293, %v2292
          %v2322 = vpack.c.b16 %v2295, %v2294
          %v2323 = vpack.c.b16 %v2297, %v2296
          %v2324 = vpack.c.b16 %v2299, %v2298
          %vm2325 = vcmask 130048
          %v2327 = vsel %vm2325, %v2300, 0
          %v2330 = vsel %vm2325, %v2301, 0
          %v2333 = vsel %vm2325, %v2302, 0
          %v2336 = vsel %vm2325, %v2303, 0
          %v2339 = vsel %vm2325, %v2304, 0
          %v2342 = vsel %vm2325, %v2305, 0
          %v2345 = vsel %vm2325, %v2306, 0
          %v2348 = vsel %vm2325, %v2307, 0
          %v2351 = vsel %vm2325, %v2308, 0
          %v2354 = vsel %vm2325, %v2309, 0
          %v2357 = vsel %vm2325, %v2310, 0
          %v2360 = vsel %vm2325, %v2311, 0
          %v2363 = vsel %vm2325, %v2312, 0
          %v2366 = vsel %vm2325, %v2313, 0
          %v2369 = vsel %vm2325, %v2314, 0
          %v2372 = vsel %vm2325, %v2315, 0
          %v2375 = vsel %vm2325, %v2316, 0
          %v2378 = vsel %vm2325, %v2317, 0
          %v2381 = vsel %vm2325, %v2318, 0
          %v2384 = vsel %vm2325, %v2319, 0
          %v2387 = vsel %vm2325, %v2320, 0
          %v2390 = vsel %vm2325, %v2321, 0
          %v2393 = vsel %vm2325, %v2322, 0
          %v2396 = vsel %vm2325, %v2323, 0
          %v2399 = vsel %vm2325, %v2324, 0
          %2401 = vmatprep.subr.bf16.mxu0 %v2149
          %2402 = vmatpush1.bf16.msra.mxu0 %v2148
          %2403 = vmatprep.subr.bf16.mxu0 0
          %2404 = vmatpush1.bf16.msra.mxu0 0
          %2405 = vmatprep.subr.bf16.mxu0 0
          %2406 = vmatpush1.bf16.msra.mxu0 0
          %2407 = vmatprep.subr.bf16.mxu0 0
          %2408 = vmatpush1.bf16.msra.mxu0 0
          %2409 = vmatprep.subr.bf16.mxu0 0
          %2410 = vmatpush1.bf16.msra.mxu0 0
          %2411 = vmatprep.subr.bf16.mxu0 0
          %2412 = vmatpush1.bf16.msra.mxu0 0
          %2413 = vmatprep.subr.bf16.mxu0 0
          %2414 = vmatpush1.bf16.msra.mxu0 0
          %2415 = vmatprep.subr.bf16.mxu0 0
          %2416 = vmatpush1.bf16.msra.mxu0 0
          %2417 = vmatprep.subr.bf16.mxu0 0
          %2418 = vmatpush1.bf16.msra.mxu0 0
          %2419 = vmatprep.subr.bf16.mxu0 0
          %2420 = vmatpush1.bf16.msra.mxu0 0
          %2421 = vmatprep.subr.bf16.mxu0 0
          %2422 = vmatpush1.bf16.msra.mxu0 0
          %2423 = vmatprep.subr.bf16.mxu0 0
          %2424 = vmatpush1.bf16.msra.mxu0 0
          %2425 = vmatprep.subr.bf16.mxu0 0
          %2426 = vmatpush1.bf16.msra.mxu0 0
          %2427 = vmatprep.subr.bf16.mxu0 0
          %2428 = vmatpush1.bf16.msra.mxu0 0
          %2429 = vmatprep.subr.bf16.mxu0 0
          %2430 = vmatpush1.bf16.msra.mxu0 0
          %2431 = vmatprep.subr.bf16.mxu0 0
          %2432 = vmatpush1.bf16.msra.mxu0 0
          %2433 = vmatprep.mubr.bf16.mxu0 0
          %2434 = vmatmul.mubr.bf16.gmra.mrb[0].mxu0 %v2327
          %v2435 = vpop.f32.mrb[0].mxu0
          %v2436 = vadd.f32 0.0, %v2435
          %v2437 = vpop.f32.mrb[0].mxu0
          %v2438 = vadd.f32 0.0, %v2437
          %v2439 = vpop.f32.mrb[0].mxu0
          %v2440 = vadd.f32 0.0, %v2439
          %v2441 = vpop.f32.mrb[0].mxu0
          %v2442 = vadd.f32 0.0, %v2441
          %2443 = vmatprep.mubr.bf16.mxu0 0
          %2444 = vmatmul.mubr.bf16.gmra.mrb[0].mxu0 %v2330
          %v2445 = vpop.f32.mrb[0].mxu0
          %v2446 = vadd.f32 0.0, %v2445
          %v2447 = vpop.f32.mrb[0].mxu0
          %v2448 = vadd.f32 0.0, %v2447
          %v2449 = vpop.f32.mrb[0].mxu0
          %v2450 = vadd.f32 0.0, %v2449
          %v2451 = vpop.f32.mrb[0].mxu0
          %v2452 = vadd.f32 0.0, %v2451
          %2453 = vmatprep.mubr.bf16.mxu0 0
          %2454 = vmatmul.mubr.bf16.gmra.mrb[0].mxu0 %v2333
          %v2455 = vpop.f32.mrb[0].mxu0
          %v2456 = vadd.f32 0.0, %v2455
          %v2457 = vpop.f32.mrb[0].mxu0
          %v2458 = vadd.f32 0.0, %v2457
          %v2459 = vpop.f32.mrb[0].mxu0
          %v2460 = vadd.f32 0.0, %v2459
          %v2461 = vpop.f32.mrb[0].mxu0
          %v2462 = vadd.f32 0.0, %v2461
          %2463 = vmatprep.mubr.bf16.mxu0 0
          %2464 = vmatmul.mubr.bf16.gmra.mrb[0].mxu0 %v2336
          %v2465 = vpop.f32.mrb[0].mxu0
          %v2466 = vadd.f32 0.0, %v2465
          %v2467 = vpop.f32.mrb[0].mxu0
          %v2468 = vadd.f32 0.0, %v2467
          %v2469 = vpop.f32.mrb[0].mxu0
          %v2470 = vadd.f32 0.0, %v2469
          %v2471 = vpop.f32.mrb[0].mxu0
          %v2472 = vadd.f32 0.0, %v2471
          %2473 = vmatprep.mubr.bf16.mxu0 0
          %2474 = vmatmul.mubr.bf16.gmra.mrb[0].mxu0 %v2339
          %v2475 = vpop.f32.mrb[0].mxu0
          %v2476 = vadd.f32 0.0, %v2475
          %v2477 = vpop.f32.mrb[0].mxu0
          %v2478 = vadd.f32 0.0, %v2477
          %v2479 = vpop.f32.mrb[0].mxu0
          %v2480 = vadd.f32 0.0, %v2479
          %v2481 = vpop.f32.mrb[0].mxu0
          %v2482 = vadd.f32 0.0, %v2481
          %2483 = vmatprep.mubr.bf16.mxu0 0
          %2484 = vmatmul.mubr.bf16.gmra.mrb[0].mxu0 %v2342
          %v2485 = vpop.f32.mrb[0].mxu0
          %v2486 = vadd.f32 0.0, %v2485
          %v2487 = vpop.f32.mrb[0].mxu0
          %v2488 = vadd.f32 0.0, %v2487
          %v2489 = vpop.f32.mrb[0].mxu0
          %v2490 = vadd.f32 0.0, %v2489
          %v2491 = vpop.f32.mrb[0].mxu0
          %v2492 = vadd.f32 0.0, %v2491
          %2493 = vmatprep.mubr.bf16.mxu0 0
          %2494 = vmatmul.mubr.bf16.gmra.mrb[0].mxu0 %v2345
          %v2495 = vpop.f32.mrb[0].mxu0
          %v2496 = vadd.f32 0.0, %v2495
          %v2497 = vpop.f32.mrb[0].mxu0
          %v2498 = vadd.f32 0.0, %v2497
          %v2499 = vpop.f32.mrb[0].mxu0
          %v2500 = vadd.f32 0.0, %v2499
          %v2501 = vpop.f32.mrb[0].mxu0
          %v2502 = vadd.f32 0.0, %v2501
          %2503 = vmatprep.mubr.bf16.mxu0 0
          %2504 = vmatmul.mubr.bf16.gmra.mrb[0].mxu0 %v2348
          %v2505 = vpop.f32.mrb[0].mxu0
          %v2506 = vadd.f32 0.0, %v2505
          %v2507 = vpop.f32.mrb[0].mxu0
          %v2508 = vadd.f32 0.0, %v2507
          %v2509 = vpop.f32.mrb[0].mxu0
          %v2510 = vadd.f32 0.0, %v2509
          %v2511 = vpop.f32.mrb[0].mxu0
          %v2512 = vadd.f32 0.0, %v2511
          %2513 = vmatprep.mubr.bf16.mxu0 0
          %2514 = vmatmul.mubr.bf16.gmra.mrb[0].mxu0 %v2351
          %v2515 = vpop.f32.mrb[0].mxu0
          %v2516 = vadd.f32 0.0, %v2515
          %v2517 = vpop.f32.mrb[0].mxu0
          %v2518 = vadd.f32 0.0, %v2517
          %v2519 = vpop.f32.mrb[0].mxu0
          %v2520 = vadd.f32 0.0, %v2519
          %v2521 = vpop.f32.mrb[0].mxu0
          %v2522 = vadd.f32 0.0, %v2521
          %2523 = vmatprep.mubr.bf16.mxu0 0
          %2524 = vmatmul.mubr.bf16.gmra.mrb[0].mxu0 %v2354
          %v2525 = vpop.f32.mrb[0].mxu0
          %v2526 = vadd.f32 0.0, %v2525
          %v2527 = vpop.f32.mrb[0].mxu0
          %v2528 = vadd.f32 0.0, %v2527
          %v2529 = vpop.f32.mrb[0].mxu0
          %v2530 = vadd.f32 0.0, %v2529
          %v2531 = vpop.f32.mrb[0].mxu0
          %v2532 = vadd.f32 0.0, %v2531
          %2533 = vmatprep.mubr.bf16.mxu0 0
          %2534 = vmatmul.mubr.bf16.gmra.mrb[0].mxu0 %v2357
          %v2535 = vpop.f32.mrb[0].mxu0
          %v2536 = vadd.f32 0.0, %v2535
          %v2537 = vpop.f32.mrb[0].mxu0
          %v2538 = vadd.f32 0.0, %v2537
          %v2539 = vpop.f32.mrb[0].mxu0
          %v2540 = vadd.f32 0.0, %v2539
          %v2541 = vpop.f32.mrb[0].mxu0
          %v2542 = vadd.f32 0.0, %v2541
          %2543 = vmatprep.mubr.bf16.mxu0 0
          %2544 = vmatmul.mubr.bf16.gmra.mrb[0].mxu0 %v2360
          %v2545 = vpop.f32.mrb[0].mxu0
          %v2546 = vadd.f32 0.0, %v2545
          %v2547 = vpop.f32.mrb[0].mxu0
          %v2548 = vadd.f32 0.0, %v2547
          %v2549 = vpop.f32.mrb[0].mxu0
          %v2550 = vadd.f32 0.0, %v2549
          %v2551 = vpop.f32.mrb[0].mxu0
          %v2552 = vadd.f32 0.0, %v2551
          %2553 = vmatprep.mubr.bf16.mxu0 0
          %2554 = vmatmul.mubr.bf16.gmra.mrb[0].mxu0 %v2363
          %v2555 = vpop.f32.mrb[0].mxu0
          %v2556 = vadd.f32 0.0, %v2555
          %v2557 = vpop.f32.mrb[0].mxu0
          %v2558 = vadd.f32 0.0, %v2557
          %v2559 = vpop.f32.mrb[0].mxu0
          %v2560 = vadd.f32 0.0, %v2559
          %v2561 = vpop.f32.mrb[0].mxu0
          %v2562 = vadd.f32 0.0, %v2561
          %2563 = vmatprep.mubr.bf16.mxu0 0
          %2564 = vmatmul.mubr.bf16.gmra.mrb[0].mxu0 %v2366
          %v2565 = vpop.f32.mrb[0].mxu0
          %v2566 = vadd.f32 0.0, %v2565
          %v2567 = vpop.f32.mrb[0].mxu0
          %v2568 = vadd.f32 0.0, %v2567
          %v2569 = vpop.f32.mrb[0].mxu0
          %v2570 = vadd.f32 0.0, %v2569
          %v2571 = vpop.f32.mrb[0].mxu0
          %v2572 = vadd.f32 0.0, %v2571
          %2573 = vmatprep.mubr.bf16.mxu0 0
          %2574 = vmatmul.mubr.bf16.gmra.mrb[0].mxu0 %v2369
          %v2575 = vpop.f32.mrb[0].mxu0
          %v2576 = vadd.f32 0.0, %v2575
          %v2577 = vpop.f32.mrb[0].mxu0
          %v2578 = vadd.f32 0.0, %v2577
          %v2579 = vpop.f32.mrb[0].mxu0
          %v2580 = vadd.f32 0.0, %v2579
          %v2581 = vpop.f32.mrb[0].mxu0
          %v2582 = vadd.f32 0.0, %v2581
          %2583 = vmatprep.mubr.bf16.mxu0 0
          %2584 = vmatmul.mubr.bf16.gmra.mrb[0].mxu0 %v2372
          %v2585 = vpop.f32.mrb[0].mxu0
          %v2586 = vadd.f32 0.0, %v2585
          %v2587 = vpop.f32.mrb[0].mxu0
          %v2588 = vadd.f32 0.0, %v2587
          %v2589 = vpop.f32.mrb[0].mxu0
          %v2590 = vadd.f32 0.0, %v2589
          %v2591 = vpop.f32.mrb[0].mxu0
          %v2592 = vadd.f32 0.0, %v2591
          %2593 = vmatprep.mubr.bf16.mxu0 0
          %2594 = vmatmul.mubr.bf16.gmra.mrb[0].mxu0 %v2375
          %v2595 = vpop.f32.mrb[0].mxu0
          %v2596 = vadd.f32 0.0, %v2595
          %v2597 = vpop.f32.mrb[0].mxu0
          %v2598 = vadd.f32 0.0, %v2597
          %v2599 = vpop.f32.mrb[0].mxu0
          %v2600 = vadd.f32 0.0, %v2599
          %v2601 = vpop.f32.mrb[0].mxu0
          %v2602 = vadd.f32 0.0, %v2601
          %2603 = vmatprep.mubr.bf16.mxu0 0
          %2604 = vmatmul.mubr.bf16.gmra.mrb[0].mxu0 %v2378
          %v2605 = vpop.f32.mrb[0].mxu0
          %v2606 = vadd.f32 0.0, %v2605
          %v2607 = vpop.f32.mrb[0].mxu0
          %v2608 = vadd.f32 0.0, %v2607
          %v2609 = vpop.f32.mrb[0].mxu0
          %v2610 = vadd.f32 0.0, %v2609
          %v2611 = vpop.f32.mrb[0].mxu0
          %v2612 = vadd.f32 0.0, %v2611
          %2613 = vmatprep.mubr.bf16.mxu0 0
          %2614 = vmatmul.mubr.bf16.gmra.mrb[0].mxu0 %v2381
          %v2615 = vpop.f32.mrb[0].mxu0
          %v2616 = vadd.f32 0.0, %v2615
          %v2617 = vpop.f32.mrb[0].mxu0
          %v2618 = vadd.f32 0.0, %v2617
          %v2619 = vpop.f32.mrb[0].mxu0
          %v2620 = vadd.f32 0.0, %v2619
          %v2621 = vpop.f32.mrb[0].mxu0
          %v2622 = vadd.f32 0.0, %v2621
          %2623 = vmatprep.mubr.bf16.mxu0 0
          %2624 = vmatmul.mubr.bf16.gmra.mrb[0].mxu0 %v2384
          %v2625 = vpop.f32.mrb[0].mxu0
          %v2626 = vadd.f32 0.0, %v2625
          %v2627 = vpop.f32.mrb[0].mxu0
          %v2628 = vadd.f32 0.0, %v2627
          %v2629 = vpop.f32.mrb[0].mxu0
          %v2630 = vadd.f32 0.0, %v2629
          %v2631 = vpop.f32.mrb[0].mxu0
          %v2632 = vadd.f32 0.0, %v2631
          %2633 = vmatprep.mubr.bf16.mxu0 0
          %2634 = vmatmul.mubr.bf16.gmra.mrb[0].mxu0 %v2387
          %v2635 = vpop.f32.mrb[0].mxu0
          %v2636 = vadd.f32 0.0, %v2635
          %v2637 = vpop.f32.mrb[0].mxu0
          %v2638 = vadd.f32 0.0, %v2637
          %v2639 = vpop.f32.mrb[0].mxu0
          %v2640 = vadd.f32 0.0, %v2639
          %v2641 = vpop.f32.mrb[0].mxu0
          %v2642 = vadd.f32 0.0, %v2641
          %2643 = vmatprep.mubr.bf16.mxu0 0
          %2644 = vmatmul.mubr.bf16.gmra.mrb[0].mxu0 %v2390
          %v2645 = vpop.f32.mrb[0].mxu0
          %v2646 = vadd.f32 0.0, %v2645
          %v2647 = vpop.f32.mrb[0].mxu0
          %v2648 = vadd.f32 0.0, %v2647
          %v2649 = vpop.f32.mrb[0].mxu0
          %v2650 = vadd.f32 0.0, %v2649
          %v2651 = vpop.f32.mrb[0].mxu0
          %v2652 = vadd.f32 0.0, %v2651
          %2653 = vmatprep.mubr.bf16.mxu0 0
          %2654 = vmatmul.mubr.bf16.gmra.mrb[0].mxu0 %v2393
          %v2655 = vpop.f32.mrb[0].mxu0
          %v2656 = vadd.f32 0.0, %v2655
          %v2657 = vpop.f32.mrb[0].mxu0
          %v2658 = vadd.f32 0.0, %v2657
          %v2659 = vpop.f32.mrb[0].mxu0
          %v2660 = vadd.f32 0.0, %v2659
          %v2661 = vpop.f32.mrb[0].mxu0
          %v2662 = vadd.f32 0.0, %v2661
          %2663 = vmatprep.mubr.bf16.mxu0 0
          %2664 = vmatmul.mubr.bf16.gmra.mrb[0].mxu0 %v2396
          %v2665 = vpop.f32.mrb[0].mxu0
          %v2666 = vadd.f32 0.0, %v2665
          %v2667 = vpop.f32.mrb[0].mxu0
          %v2668 = vadd.f32 0.0, %v2667
          %v2669 = vpop.f32.mrb[0].mxu0
          %v2670 = vadd.f32 0.0, %v2669
          %v2671 = vpop.f32.mrb[0].mxu0
          %v2672 = vadd.f32 0.0, %v2671
          %2673 = vmatprep.mubr.bf16.mxu0 0
          %2674 = vmatmul.mubr.bf16.gmra.mrb[0].mxu0 %v2399
          %v2675 = vpop.f32.mrb[0].mxu0
          %v2676 = vadd.f32 0.0, %v2675
          %v2677 = vpop.f32.mrb[0].mxu0
          %v2678 = vadd.f32 0.0, %v2677
          %v2679 = vpop.f32.mrb[0].mxu0
          %v2680 = vadd.f32 0.0, %v2679
          %v2681 = vpop.f32.mrb[0].mxu0
          %v2682 = vadd.f32 0.0, %v2681
          %2683 = vdwg.mxu0
          %v2684 = vld [vmem:[#allocation5] sm:$0xff]
          %v2685 = vld [vmem:[#allocation5 + $0x8] sm:$0xff]
          %v2686 = vld [vmem:[#allocation5 + $0x10] sm:$0xff]
          %v2687 = vld [vmem:[#allocation5 + $0x18] sm:$0xff]
          %v2688 = vld [vmem:[#allocation5 + $0x20] sm:$0xff]
          %v2689 = vld [vmem:[#allocation5 + $0x28] sm:$0xff]
          %v2690 = vld [vmem:[#allocation5 + $0x30] sm:$0xff]
          %v2691 = vld [vmem:[#allocation5 + $0x38] sm:$0xff]
          %v2692 = vld [vmem:[#allocation5 + $0x40] sm:$0xff]
          %v2693 = vld [vmem:[#allocation5 + $0x48] sm:$0xff]
          %v2694 = vld [vmem:[#allocation5 + $0x50] sm:$0xff]
          %v2695 = vld [vmem:[#allocation5 + $0x58] sm:$0xff]
          %v2696 = vld [vmem:[#allocation5 + $0x60] sm:$0xff]
          %v2697 = vld [vmem:[#allocation5 + $0x68] sm:$0xff]
          %v2698 = vld [vmem:[#allocation5 + $0x70] sm:$0xff]
          %v2699 = vld [vmem:[#allocation5 + $0x78] sm:$0xff]
          %v2700 = vld [vmem:[#allocation5 + $0x80] sm:$0xff]
          %v2701 = vld [vmem:[#allocation5 + $0x88] sm:$0xff]
          %v2702 = vld [vmem:[#allocation5 + $0x90] sm:$0xff]
          %v2703 = vld [vmem:[#allocation5 + $0x98] sm:$0xff]
          %v2704 = vld [vmem:[#allocation5 + $0xa0] sm:$0xff]
          %v2705 = vld [vmem:[#allocation5 + $0xa8] sm:$0xff]
          %v2706 = vld [vmem:[#allocation5 + $0xb0] sm:$0xff]
          %v2707 = vld [vmem:[#allocation5 + $0xb8] sm:$0xff]
          %v2708 = vld [vmem:[#allocation5 + $0xc0] sm:$0xff]
          %v2709 = vld [vmem:[#allocation5 + $0xc8] sm:$0xff]
          %v2710 = vld [vmem:[#allocation5 + $0xd0] sm:$0xff]
          %v2711 = vld [vmem:[#allocation5 + $0xd8] sm:$0xff]
          %v2712 = vld [vmem:[#allocation5 + $0xe0] sm:$0xff]
          %v2713 = vld [vmem:[#allocation5 + $0xe8] sm:$0xff]
          %v2714 = vld [vmem:[#allocation5 + $0xf0] sm:$0xff]
          %v2715 = vld [vmem:[#allocation5 + $0xf8] sm:$0xff]
          %v2716 = vld [vmem:[#allocation5 + $0x100] sm:$0xff]
          %v2717 = vld [vmem:[#allocation5 + $0x108] sm:$0xff]
          %v2718 = vld [vmem:[#allocation5 + $0x110] sm:$0xff]
          %v2719 = vld [vmem:[#allocation5 + $0x118] sm:$0xff]
          %v2720 = vld [vmem:[#allocation5 + $0x120] sm:$0xff]
          %v2721 = vld [vmem:[#allocation5 + $0x128] sm:$0xff]
          %v2722 = vld [vmem:[#allocation5 + $0x130] sm:$0xff]
          %v2723 = vld [vmem:[#allocation5 + $0x138] sm:$0xff]
          %v2724 = vld [vmem:[#allocation5 + $0x140] sm:$0xff]
          %v2725 = vld [vmem:[#allocation5 + $0x148] sm:$0xff]
          %v2726 = vld [vmem:[#allocation5 + $0x150] sm:$0xff]
          %v2727 = vld [vmem:[#allocation5 + $0x158] sm:$0xff]
          %v2728 = vld [vmem:[#allocation5 + $0x160] sm:$0xff]
          %v2729 = vld [vmem:[#allocation5 + $0x168] sm:$0xff]
          %v2730 = vld [vmem:[#allocation5 + $0x170] sm:$0xff]
          %v2731 = vld [vmem:[#allocation5 + $0x178] sm:$0xff]
          %v2732 = vld [vmem:[#allocation5 + $0x180] sm:$0xff]
          %v2733 = vld [vmem:[#allocation5 + $0x188] sm:$0xff]
          %2735 = vset.pattern.permute.xlu0 0
          %2736 = vperm.xlu0 %2735, %v2684
          %v2737 = vpop.permute.xlu0 %2736
          %2740 = vset.pattern.permute.xlu0 0
          %2741 = vperm.xlu0 %2740, %v2685
          %v2742 = vpop.permute.xlu0 %2741
          %2745 = vset.pattern.permute.xlu0 0
          %2746 = vperm.xlu0 %2745, %v2686
          %v2747 = vpop.permute.xlu0 %2746
          %2750 = vset.pattern.permute.xlu0 0
          %2751 = vperm.xlu0 %2750, %v2687
          %v2752 = vpop.permute.xlu0 %2751
          %2755 = vset.pattern.permute.xlu0 0
          %2756 = vperm.xlu0 %2755, %v2688
          %v2757 = vpop.permute.xlu0 %2756
          %2760 = vset.pattern.permute.xlu0 0
          %2761 = vperm.xlu0 %2760, %v2689
          %v2762 = vpop.permute.xlu0 %2761
          %2765 = vset.pattern.permute.xlu0 0
          %2766 = vperm.xlu0 %2765, %v2690
          %v2767 = vpop.permute.xlu0 %2766
          %2770 = vset.pattern.permute.xlu0 0
          %2771 = vperm.xlu0 %2770, %v2691
          %v2772 = vpop.permute.xlu0 %2771
          %2775 = vset.pattern.permute.xlu0 0
          %2776 = vperm.xlu0 %2775, %v2692
          %v2777 = vpop.permute.xlu0 %2776
          %2780 = vset.pattern.permute.xlu0 0
          %2781 = vperm.xlu0 %2780, %v2693
          %v2782 = vpop.permute.xlu0 %2781
          %2785 = vset.pattern.permute.xlu0 0
          %2786 = vperm.xlu0 %2785, %v2694
          %v2787 = vpop.permute.xlu0 %2786
          %2790 = vset.pattern.permute.xlu0 0
          %2791 = vperm.xlu0 %2790, %v2695
          %v2792 = vpop.permute.xlu0 %2791
          %2795 = vset.pattern.permute.xlu0 0
          %2796 = vperm.xlu0 %2795, %v2696
          %v2797 = vpop.permute.xlu0 %2796
          %2800 = vset.pattern.permute.xlu0 0
          %2801 = vperm.xlu0 %2800, %v2697
          %v2802 = vpop.permute.xlu0 %2801
          %2805 = vset.pattern.permute.xlu0 0
          %2806 = vperm.xlu0 %2805, %v2698
          %v2807 = vpop.permute.xlu0 %2806
          %2810 = vset.pattern.permute.xlu0 0
          %2811 = vperm.xlu0 %2810, %v2699
          %v2812 = vpop.permute.xlu0 %2811
          %2815 = vset.pattern.permute.xlu0 0
          %2816 = vperm.xlu0 %2815, %v2700
          %v2817 = vpop.permute.xlu0 %2816
          %2820 = vset.pattern.permute.xlu0 0
          %2821 = vperm.xlu0 %2820, %v2701
          %v2822 = vpop.permute.xlu0 %2821
          %2825 = vset.pattern.permute.xlu0 0
          %2826 = vperm.xlu0 %2825, %v2702
          %v2827 = vpop.permute.xlu0 %2826
          %2830 = vset.pattern.permute.xlu0 0
          %2831 = vperm.xlu0 %2830, %v2703
          %v2832 = vpop.permute.xlu0 %2831
          %2835 = vset.pattern.permute.xlu0 0
          %2836 = vperm.xlu0 %2835, %v2704
          %v2837 = vpop.permute.xlu0 %2836
          %2840 = vset.pattern.permute.xlu0 0
          %2841 = vperm.xlu0 %2840, %v2705
          %v2842 = vpop.permute.xlu0 %2841
          %2845 = vset.pattern.permute.xlu0 0
          %2846 = vperm.xlu0 %2845, %v2706
          %v2847 = vpop.permute.xlu0 %2846
          %2850 = vset.pattern.permute.xlu0 0
          %2851 = vperm.xlu0 %2850, %v2707
          %v2852 = vpop.permute.xlu0 %2851
          %2855 = vset.pattern.permute.xlu0 0
          %2856 = vperm.xlu0 %2855, %v2708
          %v2857 = vpop.permute.xlu0 %2856
          %2860 = vset.pattern.permute.xlu0 0
          %2861 = vperm.xlu0 %2860, %v2709
          %v2862 = vpop.permute.xlu0 %2861
          %2865 = vset.pattern.permute.xlu0 0
          %2866 = vperm.xlu0 %2865, %v2710
          %v2867 = vpop.permute.xlu0 %2866
          %2870 = vset.pattern.permute.xlu0 0
          %2871 = vperm.xlu0 %2870, %v2711
          %v2872 = vpop.permute.xlu0 %2871
          %2875 = vset.pattern.permute.xlu0 0
          %2876 = vperm.xlu0 %2875, %v2712
          %v2877 = vpop.permute.xlu0 %2876
          %2880 = vset.pattern.permute.xlu0 0
          %2881 = vperm.xlu0 %2880, %v2713
          %v2882 = vpop.permute.xlu0 %2881
          %2885 = vset.pattern.permute.xlu0 0
          %2886 = vperm.xlu0 %2885, %v2714
          %v2887 = vpop.permute.xlu0 %2886
          %2890 = vset.pattern.permute.xlu0 0
          %2891 = vperm.xlu0 %2890, %v2715
          %v2892 = vpop.permute.xlu0 %2891
          %2895 = vset.pattern.permute.xlu0 0
          %2896 = vperm.xlu0 %2895, %v2716
          %v2897 = vpop.permute.xlu0 %2896
          %2900 = vset.pattern.permute.xlu0 0
          %2901 = vperm.xlu0 %2900, %v2717
          %v2902 = vpop.permute.xlu0 %2901
          %2905 = vset.pattern.permute.xlu0 0
          %2906 = vperm.xlu0 %2905, %v2718
          %v2907 = vpop.permute.xlu0 %2906
          %2910 = vset.pattern.permute.xlu0 0
          %2911 = vperm.xlu0 %2910, %v2719
          %v2912 = vpop.permute.xlu0 %2911
          %2915 = vset.pattern.permute.xlu0 0
          %2916 = vperm.xlu0 %2915, %v2720
          %v2917 = vpop.permute.xlu0 %2916
          %2920 = vset.pattern.permute.xlu0 0
          %2921 = vperm.xlu0 %2920, %v2721
          %v2922 = vpop.permute.xlu0 %2921
          %2925 = vset.pattern.permute.xlu0 0
          %2926 = vperm.xlu0 %2925, %v2722
          %v2927 = vpop.permute.xlu0 %2926
          %2930 = vset.pattern.permute.xlu0 0
          %2931 = vperm.xlu0 %2930, %v2723
          %v2932 = vpop.permute.xlu0 %2931
          %2935 = vset.pattern.permute.xlu0 0
          %2936 = vperm.xlu0 %2935, %v2724
          %v2937 = vpop.permute.xlu0 %2936
          %2940 = vset.pattern.permute.xlu0 0
          %2941 = vperm.xlu0 %2940, %v2725
          %v2942 = vpop.permute.xlu0 %2941
          %2945 = vset.pattern.permute.xlu0 0
          %2946 = vperm.xlu0 %2945, %v2726
          %v2947 = vpop.permute.xlu0 %2946
          %2950 = vset.pattern.permute.xlu0 0
          %2951 = vperm.xlu0 %2950, %v2727
          %v2952 = vpop.permute.xlu0 %2951
          %2955 = vset.pattern.permute.xlu0 0
          %2956 = vperm.xlu0 %2955, %v2728
          %v2957 = vpop.permute.xlu0 %2956
          %2960 = vset.pattern.permute.xlu0 0
          %2961 = vperm.xlu0 %2960, %v2729
          %v2962 = vpop.permute.xlu0 %2961
          %2965 = vset.pattern.permute.xlu0 0
          %2966 = vperm.xlu0 %2965, %v2730
          %v2967 = vpop.permute.xlu0 %2966
          %2970 = vset.pattern.permute.xlu0 0
          %2971 = vperm.xlu0 %2970, %v2731
          %v2972 = vpop.permute.xlu0 %2971
          %2975 = vset.pattern.permute.xlu0 0
          %2976 = vperm.xlu0 %2975, %v2732
          %v2977 = vpop.permute.xlu0 %2976
          %2980 = vset.pattern.permute.xlu0 0
          %2981 = vperm.xlu0 %2980, %v2733
          %v2982 = vpop.permute.xlu0 %2981
          %v2984 = vmul.f32 %v2436, %v2737
          %v2985 = vmul.f32 %v2438, %v2737
          %v2986 = vmul.f32 %v2440, %v2742
          %v2987 = vmul.f32 %v2442, %v2742
          %v2988 = vmul.f32 %v2446, %v2747
          %v2989 = vmul.f32 %v2448, %v2747
          %v2990 = vmul.f32 %v2450, %v2752
          %v2991 = vmul.f32 %v2452, %v2752
          %v2992 = vmul.f32 %v2456, %v2757
          %v2993 = vmul.f32 %v2458, %v2757
          %v2994 = vmul.f32 %v2460, %v2762
          %v2995 = vmul.f32 %v2462, %v2762
          %v2996 = vmul.f32 %v2466, %v2767
          %v2997 = vmul.f32 %v2468, %v2767
          %v2998 = vmul.f32 %v2470, %v2772
          %v2999 = vmul.f32 %v2472, %v2772
          %v3000 = vmul.f32 %v2476, %v2777
          %v3001 = vmul.f32 %v2478, %v2777
          %v3002 = vmul.f32 %v2480, %v2782
          %v3003 = vmul.f32 %v2482, %v2782
          %v3004 = vmul.f32 %v2486, %v2787
          %v3005 = vmul.f32 %v2488, %v2787
          %v3006 = vmul.f32 %v2490, %v2792
          %v3007 = vmul.f32 %v2492, %v2792
          %v3008 = vmul.f32 %v2496, %v2797
          %v3009 = vmul.f32 %v2498, %v2797
          %v3010 = vmul.f32 %v2500, %v2802
          %v3011 = vmul.f32 %v2502, %v2802
          %v3012 = vmul.f32 %v2506, %v2807
          %v3013 = vmul.f32 %v2508, %v2807
          %v3014 = vmul.f32 %v2510, %v2812
          %v3015 = vmul.f32 %v2512, %v2812
          %v3016 = vmul.f32 %v2516, %v2817
          %v3017 = vmul.f32 %v2518, %v2817
          %v3018 = vmul.f32 %v2520, %v2822
          %v3019 = vmul.f32 %v2522, %v2822
          %v3020 = vmul.f32 %v2526, %v2827
          %v3021 = vmul.f32 %v2528, %v2827
          %v3022 = vmul.f32 %v2530, %v2832
          %v3023 = vmul.f32 %v2532, %v2832
          %v3024 = vmul.f32 %v2536, %v2837
          %v3025 = vmul.f32 %v2538, %v2837
          %v3026 = vmul.f32 %v2540, %v2842
          %v3027 = vmul.f32 %v2542, %v2842
          %v3028 = vmul.f32 %v2546, %v2847
          %v3029 = vmul.f32 %v2548, %v2847
          %v3030 = vmul.f32 %v2550, %v2852
          %v3031 = vmul.f32 %v2552, %v2852
          %v3032 = vmul.f32 %v2556, %v2857
          %v3033 = vmul.f32 %v2558, %v2857
          %v3034 = vmul.f32 %v2560, %v2862
          %v3035 = vmul.f32 %v2562, %v2862
          %v3036 = vmul.f32 %v2566, %v2867
          %v3037 = vmul.f32 %v2568, %v2867
          %v3038 = vmul.f32 %v2570, %v2872
          %v3039 = vmul.f32 %v2572, %v2872
          %v3040 = vmul.f32 %v2576, %v2877
          %v3041 = vmul.f32 %v2578, %v2877
          %v3042 = vmul.f32 %v2580, %v2882
          %v3043 = vmul.f32 %v2582, %v2882
          %v3044 = vmul.f32 %v2586, %v2887
          %v3045 = vmul.f32 %v2588, %v2887
          %v3046 = vmul.f32 %v2590, %v2892
          %v3047 = vmul.f32 %v2592, %v2892
          %v3048 = vmul.f32 %v2596, %v2897
          %v3049 = vmul.f32 %v2598, %v2897
          %v3050 = vmul.f32 %v2600, %v2902
          %v3051 = vmul.f32 %v2602, %v2902
          %v3052 = vmul.f32 %v2606, %v2907
          %v3053 = vmul.f32 %v2608, %v2907
          %v3054 = vmul.f32 %v2610, %v2912
          %v3055 = vmul.f32 %v2612, %v2912
          %v3056 = vmul.f32 %v2616, %v2917
          %v3057 = vmul.f32 %v2618, %v2917
          %v3058 = vmul.f32 %v2620, %v2922
          %v3059 = vmul.f32 %v2622, %v2922
          %v3060 = vmul.f32 %v2626, %v2927
          %v3061 = vmul.f32 %v2628, %v2927
          %v3062 = vmul.f32 %v2630, %v2932
          %v3063 = vmul.f32 %v2632, %v2932
          %v3064 = vmul.f32 %v2636, %v2937
          %v3065 = vmul.f32 %v2638, %v2937
          %v3066 = vmul.f32 %v2640, %v2942
          %v3067 = vmul.f32 %v2642, %v2942
          %v3068 = vmul.f32 %v2646, %v2947
          %v3069 = vmul.f32 %v2648, %v2947
          %v3070 = vmul.f32 %v2650, %v2952
          %v3071 = vmul.f32 %v2652, %v2952
          %v3072 = vmul.f32 %v2656, %v2957
          %v3073 = vmul.f32 %v2658, %v2957
          %v3074 = vmul.f32 %v2660, %v2962
          %v3075 = vmul.f32 %v2662, %v2962
          %v3076 = vmul.f32 %v2666, %v2967
          %v3077 = vmul.f32 %v2668, %v2967
          %v3078 = vmul.f32 %v2670, %v2972
          %v3079 = vmul.f32 %v2672, %v2972
          %v3080 = vmul.f32 %v2676, %v2977
          %v3081 = vmul.f32 %v2678, %v2977
          %v3082 = vmul.f32 %v2680, %v2982
          %v3083 = vmul.f32 %v2682, %v2982
          %v3084 = vld [vmem:[#allocation6] sm:$0xff]
          %v3085 = vld [vmem:[#allocation6 + $0x8] sm:$0xff]
          %v3086 = vld [vmem:[#allocation6 + $0x10] sm:$0xff]
          %v3087 = vld [vmem:[#allocation6 + $0x18] sm:$0xff]
          %v3088 = vld [vmem:[#allocation6 + $0x20] sm:$0xff]
          %v3089 = vld [vmem:[#allocation6 + $0x28] sm:$0xff]
          %v3090 = vld [vmem:[#allocation6 + $0x30] sm:$0xff]
          %v3091 = vld [vmem:[#allocation6 + $0x38] sm:$0xff]
          %v3092 = vld [vmem:[#allocation6 + $0x40] sm:$0xff]
          %v3093 = vld [vmem:[#allocation6 + $0x48] sm:$0xff]
          %v3094 = vld [vmem:[#allocation6 + $0x50] sm:$0xff]
          %v3095 = vld [vmem:[#allocation6 + $0x58] sm:$0xff]
          %v3096 = vld [vmem:[#allocation6 + $0x60] sm:$0xff]
          %v3097 = vld [vmem:[#allocation6 + $0x68] sm:$0xff]
          %v3098 = vld [vmem:[#allocation6 + $0x70] sm:$0xff]
          %v3099 = vld [vmem:[#allocation6 + $0x78] sm:$0xff]
          %v3100 = vld [vmem:[#allocation6 + $0x80] sm:$0xff]
          %v3101 = vld [vmem:[#allocation6 + $0x88] sm:$0xff]
          %v3102 = vld [vmem:[#allocation6 + $0x90] sm:$0xff]
          %v3103 = vld [vmem:[#allocation6 + $0x98] sm:$0xff]
          %v3104 = vld [vmem:[#allocation6 + $0xa0] sm:$0xff]
          %v3105 = vld [vmem:[#allocation6 + $0xa8] sm:$0xff]
          %v3106 = vld [vmem:[#allocation6 + $0xb0] sm:$0xff]
          %v3107 = vld [vmem:[#allocation6 + $0xb8] sm:$0xff]
          %v3108 = vld [vmem:[#allocation6 + $0xc0] sm:$0xff]
          %v3109 = vld [vmem:[#allocation6 + $0xc8] sm:$0xff]
          %v3110 = vld [vmem:[#allocation6 + $0xd0] sm:$0xff]
          %v3111 = vld [vmem:[#allocation6 + $0xd8] sm:$0xff]
          %v3112 = vld [vmem:[#allocation6 + $0xe0] sm:$0xff]
          %v3113 = vld [vmem:[#allocation6 + $0xe8] sm:$0xff]
          %v3114 = vld [vmem:[#allocation6 + $0xf0] sm:$0xff]
          %v3115 = vld [vmem:[#allocation6 + $0xf8] sm:$0xff]
          %v3116 = vld [vmem:[#allocation6 + $0x100] sm:$0xff]
          %v3117 = vld [vmem:[#allocation6 + $0x108] sm:$0xff]
          %v3118 = vld [vmem:[#allocation6 + $0x110] sm:$0xff]
          %v3119 = vld [vmem:[#allocation6 + $0x118] sm:$0xff]
          %v3120 = vld [vmem:[#allocation6 + $0x120] sm:$0xff]
          %v3121 = vld [vmem:[#allocation6 + $0x128] sm:$0xff]
          %v3122 = vld [vmem:[#allocation6 + $0x130] sm:$0xff]
          %v3123 = vld [vmem:[#allocation6 + $0x138] sm:$0xff]
          %v3124 = vld [vmem:[#allocation6 + $0x140] sm:$0xff]
          %v3125 = vld [vmem:[#allocation6 + $0x148] sm:$0xff]
          %v3126 = vld [vmem:[#allocation6 + $0x150] sm:$0xff]
          %v3127 = vld [vmem:[#allocation6 + $0x158] sm:$0xff]
          %v3128 = vld [vmem:[#allocation6 + $0x160] sm:$0xff]
          %v3129 = vld [vmem:[#allocation6 + $0x168] sm:$0xff]
          %v3130 = vld [vmem:[#allocation6 + $0x170] sm:$0xff]
          %v3131 = vld [vmem:[#allocation6 + $0x178] sm:$0xff]
          %v3132 = vld [vmem:[#allocation6 + $0x180] sm:$0xff]
          %v3133 = vld [vmem:[#allocation6 + $0x188] sm:$0xff]
          %3135 = vset.pattern.permute.xlu0 0
          %3136 = vperm.xlu0 %3135, %v3084
          %v3137 = vpop.permute.xlu0 %3136
          %3140 = vset.pattern.permute.xlu0 0
          %3141 = vperm.xlu0 %3140, %v3085
          %v3142 = vpop.permute.xlu0 %3141
          %3145 = vset.pattern.permute.xlu0 0
          %3146 = vperm.xlu0 %3145, %v3086
          %v3147 = vpop.permute.xlu0 %3146
          %3150 = vset.pattern.permute.xlu0 0
          %3151 = vperm.xlu0 %3150, %v3087
          %v3152 = vpop.permute.xlu0 %3151
          %3155 = vset.pattern.permute.xlu0 0
          %3156 = vperm.xlu0 %3155, %v3088
          %v3157 = vpop.permute.xlu0 %3156
          %3160 = vset.pattern.permute.xlu0 0
          %3161 = vperm.xlu0 %3160, %v3089
          %v3162 = vpop.permute.xlu0 %3161
          %3165 = vset.pattern.permute.xlu0 0
          %3166 = vperm.xlu0 %3165, %v3090
          %v3167 = vpop.permute.xlu0 %3166
          %3170 = vset.pattern.permute.xlu0 0
          %3171 = vperm.xlu0 %3170, %v3091
          %v3172 = vpop.permute.xlu0 %3171
          %3175 = vset.pattern.permute.xlu0 0
          %3176 = vperm.xlu0 %3175, %v3092
          %v3177 = vpop.permute.xlu0 %3176
          %3180 = vset.pattern.permute.xlu0 0
          %3181 = vperm.xlu0 %3180, %v3093
          %v3182 = vpop.permute.xlu0 %3181
          %3185 = vset.pattern.permute.xlu0 0
          %3186 = vperm.xlu0 %3185, %v3094
          %v3187 = vpop.permute.xlu0 %3186
          %3190 = vset.pattern.permute.xlu0 0
          %3191 = vperm.xlu0 %3190, %v3095
          %v3192 = vpop.permute.xlu0 %3191
          %3195 = vset.pattern.permute.xlu0 0
          %3196 = vperm.xlu0 %3195, %v3096
          %v3197 = vpop.permute.xlu0 %3196
          %3200 = vset.pattern.permute.xlu0 0
          %3201 = vperm.xlu0 %3200, %v3097
          %v3202 = vpop.permute.xlu0 %3201
          %3205 = vset.pattern.permute.xlu0 0
          %3206 = vperm.xlu0 %3205, %v3098
          %v3207 = vpop.permute.xlu0 %3206
          %3210 = vset.pattern.permute.xlu0 0
          %3211 = vperm.xlu0 %3210, %v3099
          %v3212 = vpop.permute.xlu0 %3211
          %3215 = vset.pattern.permute.xlu0 0
          %3216 = vperm.xlu0 %3215, %v3100
          %v3217 = vpop.permute.xlu0 %3216
          %3220 = vset.pattern.permute.xlu0 0
          %3221 = vperm.xlu0 %3220, %v3101
          %v3222 = vpop.permute.xlu0 %3221
          %3225 = vset.pattern.permute.xlu0 0
          %3226 = vperm.xlu0 %3225, %v3102
          %v3227 = vpop.permute.xlu0 %3226
          %3230 = vset.pattern.permute.xlu0 0
          %3231 = vperm.xlu0 %3230, %v3103
          %v3232 = vpop.permute.xlu0 %3231
          %3235 = vset.pattern.permute.xlu0 0
          %3236 = vperm.xlu0 %3235, %v3104
          %v3237 = vpop.permute.xlu0 %3236
          %3240 = vset.pattern.permute.xlu0 0
          %3241 = vperm.xlu0 %3240, %v3105
          %v3242 = vpop.permute.xlu0 %3241
          %3245 = vset.pattern.permute.xlu0 0
          %3246 = vperm.xlu0 %3245, %v3106
          %v3247 = vpop.permute.xlu0 %3246
          %3250 = vset.pattern.permute.xlu0 0
          %3251 = vperm.xlu0 %3250, %v3107
          %v3252 = vpop.permute.xlu0 %3251
          %3255 = vset.pattern.permute.xlu0 0
          %3256 = vperm.xlu0 %3255, %v3108
          %v3257 = vpop.permute.xlu0 %3256
          %3260 = vset.pattern.permute.xlu0 0
          %3261 = vperm.xlu0 %3260, %v3109
          %v3262 = vpop.permute.xlu0 %3261
          %3265 = vset.pattern.permute.xlu0 0
          %3266 = vperm.xlu0 %3265, %v3110
          %v3267 = vpop.permute.xlu0 %3266
          %3270 = vset.pattern.permute.xlu0 0
          %3271 = vperm.xlu0 %3270, %v3111
          %v3272 = vpop.permute.xlu0 %3271
          %3275 = vset.pattern.permute.xlu0 0
          %3276 = vperm.xlu0 %3275, %v3112
          %v3277 = vpop.permute.xlu0 %3276
          %3280 = vset.pattern.permute.xlu0 0
          %3281 = vperm.xlu0 %3280, %v3113
          %v3282 = vpop.permute.xlu0 %3281
          %3285 = vset.pattern.permute.xlu0 0
          %3286 = vperm.xlu0 %3285, %v3114
          %v3287 = vpop.permute.xlu0 %3286
          %3290 = vset.pattern.permute.xlu0 0
          %3291 = vperm.xlu0 %3290, %v3115
          %v3292 = vpop.permute.xlu0 %3291
          %3295 = vset.pattern.permute.xlu0 0
          %3296 = vperm.xlu0 %3295, %v3116
          %v3297 = vpop.permute.xlu0 %3296
          %3300 = vset.pattern.permute.xlu0 0
          %3301 = vperm.xlu0 %3300, %v3117
          %v3302 = vpop.permute.xlu0 %3301
          %3305 = vset.pattern.permute.xlu0 0
          %3306 = vperm.xlu0 %3305, %v3118
          %v3307 = vpop.permute.xlu0 %3306
          %3310 = vset.pattern.permute.xlu0 0
          %3311 = vperm.xlu0 %3310, %v3119
          %v3312 = vpop.permute.xlu0 %3311
          %3315 = vset.pattern.permute.xlu0 0
          %3316 = vperm.xlu0 %3315, %v3120
          %v3317 = vpop.permute.xlu0 %3316
          %3320 = vset.pattern.permute.xlu0 0
          %3321 = vperm.xlu0 %3320, %v3121
          %v3322 = vpop.permute.xlu0 %3321
          %3325 = vset.pattern.permute.xlu0 0
          %3326 = vperm.xlu0 %3325, %v3122
          %v3327 = vpop.permute.xlu0 %3326
          %3330 = vset.pattern.permute.xlu0 0
          %3331 = vperm.xlu0 %3330, %v3123
          %v3332 = vpop.permute.xlu0 %3331
          %3335 = vset.pattern.permute.xlu0 0
          %3336 = vperm.xlu0 %3335, %v3124
          %v3337 = vpop.permute.xlu0 %3336
          %3340 = vset.pattern.permute.xlu0 0
          %3341 = vperm.xlu0 %3340, %v3125
          %v3342 = vpop.permute.xlu0 %3341
          %3345 = vset.pattern.permute.xlu0 0
          %3346 = vperm.xlu0 %3345, %v3126
          %v3347 = vpop.permute.xlu0 %3346
          %3350 = vset.pattern.permute.xlu0 0
          %3351 = vperm.xlu0 %3350, %v3127
          %v3352 = vpop.permute.xlu0 %3351
          %3355 = vset.pattern.permute.xlu0 0
          %3356 = vperm.xlu0 %3355, %v3128
          %v3357 = vpop.permute.xlu0 %3356
          %3360 = vset.pattern.permute.xlu0 0
          %3361 = vperm.xlu0 %3360, %v3129
          %v3362 = vpop.permute.xlu0 %3361
          %3365 = vset.pattern.permute.xlu0 0
          %3366 = vperm.xlu0 %3365, %v3130
          %v3367 = vpop.permute.xlu0 %3366
          %3370 = vset.pattern.permute.xlu0 0
          %3371 = vperm.xlu0 %3370, %v3131
          %v3372 = vpop.permute.xlu0 %3371
          %3375 = vset.pattern.permute.xlu0 0
          %3376 = vperm.xlu0 %3375, %v3132
          %v3377 = vpop.permute.xlu0 %3376
          %3380 = vset.pattern.permute.xlu0 0
          %3381 = vperm.xlu0 %3380, %v3133
          %v3382 = vpop.permute.xlu0 %3381
          %v3384 = vadd.f32 %v2984, %v3137
          %v3385 = vadd.f32 %v2985, %v3137
          %v3386 = vadd.f32 %v2986, %v3142
          %v3387 = vadd.f32 %v2987, %v3142
          %v3388 = vadd.f32 %v2988, %v3147
          %v3389 = vadd.f32 %v2989, %v3147
          %v3390 = vadd.f32 %v2990, %v3152
          %v3391 = vadd.f32 %v2991, %v3152
          %v3392 = vadd.f32 %v2992, %v3157
          %v3393 = vadd.f32 %v2993, %v3157
          %v3394 = vadd.f32 %v2994, %v3162
          %v3395 = vadd.f32 %v2995, %v3162
          %v3396 = vadd.f32 %v2996, %v3167
          %v3397 = vadd.f32 %v2997, %v3167
          %v3398 = vadd.f32 %v2998, %v3172
          %v3399 = vadd.f32 %v2999, %v3172
          %v3400 = vadd.f32 %v3000, %v3177
          %v3401 = vadd.f32 %v3001, %v3177
          %v3402 = vadd.f32 %v3002, %v3182
          %v3403 = vadd.f32 %v3003, %v3182
          %v3404 = vadd.f32 %v3004, %v3187
          %v3405 = vadd.f32 %v3005, %v3187
          %v3406 = vadd.f32 %v3006, %v3192
          %v3407 = vadd.f32 %v3007, %v3192
          %v3408 = vadd.f32 %v3008, %v3197
          %v3409 = vadd.f32 %v3009, %v3197
          %v3410 = vadd.f32 %v3010, %v3202
          %v3411 = vadd.f32 %v3011, %v3202
          %v3412 = vadd.f32 %v3012, %v3207
          %v3413 = vadd.f32 %v3013, %v3207
          %v3414 = vadd.f32 %v3014, %v3212
          %v3415 = vadd.f32 %v3015, %v3212
          %v3416 = vadd.f32 %v3016, %v3217
          %v3417 = vadd.f32 %v3017, %v3217
          %v3418 = vadd.f32 %v3018, %v3222
          %v3419 = vadd.f32 %v3019, %v3222
          %v3420 = vadd.f32 %v3020, %v3227
          %v3421 = vadd.f32 %v3021, %v3227
          %v3422 = vadd.f32 %v3022, %v3232
          %v3423 = vadd.f32 %v3023, %v3232
          %v3424 = vadd.f32 %v3024, %v3237
          %v3425 = vadd.f32 %v3025, %v3237
          %v3426 = vadd.f32 %v3026, %v3242
          %v3427 = vadd.f32 %v3027, %v3242
          %v3428 = vadd.f32 %v3028, %v3247
          %v3429 = vadd.f32 %v3029, %v3247
          %v3430 = vadd.f32 %v3030, %v3252
          %v3431 = vadd.f32 %v3031, %v3252
          %v3432 = vadd.f32 %v3032, %v3257
          %v3433 = vadd.f32 %v3033, %v3257
          %v3434 = vadd.f32 %v3034, %v3262
          %v3435 = vadd.f32 %v3035, %v3262
          %v3436 = vadd.f32 %v3036, %v3267
          %v3437 = vadd.f32 %v3037, %v3267
          %v3438 = vadd.f32 %v3038, %v3272
          %v3439 = vadd.f32 %v3039, %v3272
          %v3440 = vadd.f32 %v3040, %v3277
          %v3441 = vadd.f32 %v3041, %v3277
          %v3442 = vadd.f32 %v3042, %v3282
          %v3443 = vadd.f32 %v3043, %v3282
          %v3444 = vadd.f32 %v3044, %v3287
          %v3445 = vadd.f32 %v3045, %v3287
          %v3446 = vadd.f32 %v3046, %v3292
          %v3447 = vadd.f32 %v3047, %v3292
          %v3448 = vadd.f32 %v3048, %v3297
          %v3449 = vadd.f32 %v3049, %v3297
          %v3450 = vadd.f32 %v3050, %v3302
          %v3451 = vadd.f32 %v3051, %v3302
          %v3452 = vadd.f32 %v3052, %v3307
          %v3453 = vadd.f32 %v3053, %v3307
          %v3454 = vadd.f32 %v3054, %v3312
          %v3455 = vadd.f32 %v3055, %v3312
          %v3456 = vadd.f32 %v3056, %v3317
          %v3457 = vadd.f32 %v3057, %v3317
          %v3458 = vadd.f32 %v3058, %v3322
          %v3459 = vadd.f32 %v3059, %v3322
          %v3460 = vadd.f32 %v3060, %v3327
          %v3461 = vadd.f32 %v3061, %v3327
          %v3462 = vadd.f32 %v3062, %v3332
          %v3463 = vadd.f32 %v3063, %v3332
          %v3464 = vadd.f32 %v3064, %v3337
          %v3465 = vadd.f32 %v3065, %v3337
          %v3466 = vadd.f32 %v3066, %v3342
          %v3467 = vadd.f32 %v3067, %v3342
          %v3468 = vadd.f32 %v3068, %v3347
          %v3469 = vadd.f32 %v3069, %v3347
          %v3470 = vadd.f32 %v3070, %v3352
          %v3471 = vadd.f32 %v3071, %v3352
          %v3472 = vadd.f32 %v3072, %v3357
          %v3473 = vadd.f32 %v3073, %v3357
          %v3474 = vadd.f32 %v3074, %v3362
          %v3475 = vadd.f32 %v3075, %v3362
          %v3476 = vadd.f32 %v3076, %v3367
          %v3477 = vadd.f32 %v3077, %v3367
          %v3478 = vadd.f32 %v3078, %v3372
          %v3479 = vadd.f32 %v3079, %v3372
          %v3480 = vadd.f32 %v3080, %v3377
          %v3481 = vadd.f32 %v3081, %v3377
          %v3482 = vadd.f32 %v3082, %v3382
          %v3483 = vadd.f32 %v3083, %v3382
          %v3484 = vmax.f32 %v3384, 0.0
          %v3485 = vmax.f32 %v3385, 0.0
          %v3486 = vmax.f32 %v3386, 0.0
          %v3487 = vmax.f32 %v3387, 0.0
          %v3488 = vmax.f32 %v3388, 0.0
          %v3489 = vmax.f32 %v3389, 0.0
          %v3490 = vmax.f32 %v3390, 0.0
          %v3491 = vmax.f32 %v3391, 0.0
          %v3492 = vmax.f32 %v3392, 0.0
          %v3493 = vmax.f32 %v3393, 0.0
          %v3494 = vmax.f32 %v3394, 0.0
          %v3495 = vmax.f32 %v3395, 0.0
          %v3496 = vmax.f32 %v3396, 0.0
          %v3497 = vmax.f32 %v3397, 0.0
          %v3498 = vmax.f32 %v3398, 0.0
          %v3499 = vmax.f32 %v3399, 0.0
          %v3500 = vmax.f32 %v3400, 0.0
          %v3501 = vmax.f32 %v3401, 0.0
          %v3502 = vmax.f32 %v3402, 0.0
          %v3503 = vmax.f32 %v3403, 0.0
          %v3504 = vmax.f32 %v3404, 0.0
          %v3505 = vmax.f32 %v3405, 0.0
          %v3506 = vmax.f32 %v3406, 0.0
          %v3507 = vmax.f32 %v3407, 0.0
          %v3508 = vmax.f32 %v3408, 0.0
          %v3509 = vmax.f32 %v3409, 0.0
          %v3510 = vmax.f32 %v3410, 0.0
          %v3511 = vmax.f32 %v3411, 0.0
          %v3512 = vmax.f32 %v3412, 0.0
          %v3513 = vmax.f32 %v3413, 0.0
          %v3514 = vmax.f32 %v3414, 0.0
          %v3515 = vmax.f32 %v3415, 0.0
          %v3516 = vmax.f32 %v3416, 0.0
          %v3517 = vmax.f32 %v3417, 0.0
          %v3518 = vmax.f32 %v3418, 0.0
          %v3519 = vmax.f32 %v3419, 0.0
          %v3520 = vmax.f32 %v3420, 0.0
          %v3521 = vmax.f32 %v3421, 0.0
          %v3522 = vmax.f32 %v3422, 0.0
          %v3523 = vmax.f32 %v3423, 0.0
          %v3524 = vmax.f32 %v3424, 0.0
          %v3525 = vmax.f32 %v3425, 0.0
          %v3526 = vmax.f32 %v3426, 0.0
          %v3527 = vmax.f32 %v3427, 0.0
          %v3528 = vmax.f32 %v3428, 0.0
          %v3529 = vmax.f32 %v3429, 0.0
          %v3530 = vmax.f32 %v3430, 0.0
          %v3531 = vmax.f32 %v3431, 0.0
          %v3532 = vmax.f32 %v3432, 0.0
          %v3533 = vmax.f32 %v3433, 0.0
          %v3534 = vmax.f32 %v3434, 0.0
          %v3535 = vmax.f32 %v3435, 0.0
          %v3536 = vmax.f32 %v3436, 0.0
          %v3537 = vmax.f32 %v3437, 0.0
          %v3538 = vmax.f32 %v3438, 0.0
          %v3539 = vmax.f32 %v3439, 0.0
          %v3540 = vmax.f32 %v3440, 0.0
          %v3541 = vmax.f32 %v3441, 0.0
          %v3542 = vmax.f32 %v3442, 0.0
          %v3543 = vmax.f32 %v3443, 0.0
          %v3544 = vmax.f32 %v3444, 0.0
          %v3545 = vmax.f32 %v3445, 0.0
          %v3546 = vmax.f32 %v3446, 0.0
          %v3547 = vmax.f32 %v3447, 0.0
          %v3548 = vmax.f32 %v3448, 0.0
          %v3549 = vmax.f32 %v3449, 0.0
          %v3550 = vmax.f32 %v3450, 0.0
          %v3551 = vmax.f32 %v3451, 0.0
          %v3552 = vmax.f32 %v3452, 0.0
          %v3553 = vmax.f32 %v3453, 0.0
          %v3554 = vmax.f32 %v3454, 0.0
          %v3555 = vmax.f32 %v3455, 0.0
          %v3556 = vmax.f32 %v3456, 0.0
          %v3557 = vmax.f32 %v3457, 0.0
          %v3558 = vmax.f32 %v3458, 0.0
          %v3559 = vmax.f32 %v3459, 0.0
          %v3560 = vmax.f32 %v3460, 0.0
          %v3561 = vmax.f32 %v3461, 0.0
          %v3562 = vmax.f32 %v3462, 0.0
          %v3563 = vmax.f32 %v3463, 0.0
          %v3564 = vmax.f32 %v3464, 0.0
          %v3565 = vmax.f32 %v3465, 0.0
          %v3566 = vmax.f32 %v3466, 0.0
          %v3567 = vmax.f32 %v3467, 0.0
          %v3568 = vmax.f32 %v3468, 0.0
          %v3569 = vmax.f32 %v3469, 0.0
          %v3570 = vmax.f32 %v3470, 0.0
          %v3571 = vmax.f32 %v3471, 0.0
          %v3572 = vmax.f32 %v3472, 0.0
          %v3573 = vmax.f32 %v3473, 0.0
          %v3574 = vmax.f32 %v3474, 0.0
          %v3575 = vmax.f32 %v3475, 0.0
          %v3576 = vmax.f32 %v3476, 0.0
          %v3577 = vmax.f32 %v3477, 0.0
          %v3578 = vmax.f32 %v3478, 0.0
          %v3579 = vmax.f32 %v3479, 0.0
          %v3580 = vmax.f32 %v3480, 0.0
          %v3581 = vmax.f32 %v3481, 0.0
          %v3582 = vmax.f32 %v3482, 0.0
          %v3583 = vmax.f32 %v3483, 0.0
          %v3584 = vld [vmem:[%s3] sm:$0xff]
          %v3585 = vld [vmem:[%s3 + $0x8] sm:$0xff]
          %v3586 = vld [vmem:[%s3 + $0x10] sm:$0xff]
          %v3587 = vld [vmem:[%s3 + $0x18] sm:$0xff]
          %v3588 = vld [vmem:[%s3 + $0x20] sm:$0xff]
          %v3589 = vld [vmem:[%s3 + $0x28] sm:$0xff]
          %v3590 = vld [vmem:[%s3 + $0x30] sm:$0xff]
          %v3591 = vld [vmem:[%s3 + $0x38] sm:$0xff]
          %v3592 = vld [vmem:[%s3 + $0x40] sm:$0xff]
          %v3593 = vld [vmem:[%s3 + $0x48] sm:$0xff]
          %v3594 = vld [vmem:[%s3 + $0x50] sm:$0xff]
          %v3595 = vld [vmem:[%s3 + $0x58] sm:$0xff]
          %v3596 = vld [vmem:[%s3 + $0x60] sm:$0xff]
          %v3597 = vld [vmem:[%s3 + $0x68] sm:$0xff]
          %v3598 = vld [vmem:[%s3 + $0x70] sm:$0xff]
          %v3599 = vld [vmem:[%s3 + $0x78] sm:$0xff]
          %v3600 = vld [vmem:[%s3 + $0x80] sm:$0xff]
          %v3601 = vld [vmem:[%s3 + $0x88] sm:$0xff]
          %v3602 = vld [vmem:[%s3 + $0x90] sm:$0xff]
          %v3603 = vld [vmem:[%s3 + $0x98] sm:$0xff]
          %v3604 = vld [vmem:[%s3 + $0xa0] sm:$0xff]
          %v3605 = vld [vmem:[%s3 + $0xa8] sm:$0xff]
          %v3606 = vld [vmem:[%s3 + $0xb0] sm:$0xff]
          %v3607 = vld [vmem:[%s3 + $0xb8] sm:$0xff]
          %v3608 = vld [vmem:[%s3 + $0xc0] sm:$0xff]
          %v3609 = vld [vmem:[%s3 + $0xc8] sm:$0xff]
          %v3610 = vld [vmem:[%s3 + $0xd0] sm:$0xff]
          %v3611 = vld [vmem:[%s3 + $0xd8] sm:$0xff]
          %v3612 = vld [vmem:[%s3 + $0xe0] sm:$0xff]
          %v3613 = vld [vmem:[%s3 + $0xe8] sm:$0xff]
          %v3614 = vld [vmem:[%s3 + $0xf0] sm:$0xff]
          %v3615 = vld [vmem:[%s3 + $0xf8] sm:$0xff]
          %v3616 = vld [vmem:[%s3 + $0x100] sm:$0xff]
          %v3617 = vld [vmem:[%s3 + $0x108] sm:$0xff]
          %v3618 = vld [vmem:[%s3 + $0x110] sm:$0xff]
          %v3619 = vld [vmem:[%s3 + $0x118] sm:$0xff]
          %v3620 = vld [vmem:[%s3 + $0x120] sm:$0xff]
          %v3621 = vld [vmem:[%s3 + $0x128] sm:$0xff]
          %v3622 = vld [vmem:[%s3 + $0x130] sm:$0xff]
          %v3623 = vld [vmem:[%s3 + $0x138] sm:$0xff]
          %v3624 = vld [vmem:[%s3 + $0x140] sm:$0xff]
          %v3625 = vld [vmem:[%s3 + $0x148] sm:$0xff]
          %v3626 = vld [vmem:[%s3 + $0x150] sm:$0xff]
          %v3627 = vld [vmem:[%s3 + $0x158] sm:$0xff]
          %v3628 = vld [vmem:[%s3 + $0x160] sm:$0xff]
          %v3629 = vld [vmem:[%s3 + $0x168] sm:$0xff]
          %v3630 = vld [vmem:[%s3 + $0x170] sm:$0xff]
          %v3631 = vld [vmem:[%s3 + $0x178] sm:$0xff]
          %v3632 = vld [vmem:[%s3 + $0x180] sm:$0xff]
          %v3633 = vld [vmem:[%s3 + $0x188] sm:$0xff]
          %v3634 = vld [vmem:[%s3 + $0x190] sm:$0xff]
          %v3635 = vld [vmem:[%s3 + $0x198] sm:$0xff]
          %v3636 = vld [vmem:[%s3 + $0x1a0] sm:$0xff]
          %v3637 = vld [vmem:[%s3 + $0x1a8] sm:$0xff]
          %v3638 = vld [vmem:[%s3 + $0x1b0] sm:$0xff]
          %v3639 = vld [vmem:[%s3 + $0x1b8] sm:$0xff]
          %v3640 = vld [vmem:[%s3 + $0x1c0] sm:$0xff]
          %v3641 = vld [vmem:[%s3 + $0x1c8] sm:$0xff]
          %v3642 = vld [vmem:[%s3 + $0x1d0] sm:$0xff]
          %v3643 = vld [vmem:[%s3 + $0x1d8] sm:$0xff]
          %v3644 = vld [vmem:[%s3 + $0x1e0] sm:$0xff]
          %v3645 = vld [vmem:[%s3 + $0x1e8] sm:$0xff]
          %v3646 = vld [vmem:[%s3 + $0x1f0] sm:$0xff]
          %v3647 = vld [vmem:[%s3 + $0x1f8] sm:$0xff]
          %v3648 = vld [vmem:[%s3 + $0x200] sm:$0xff]
          %v3649 = vld [vmem:[%s3 + $0x208] sm:$0xff]
          %v3650 = vld [vmem:[%s3 + $0x210] sm:$0xff]
          %v3651 = vld [vmem:[%s3 + $0x218] sm:$0xff]
          %v3652 = vld [vmem:[%s3 + $0x220] sm:$0xff]
          %v3653 = vld [vmem:[%s3 + $0x228] sm:$0xff]
          %v3654 = vld [vmem:[%s3 + $0x230] sm:$0xff]
          %v3655 = vld [vmem:[%s3 + $0x238] sm:$0xff]
          %v3656 = vld [vmem:[%s3 + $0x240] sm:$0xff]
          %v3657 = vld [vmem:[%s3 + $0x248] sm:$0xff]
          %v3658 = vld [vmem:[%s3 + $0x250] sm:$0x33]
          %v3659 = vld [vmem:[%s3 + $0x258] sm:$0x33]
          %v3660 = vpack.c.bf16 %v3486, %v3484
          %v3661 = vpack.c.bf16 %v3487, %v3485
          %v3662 = vpack.c.bf16 %v3490, %v3488
          %v3663 = vpack.c.bf16 %v3491, %v3489
          %v3664 = vpack.c.bf16 %v3494, %v3492
          %v3665 = vpack.c.bf16 %v3495, %v3493
          %v3666 = vpack.c.bf16 %v3498, %v3496
          %v3667 = vpack.c.bf16 %v3499, %v3497
          %v3668 = vpack.c.bf16 %v3502, %v3500
          %v3669 = vpack.c.bf16 %v3503, %v3501
          %v3670 = vpack.c.bf16 %v3506, %v3504
          %v3671 = vpack.c.bf16 %v3507, %v3505
          %v3672 = vpack.c.bf16 %v3510, %v3508
          %v3673 = vpack.c.bf16 %v3511, %v3509
          %v3674 = vpack.c.bf16 %v3514, %v3512
          %v3675 = vpack.c.bf16 %v3515, %v3513
          %v3676 = vpack.c.bf16 %v3518, %v3516
          %v3677 = vpack.c.bf16 %v3519, %v3517
          %v3678 = vpack.c.bf16 %v3522, %v3520
          %v3679 = vpack.c.bf16 %v3523, %v3521
          %v3680 = vpack.c.bf16 %v3526, %v3524
          %v3681 = vpack.c.bf16 %v3527, %v3525
          %v3682 = vpack.c.bf16 %v3530, %v3528
          %v3683 = vpack.c.bf16 %v3531, %v3529
          %v3684 = vpack.c.bf16 %v3534, %v3532
          %v3685 = vpack.c.bf16 %v3535, %v3533
          %v3686 = vpack.c.bf16 %v3538, %v3536
          %v3687 = vpack.c.bf16 %v3539, %v3537
          %v3688 = vpack.c.bf16 %v3542, %v3540
          %v3689 = vpack.c.bf16 %v3543, %v3541
          %v3690 = vpack.c.bf16 %v3546, %v3544
          %v3691 = vpack.c.bf16 %v3547, %v3545
          %v3692 = vpack.c.bf16 %v3550, %v3548
          %v3693 = vpack.c.bf16 %v3551, %v3549
          %v3694 = vpack.c.bf16 %v3554, %v3552
          %v3695 = vpack.c.bf16 %v3555, %v3553
          %v3696 = vpack.c.bf16 %v3558, %v3556
          %v3697 = vpack.c.bf16 %v3559, %v3557
          %v3698 = vpack.c.bf16 %v3562, %v3560
          %v3699 = vpack.c.bf16 %v3563, %v3561
          %v3700 = vpack.c.bf16 %v3566, %v3564
          %v3701 = vpack.c.bf16 %v3567, %v3565
          %v3702 = vpack.c.bf16 %v3570, %v3568
          %v3703 = vpack.c.bf16 %v3571, %v3569
          %v3704 = vpack.c.bf16 %v3574, %v3572
          %v3705 = vpack.c.bf16 %v3575, %v3573
          %v3706 = vpack.c.bf16 %v3578, %v3576
          %v3707 = vpack.c.bf16 %v3579, %v3577
          %v3708 = vpack.c.bf16 %v3582, %v3580
          %v3709 = vpack.c.bf16 %v3583, %v3581
          %v3710 = vld [vmem:[%s4] sm:$0xf]
          %v3711 = vld [vmem:[%s4 + $0x4] sm:$0xf]
          %v3712 = vld [vmem:[%s4 + $0x8] sm:$0xf]
          %v3713 = vld [vmem:[%s4 + $0xc] sm:$0xf]
          %v3714 = vld [vmem:[%s4 + $0x10] sm:$0xf]
          %v3715 = vld [vmem:[%s4 + $0x14] sm:$0xf]
          %v3716 = vld [vmem:[%s4 + $0x18] sm:$0xf]
          %v3717 = vld [vmem:[%s4 + $0x1c] sm:$0xf]
          %v3718 = vld [vmem:[%s4 + $0x20] sm:$0xf]
          %v3719 = vld [vmem:[%s4 + $0x24] sm:$0xf]
          %v3720 = vld [vmem:[%s4 + $0x28] sm:$0xf]
          %v3721 = vld [vmem:[%s4 + $0x2c] sm:$0xf]
          %v3722 = vld [vmem:[%s4 + $0x30] sm:$0xf]
          %v3723 = vld [vmem:[%s4 + $0x34] sm:$0xf]
          %v3724 = vld [vmem:[%s4 + $0x38] sm:$0xf]
          %v3725 = vld [vmem:[%s4 + $0x3c] sm:$0xf]
          %v3726 = vld [vmem:[%s4 + $0x40] sm:$0xf]
          %v3727 = vld [vmem:[%s4 + $0x44] sm:$0xf]
          %v3728 = vld [vmem:[%s4 + $0x48] sm:$0xf]
          %v3729 = vld [vmem:[%s4 + $0x4c] sm:$0xf]
          %v3730 = vld [vmem:[%s4 + $0x50] sm:$0xf]
          %v3731 = vld [vmem:[%s4 + $0x54] sm:$0xf]
          %v3732 = vld [vmem:[%s4 + $0x58] sm:$0xf]
          %v3733 = vld [vmem:[%s4 + $0x5c] sm:$0xf]
          %v3734 = vld [vmem:[%s4 + $0x60] sm:$0xf]
          %v3735 = vld [vmem:[%s4 + $0x64] sm:$0xf]
          %v3736 = vld [vmem:[%s4 + $0x68] sm:$0xf]
          %v3737 = vld [vmem:[%s4 + $0x6c] sm:$0xf]
          %v3738 = vld [vmem:[%s4 + $0x70] sm:$0xf]
          %v3739 = vld [vmem:[%s4 + $0x74] sm:$0xf]
          %v3740 = vld [vmem:[%s4 + $0x78] sm:$0xf]
          %v3741 = vld [vmem:[%s4 + $0x7c] sm:$0xf]
          %v3742 = vld [vmem:[%s4 + $0x80] sm:$0xf]
          %v3743 = vld [vmem:[%s4 + $0x84] sm:$0xf]
          %v3744 = vld [vmem:[%s4 + $0x88] sm:$0xf]
          %v3745 = vld [vmem:[%s4 + $0x8c] sm:$0xf]
          %v3746 = vld [vmem:[%s4 + $0x90] sm:$0xf]
          %v3747 = vld [vmem:[%s4 + $0x94] sm:$0x3]
          %v3748 = vld [vmem:[%s292] sm:$0xff]
          %v3787 = vunpack.c.l.b16 %v3710
          %v3788 = vunpack.c.l.b16 %v3711
          %v3789 = vunpack.c.l.b16 %v3712
          %v3790 = vunpack.c.l.b16 %v3713
          %v3791 = vunpack.c.l.b16 %v3714
          %v3792 = vunpack.c.l.b16 %v3715
          %v3793 = vunpack.c.l.b16 %v3716
          %v3794 = vunpack.c.l.b16 %v3717
          %v3795 = vunpack.c.l.b16 %v3718
          %v3796 = vunpack.c.l.b16 %v3719
          %v3797 = vunpack.c.l.b16 %v3720
          %v3798 = vunpack.c.l.b16 %v3721
          %v3799 = vunpack.c.l.b16 %v3722
          %v3800 = vunpack.c.l.b16 %v3723
          %v3801 = vunpack.c.l.b16 %v3724
          %v3802 = vunpack.c.l.b16 %v3725
          %v3803 = vunpack.c.l.b16 %v3726
          %v3804 = vunpack.c.l.b16 %v3727
          %v3805 = vunpack.c.l.b16 %v3728
          %v3806 = vunpack.c.l.b16 %v3729
          %v3807 = vunpack.c.l.b16 %v3730
          %v3808 = vunpack.c.l.b16 %v3731
          %v3809 = vunpack.c.l.b16 %v3732
          %v3810 = vunpack.c.l.b16 %v3733
          %v3811 = vunpack.c.l.b16 %v3734
          %v3812 = vunpack.c.l.b16 %v3735
          %v3813 = vunpack.c.l.b16 %v3736
          %v3814 = vunpack.c.l.b16 %v3737
          %v3815 = vunpack.c.l.b16 %v3738
          %v3816 = vunpack.c.l.b16 %v3739
          %v3817 = vunpack.c.l.b16 %v3740
          %v3818 = vunpack.c.l.b16 %v3741
          %v3819 = vunpack.c.l.b16 %v3742
          %v3820 = vunpack.c.l.b16 %v3743
          %v3821 = vunpack.c.l.b16 %v3744
          %v3822 = vunpack.c.l.b16 %v3745
          %v3823 = vunpack.c.l.b16 %v3746
          %v3824 = vunpack.c.l.b16 %v3747
          %v3825 = vpack.c.b16 %v3788, %v3787
          %v3826 = vpack.c.b16 %v3790, %v3789
          %v3827 = vpack.c.b16 %v3792, %v3791
          %v3828 = vpack.c.b16 %v3794, %v3793
          %v3829 = vpack.c.b16 %v3796, %v3795
          %v3830 = vpack.c.b16 %v3798, %v3797
          %v3831 = vpack.c.b16 %v3800, %v3799
          %v3832 = vpack.c.b16 %v3802, %v3801
          %v3833 = vpack.c.b16 %v3804, %v3803
          %v3834 = vpack.c.b16 %v3806, %v3805
          %v3835 = vpack.c.b16 %v3808, %v3807
          %v3836 = vpack.c.b16 %v3810, %v3809
          %v3837 = vpack.c.b16 %v3812, %v3811
          %v3838 = vpack.c.b16 %v3814, %v3813
          %v3839 = vpack.c.b16 %v3816, %v3815
          %v3840 = vpack.c.b16 %v3818, %v3817
          %v3841 = vpack.c.b16 %v3820, %v3819
          %v3842 = vpack.c.b16 %v3822, %v3821
          %v3843 = vpack.c.b16 %v3824, %v3823
          %v3845 = vunpack.c.l.b16 %v3748
          %v3846 = vunpack.c.h.b16 %v3748
          %v3847 = vpack.c.b16 %v3845, %v3845
          %v3848 = vpack.c.b16 %v3846, %v3846
          %vm3849 = vcmask 64512
          %v3851 = vsel %vm3849, %v3825, 0
          %v3854 = vsel %vm3849, %v3826, 0
          %v3857 = vsel %vm3849, %v3827, 0
          %v3860 = vsel %vm3849, %v3828, 0
          %v3863 = vsel %vm3849, %v3829, 0
          %v3866 = vsel %vm3849, %v3830, 0
          %v3869 = vsel %vm3849, %v3831, 0
          %v3872 = vsel %vm3849, %v3832, 0
          %v3875 = vsel %vm3849, %v3833, 0
          %v3878 = vsel %vm3849, %v3834, 0
          %v3881 = vsel %vm3849, %v3835, 0
          %v3884 = vsel %vm3849, %v3836, 0
          %v3887 = vsel %vm3849, %v3837, 0
          %v3890 = vsel %vm3849, %v3838, 0
          %v3893 = vsel %vm3849, %v3839, 0
          %v3896 = vsel %vm3849, %v3840, 0
          %v3899 = vsel %vm3849, %v3841, 0
          %v3902 = vsel %vm3849, %v3842, 0
          %v3905 = vsel %vm3849, %v3843, 0
          %vm3907 = vcmask 1043456
          %v3909 = vsel %vm3907, %v3847, 0
          %v3912 = vsel %vm3907, %v3848, 0
          %3914 = vmatprep.subr.bf16.mxu0 %v3912
          %3915 = vmatpush1.bf16.msra.mxu0 %v3909
          %3916 = vmatprep.subr.bf16.mxu0 0
          %3917 = vmatpush1.bf16.msra.mxu0 0
          %3918 = vmatprep.subr.bf16.mxu0 0
          %3919 = vmatpush1.bf16.msra.mxu0 0
          %3920 = vmatprep.subr.bf16.mxu0 0
          %3921 = vmatpush1.bf16.msra.mxu0 0
          %3922 = vmatprep.subr.bf16.mxu0 0
          %3923 = vmatpush1.bf16.msra.mxu0 0
          %3924 = vmatprep.subr.bf16.mxu0 0
          %3925 = vmatpush1.bf16.msra.mxu0 0
          %3926 = vmatprep.subr.bf16.mxu0 0
          %3927 = vmatpush1.bf16.msra.mxu0 0
          %3928 = vmatprep.subr.bf16.mxu0 0
          %3929 = vmatpush1.bf16.msra.mxu0 0
          %3930 = vmatprep.subr.bf16.mxu0 0
          %3931 = vmatpush1.bf16.msra.mxu0 0
          %3932 = vmatprep.subr.bf16.mxu0 0
          %3933 = vmatpush1.bf16.msra.mxu0 0
          %3934 = vmatprep.subr.bf16.mxu0 0
          %3935 = vmatpush1.bf16.msra.mxu0 0
          %3936 = vmatprep.subr.bf16.mxu0 0
          %3937 = vmatpush1.bf16.msra.mxu0 0
          %3938 = vmatprep.subr.bf16.mxu0 0
          %3939 = vmatpush1.bf16.msra.mxu0 0
          %3940 = vmatprep.subr.bf16.mxu0 0
          %3941 = vmatpush1.bf16.msra.mxu0 0
          %3942 = vmatprep.subr.bf16.mxu0 0
          %3943 = vmatpush1.bf16.msra.mxu0 0
          %3944 = vmatprep.subr.bf16.mxu0 0
          %3945 = vmatpush1.bf16.msra.mxu0 0
          %3946 = vmatprep.mubr.bf16.mxu0 0
          %3947 = vmatmul.mubr.bf16.gmra.mrb[0].mxu0 %v3851
          %v3948 = vpop.f32.mrb[0].mxu0
          %v3949 = vadd.f32 0.0, %v3948
          %v3950 = vpop.f32.mrb[0].mxu0
          %v3951 = vadd.f32 0.0, %v3950
          %v3952 = vpop.f32.mrb[0].mxu0
          %v3953 = vadd.f32 0.0, %v3952
          %v3954 = vpop.f32.mrb[0].mxu0
          %v3955 = vadd.f32 0.0, %v3954
          %3956 = vmatprep.mubr.bf16.mxu0 0
          %3957 = vmatmul.mubr.bf16.gmra.mrb[0].mxu0 %v3854
          %v3958 = vpop.f32.mrb[0].mxu0
          %v3959 = vadd.f32 0.0, %v3958
          %v3960 = vpop.f32.mrb[0].mxu0
          %v3961 = vadd.f32 0.0, %v3960
          %v3962 = vpop.f32.mrb[0].mxu0
          %v3963 = vadd.f32 0.0, %v3962
          %v3964 = vpop.f32.mrb[0].mxu0
          %v3965 = vadd.f32 0.0, %v3964
          %3966 = vmatprep.mubr.bf16.mxu0 0
          %3967 = vmatmul.mubr.bf16.gmra.mrb[0].mxu0 %v3857
          %v3968 = vpop.f32.mrb[0].mxu0
          %v3969 = vadd.f32 0.0, %v3968
          %v3970 = vpop.f32.mrb[0].mxu0
          %v3971 = vadd.f32 0.0, %v3970
          %v3972 = vpop.f32.mrb[0].mxu0
          %v3973 = vadd.f32 0.0, %v3972
          %v3974 = vpop.f32.mrb[0].mxu0
          %v3975 = vadd.f32 0.0, %v3974
          %3976 = vmatprep.mubr.bf16.mxu0 0
          %3977 = vmatmul.mubr.bf16.gmra.mrb[0].mxu0 %v3860
          %v3978 = vpop.f32.mrb[0].mxu0
          %v3979 = vadd.f32 0.0, %v3978
          %v3980 = vpop.f32.mrb[0].mxu0
          %v3981 = vadd.f32 0.0, %v3980
          %v3982 = vpop.f32.mrb[0].mxu0
          %v3983 = vadd.f32 0.0, %v3982
          %v3984 = vpop.f32.mrb[0].mxu0
          %v3985 = vadd.f32 0.0, %v3984
          %3986 = vmatprep.mubr.bf16.mxu0 0
          %3987 = vmatmul.mubr.bf16.gmra.mrb[0].mxu0 %v3863
          %v3988 = vpop.f32.mrb[0].mxu0
          %v3989 = vadd.f32 0.0, %v3988
          %v3990 = vpop.f32.mrb[0].mxu0
          %v3991 = vadd.f32 0.0, %v3990
          %v3992 = vpop.f32.mrb[0].mxu0
          %v3993 = vadd.f32 0.0, %v3992
          %v3994 = vpop.f32.mrb[0].mxu0
          %v3995 = vadd.f32 0.0, %v3994
          %3996 = vmatprep.mubr.bf16.mxu0 0
          %3997 = vmatmul.mubr.bf16.gmra.mrb[0].mxu0 %v3866
          %v3998 = vpop.f32.mrb[0].mxu0
          %v3999 = vadd.f32 0.0, %v3998
          %v4000 = vpop.f32.mrb[0].mxu0
          %v4001 = vadd.f32 0.0, %v4000
          %v4002 = vpop.f32.mrb[0].mxu0
          %v4003 = vadd.f32 0.0, %v4002
          %v4004 = vpop.f32.mrb[0].mxu0
          %v4005 = vadd.f32 0.0, %v4004
          %4006 = vmatprep.mubr.bf16.mxu0 0
          %4007 = vmatmul.mubr.bf16.gmra.mrb[0].mxu0 %v3869
          %v4008 = vpop.f32.mrb[0].mxu0
          %v4009 = vadd.f32 0.0, %v4008
          %v4010 = vpop.f32.mrb[0].mxu0
          %v4011 = vadd.f32 0.0, %v4010
          %v4012 = vpop.f32.mrb[0].mxu0
          %v4013 = vadd.f32 0.0, %v4012
          %v4014 = vpop.f32.mrb[0].mxu0
          %v4015 = vadd.f32 0.0, %v4014
          %4016 = vmatprep.mubr.bf16.mxu0 0
          %4017 = vmatmul.mubr.bf16.gmra.mrb[0].mxu0 %v3872
          %v4018 = vpop.f32.mrb[0].mxu0
          %v4019 = vadd.f32 0.0, %v4018
          %v4020 = vpop.f32.mrb[0].mxu0
          %v4021 = vadd.f32 0.0, %v4020
          %v4022 = vpop.f32.mrb[0].mxu0
          %v4023 = vadd.f32 0.0, %v4022
          %v4024 = vpop.f32.mrb[0].mxu0
          %v4025 = vadd.f32 0.0, %v4024
          %4026 = vmatprep.mubr.bf16.mxu0 0
          %4027 = vmatmul.mubr.bf16.gmra.mrb[0].mxu0 %v3875
          %v4028 = vpop.f32.mrb[0].mxu0
          %v4029 = vadd.f32 0.0, %v4028
          %v4030 = vpop.f32.mrb[0].mxu0
          %v4031 = vadd.f32 0.0, %v4030
          %v4032 = vpop.f32.mrb[0].mxu0
          %v4033 = vadd.f32 0.0, %v4032
          %v4034 = vpop.f32.mrb[0].mxu0
          %v4035 = vadd.f32 0.0, %v4034
          %4036 = vmatprep.mubr.bf16.mxu0 0
          %4037 = vmatmul.mubr.bf16.gmra.mrb[0].mxu0 %v3878
          %v4038 = vpop.f32.mrb[0].mxu0
          %v4039 = vadd.f32 0.0, %v4038
          %v4040 = vpop.f32.mrb[0].mxu0
          %v4041 = vadd.f32 0.0, %v4040
          %v4042 = vpop.f32.mrb[0].mxu0
          %v4043 = vadd.f32 0.0, %v4042
          %v4044 = vpop.f32.mrb[0].mxu0
          %v4045 = vadd.f32 0.0, %v4044
          %4046 = vmatprep.mubr.bf16.mxu0 0
          %4047 = vmatmul.mubr.bf16.gmra.mrb[0].mxu0 %v3881
          %v4048 = vpop.f32.mrb[0].mxu0
          %v4049 = vadd.f32 0.0, %v4048
          %v4050 = vpop.f32.mrb[0].mxu0
          %v4051 = vadd.f32 0.0, %v4050
          %v4052 = vpop.f32.mrb[0].mxu0
          %v4053 = vadd.f32 0.0, %v4052
          %v4054 = vpop.f32.mrb[0].mxu0
          %v4055 = vadd.f32 0.0, %v4054
          %4056 = vmatprep.mubr.bf16.mxu0 0
          %4057 = vmatmul.mubr.bf16.gmra.mrb[0].mxu0 %v3884
          %v4058 = vpop.f32.mrb[0].mxu0
          %v4059 = vadd.f32 0.0, %v4058
          %v4060 = vpop.f32.mrb[0].mxu0
          %v4061 = vadd.f32 0.0, %v4060
          %v4062 = vpop.f32.mrb[0].mxu0
          %v4063 = vadd.f32 0.0, %v4062
          %v4064 = vpop.f32.mrb[0].mxu0
          %v4065 = vadd.f32 0.0, %v4064
          %4066 = vmatprep.mubr.bf16.mxu0 0
          %4067 = vmatmul.mubr.bf16.gmra.mrb[0].mxu0 %v3887
          %v4068 = vpop.f32.mrb[0].mxu0
          %v4069 = vadd.f32 0.0, %v4068
          %v4070 = vpop.f32.mrb[0].mxu0
          %v4071 = vadd.f32 0.0, %v4070
          %v4072 = vpop.f32.mrb[0].mxu0
          %v4073 = vadd.f32 0.0, %v4072
          %v4074 = vpop.f32.mrb[0].mxu0
          %v4075 = vadd.f32 0.0, %v4074
          %4076 = vmatprep.mubr.bf16.mxu0 0
          %4077 = vmatmul.mubr.bf16.gmra.mrb[0].mxu0 %v3890
          %v4078 = vpop.f32.mrb[0].mxu0
          %v4079 = vadd.f32 0.0, %v4078
          %v4080 = vpop.f32.mrb[0].mxu0
          %v4081 = vadd.f32 0.0, %v4080
          %v4082 = vpop.f32.mrb[0].mxu0
          %v4083 = vadd.f32 0.0, %v4082
          %v4084 = vpop.f32.mrb[0].mxu0
          %v4085 = vadd.f32 0.0, %v4084
          %4086 = vmatprep.mubr.bf16.mxu0 0
          %4087 = vmatmul.mubr.bf16.gmra.mrb[0].mxu0 %v3893
          %v4088 = vpop.f32.mrb[0].mxu0
          %v4089 = vadd.f32 0.0, %v4088
          %v4090 = vpop.f32.mrb[0].mxu0
          %v4091 = vadd.f32 0.0, %v4090
          %v4092 = vpop.f32.mrb[0].mxu0
          %v4093 = vadd.f32 0.0, %v4092
          %v4094 = vpop.f32.mrb[0].mxu0
          %v4095 = vadd.f32 0.0, %v4094
          %4096 = vmatprep.mubr.bf16.mxu0 0
          %4097 = vmatmul.mubr.bf16.gmra.mrb[0].mxu0 %v3896
          %v4098 = vpop.f32.mrb[0].mxu0
          %v4099 = vadd.f32 0.0, %v4098
          %v4100 = vpop.f32.mrb[0].mxu0
          %v4101 = vadd.f32 0.0, %v4100
          %v4102 = vpop.f32.mrb[0].mxu0
          %v4103 = vadd.f32 0.0, %v4102
          %v4104 = vpop.f32.mrb[0].mxu0
          %v4105 = vadd.f32 0.0, %v4104
          %4106 = vmatprep.mubr.bf16.mxu0 0
          %4107 = vmatmul.mubr.bf16.gmra.mrb[0].mxu0 %v3899
          %v4108 = vpop.f32.mrb[0].mxu0
          %v4109 = vadd.f32 0.0, %v4108
          %v4110 = vpop.f32.mrb[0].mxu0
          %v4111 = vadd.f32 0.0, %v4110
          %v4112 = vpop.f32.mrb[0].mxu0
          %v4113 = vadd.f32 0.0, %v4112
          %v4114 = vpop.f32.mrb[0].mxu0
          %v4115 = vadd.f32 0.0, %v4114
          %4116 = vmatprep.mubr.bf16.mxu0 0
          %4117 = vmatmul.mubr.bf16.gmra.mrb[0].mxu0 %v3902
          %v4118 = vpop.f32.mrb[0].mxu0
          %v4119 = vadd.f32 0.0, %v4118
          %v4120 = vpop.f32.mrb[0].mxu0
          %v4121 = vadd.f32 0.0, %v4120
          %v4122 = vpop.f32.mrb[0].mxu0
          %v4123 = vadd.f32 0.0, %v4122
          %v4124 = vpop.f32.mrb[0].mxu0
          %v4125 = vadd.f32 0.0, %v4124
          %4126 = vmatprep.mubr.bf16.mxu0 0
          %4127 = vmatmul.mubr.bf16.gmra.mrb[0].mxu0 %v3905
          %v4128 = vpop.f32.mrb[0].mxu0
          %v4129 = vadd.f32 0.0, %v4128
          %v4130 = vpop.f32.mrb[0].mxu0
          %v4131 = vadd.f32 0.0, %v4130
          %v4132 = vpop.f32.mrb[0].mxu0
          %v4133 = vadd.f32 0.0, %v4132
          %v4134 = vpop.f32.mrb[0].mxu0
          %v4135 = vadd.f32 0.0, %v4134
          %4136 = vdwg.mxu0
          %v4213 = vunpack.c.l.b16 %v3584
          %v4214 = vunpack.c.h.b16 %v3584
          %v4215 = vunpack.c.l.b16 %v3585
          %v4216 = vunpack.c.h.b16 %v3585
          %v4217 = vunpack.c.l.b16 %v3586
          %v4218 = vunpack.c.h.b16 %v3586
          %v4219 = vunpack.c.l.b16 %v3587
          %v4220 = vunpack.c.h.b16 %v3587
          %v4221 = vunpack.c.l.b16 %v3588
          %v4222 = vunpack.c.h.b16 %v3588
          %v4223 = vunpack.c.l.b16 %v3589
          %v4224 = vunpack.c.h.b16 %v3589
          %v4225 = vunpack.c.l.b16 %v3590
          %v4226 = vunpack.c.h.b16 %v3590
          %v4227 = vunpack.c.l.b16 %v3591
          %v4228 = vunpack.c.h.b16 %v3591
          %v4229 = vunpack.c.l.b16 %v3592
          %v4230 = vunpack.c.h.b16 %v3592
          %v4231 = vunpack.c.l.b16 %v3593
          %v4232 = vunpack.c.h.b16 %v3593
          %v4233 = vunpack.c.l.b16 %v3594
          %v4234 = vunpack.c.h.b16 %v3594
          %v4235 = vunpack.c.l.b16 %v3595
          %v4236 = vunpack.c.h.b16 %v3595
          %v4237 = vunpack.c.l.b16 %v3596
          %v4238 = vunpack.c.h.b16 %v3596
          %v4239 = vunpack.c.l.b16 %v3597
          %v4240 = vunpack.c.h.b16 %v3597
          %v4241 = vunpack.c.l.b16 %v3598
          %v4242 = vunpack.c.h.b16 %v3598
          %v4243 = vunpack.c.l.b16 %v3599
          %v4244 = vunpack.c.h.b16 %v3599
          %v4245 = vunpack.c.l.b16 %v3600
          %v4246 = vunpack.c.h.b16 %v3600
          %v4247 = vunpack.c.l.b16 %v3601
          %v4248 = vunpack.c.h.b16 %v3601
          %v4249 = vunpack.c.l.b16 %v3602
          %v4250 = vunpack.c.h.b16 %v3602
          %v4251 = vunpack.c.l.b16 %v3603
          %v4252 = vunpack.c.h.b16 %v3603
          %v4253 = vunpack.c.l.b16 %v3604
          %v4254 = vunpack.c.h.b16 %v3604
          %v4255 = vunpack.c.l.b16 %v3605
          %v4256 = vunpack.c.h.b16 %v3605
          %v4257 = vunpack.c.l.b16 %v3606
          %v4258 = vunpack.c.h.b16 %v3606
          %v4259 = vunpack.c.l.b16 %v3607
          %v4260 = vunpack.c.h.b16 %v3607
          %v4261 = vunpack.c.l.b16 %v3608
          %v4262 = vunpack.c.h.b16 %v3608
          %v4263 = vunpack.c.l.b16 %v3609
          %v4264 = vunpack.c.h.b16 %v3609
          %v4265 = vunpack.c.l.b16 %v3610
          %v4266 = vunpack.c.h.b16 %v3610
          %v4267 = vunpack.c.l.b16 %v3611
          %v4268 = vunpack.c.h.b16 %v3611
          %v4269 = vunpack.c.l.b16 %v3612
          %v4270 = vunpack.c.h.b16 %v3612
          %v4271 = vunpack.c.l.b16 %v3613
          %v4272 = vunpack.c.h.b16 %v3613
          %v4273 = vunpack.c.l.b16 %v3614
          %v4274 = vunpack.c.h.b16 %v3614
          %v4275 = vunpack.c.l.b16 %v3615
          %v4276 = vunpack.c.h.b16 %v3615
          %v4277 = vunpack.c.l.b16 %v3616
          %v4278 = vunpack.c.h.b16 %v3616
          %v4279 = vunpack.c.l.b16 %v3617
          %v4280 = vunpack.c.h.b16 %v3617
          %v4281 = vunpack.c.l.b16 %v3618
          %v4282 = vunpack.c.h.b16 %v3618
          %v4283 = vunpack.c.l.b16 %v3619
          %v4284 = vunpack.c.h.b16 %v3619
          %v4285 = vunpack.c.l.b16 %v3620
          %v4286 = vunpack.c.h.b16 %v3620
          %v4287 = vunpack.c.l.b16 %v3621
          %v4288 = vunpack.c.h.b16 %v3621
          %v4289 = vunpack.c.l.b16 %v3622
          %v4290 = vunpack.c.h.b16 %v3622
          %v4291 = vunpack.c.l.b16 %v3623
          %v4292 = vunpack.c.h.b16 %v3623
          %v4293 = vunpack.c.l.b16 %v3624
          %v4294 = vunpack.c.h.b16 %v3624
          %v4295 = vunpack.c.l.b16 %v3625
          %v4296 = vunpack.c.h.b16 %v3625
          %v4297 = vunpack.c.l.b16 %v3626
          %v4298 = vunpack.c.h.b16 %v3626
          %v4299 = vunpack.c.l.b16 %v3627
          %v4300 = vunpack.c.h.b16 %v3627
          %v4301 = vunpack.c.l.b16 %v3628
          %v4302 = vunpack.c.h.b16 %v3628
          %v4303 = vunpack.c.l.b16 %v3629
          %v4304 = vunpack.c.h.b16 %v3629
          %v4305 = vunpack.c.l.b16 %v3630
          %v4306 = vunpack.c.h.b16 %v3630
          %v4307 = vunpack.c.l.b16 %v3631
          %v4308 = vunpack.c.h.b16 %v3631
          %v4309 = vunpack.c.l.b16 %v3632
          %v4310 = vunpack.c.h.b16 %v3632
          %v4311 = vunpack.c.l.b16 %v3633
          %v4312 = vunpack.c.h.b16 %v3633
          %v4313 = vunpack.c.l.b16 %v3634
          %v4314 = vunpack.c.h.b16 %v3634
          %v4315 = vunpack.c.l.b16 %v3635
          %v4316 = vunpack.c.h.b16 %v3635
          %v4317 = vunpack.c.l.b16 %v3636
          %v4318 = vunpack.c.h.b16 %v3636
          %v4319 = vunpack.c.l.b16 %v3637
          %v4320 = vunpack.c.h.b16 %v3637
          %v4321 = vunpack.c.l.b16 %v3638
          %v4322 = vunpack.c.h.b16 %v3638
          %v4323 = vunpack.c.l.b16 %v3639
          %v4324 = vunpack.c.h.b16 %v3639
          %v4325 = vunpack.c.l.b16 %v3640
          %v4326 = vunpack.c.h.b16 %v3640
          %v4327 = vunpack.c.l.b16 %v3641
          %v4328 = vunpack.c.h.b16 %v3641
          %v4329 = vunpack.c.l.b16 %v3642
          %v4330 = vunpack.c.h.b16 %v3642
          %v4331 = vunpack.c.l.b16 %v3643
          %v4332 = vunpack.c.h.b16 %v3643
          %v4333 = vunpack.c.l.b16 %v3644
          %v4334 = vunpack.c.h.b16 %v3644
          %v4335 = vunpack.c.l.b16 %v3645
          %v4336 = vunpack.c.h.b16 %v3645
          %v4337 = vunpack.c.l.b16 %v3646
          %v4338 = vunpack.c.h.b16 %v3646
          %v4339 = vunpack.c.l.b16 %v3647
          %v4340 = vunpack.c.h.b16 %v3647
          %v4341 = vunpack.c.l.b16 %v3648
          %v4342 = vunpack.c.h.b16 %v3648
          %v4343 = vunpack.c.l.b16 %v3649
          %v4344 = vunpack.c.h.b16 %v3649
          %v4345 = vunpack.c.l.b16 %v3650
          %v4346 = vunpack.c.h.b16 %v3650
          %v4347 = vunpack.c.l.b16 %v3651
          %v4348 = vunpack.c.h.b16 %v3651
          %v4349 = vunpack.c.l.b16 %v3652
          %v4350 = vunpack.c.h.b16 %v3652
          %v4351 = vunpack.c.l.b16 %v3653
          %v4352 = vunpack.c.h.b16 %v3653
          %v4353 = vunpack.c.l.b16 %v3654
          %v4354 = vunpack.c.h.b16 %v3654
          %v4355 = vunpack.c.l.b16 %v3655
          %v4356 = vunpack.c.h.b16 %v3655
          %v4357 = vunpack.c.l.b16 %v3656
          %v4358 = vunpack.c.h.b16 %v3656
          %v4359 = vunpack.c.l.b16 %v3657
          %v4360 = vunpack.c.h.b16 %v3657
          %v4361 = vunpack.c.l.b16 %v3658
          %v4362 = vunpack.c.h.b16 %v3658
          %v4363 = vunpack.c.l.b16 %v3659
          %v4364 = vunpack.c.h.b16 %v3659
          %v4365 = vpack.c.b16 %v4217, %v4213
          %v4366 = vpack.c.b16 %v4218, %v4214
          %v4367 = vpack.c.b16 %v4219, %v4215
          %v4368 = vpack.c.b16 %v4220, %v4216
          %v4369 = vpack.c.b16 %v4225, %v4221
          %v4370 = vpack.c.b16 %v4226, %v4222
          %v4371 = vpack.c.b16 %v4227, %v4223
          %v4372 = vpack.c.b16 %v4228, %v4224
          %v4373 = vpack.c.b16 %v4233, %v4229
          %v4374 = vpack.c.b16 %v4234, %v4230
          %v4375 = vpack.c.b16 %v4235, %v4231
          %v4376 = vpack.c.b16 %v4236, %v4232
          %v4377 = vpack.c.b16 %v4241, %v4237
          %v4378 = vpack.c.b16 %v4242, %v4238
          %v4379 = vpack.c.b16 %v4243, %v4239
          %v4380 = vpack.c.b16 %v4244, %v4240
          %v4381 = vpack.c.b16 %v4249, %v4245
          %v4382 = vpack.c.b16 %v4250, %v4246
          %v4383 = vpack.c.b16 %v4251, %v4247
          %v4384 = vpack.c.b16 %v4252, %v4248
          %v4385 = vpack.c.b16 %v4257, %v4253
          %v4386 = vpack.c.b16 %v4258, %v4254
          %v4387 = vpack.c.b16 %v4259, %v4255
          %v4388 = vpack.c.b16 %v4260, %v4256
          %v4389 = vpack.c.b16 %v4265, %v4261
          %v4390 = vpack.c.b16 %v4266, %v4262
          %v4391 = vpack.c.b16 %v4267, %v4263
          %v4392 = vpack.c.b16 %v4268, %v4264
          %v4393 = vpack.c.b16 %v4273, %v4269
          %v4394 = vpack.c.b16 %v4274, %v4270
          %v4395 = vpack.c.b16 %v4275, %v4271
          %v4396 = vpack.c.b16 %v4276, %v4272
          %v4397 = vpack.c.b16 %v4281, %v4277
          %v4398 = vpack.c.b16 %v4282, %v4278
          %v4399 = vpack.c.b16 %v4283, %v4279
          %v4400 = vpack.c.b16 %v4284, %v4280
          %v4401 = vpack.c.b16 %v4289, %v4285
          %v4402 = vpack.c.b16 %v4290, %v4286
          %v4403 = vpack.c.b16 %v4291, %v4287
          %v4404 = vpack.c.b16 %v4292, %v4288
          %v4405 = vpack.c.b16 %v4297, %v4293
          %v4406 = vpack.c.b16 %v4298, %v4294
          %v4407 = vpack.c.b16 %v4299, %v4295
          %v4408 = vpack.c.b16 %v4300, %v4296
          %v4409 = vpack.c.b16 %v4305, %v4301
          %v4410 = vpack.c.b16 %v4306, %v4302
          %v4411 = vpack.c.b16 %v4307, %v4303
          %v4412 = vpack.c.b16 %v4308, %v4304
          %v4413 = vpack.c.b16 %v4313, %v4309
          %v4414 = vpack.c.b16 %v4314, %v4310
          %v4415 = vpack.c.b16 %v4315, %v4311
          %v4416 = vpack.c.b16 %v4316, %v4312
          %v4417 = vpack.c.b16 %v4321, %v4317
          %v4418 = vpack.c.b16 %v4322, %v4318
          %v4419 = vpack.c.b16 %v4323, %v4319
          %v4420 = vpack.c.b16 %v4324, %v4320
          %v4421 = vpack.c.b16 %v4329, %v4325
          %v4422 = vpack.c.b16 %v4330, %v4326
          %v4423 = vpack.c.b16 %v4331, %v4327
          %v4424 = vpack.c.b16 %v4332, %v4328
          %v4425 = vpack.c.b16 %v4337, %v4333
          %v4426 = vpack.c.b16 %v4338, %v4334
          %v4427 = vpack.c.b16 %v4339, %v4335
          %v4428 = vpack.c.b16 %v4340, %v4336
          %v4429 = vpack.c.b16 %v4345, %v4341
          %v4430 = vpack.c.b16 %v4346, %v4342
          %v4431 = vpack.c.b16 %v4347, %v4343
          %v4432 = vpack.c.b16 %v4348, %v4344
          %v4433 = vpack.c.b16 %v4353, %v4349
          %v4434 = vpack.c.b16 %v4354, %v4350
          %v4435 = vpack.c.b16 %v4355, %v4351
          %v4436 = vpack.c.b16 %v4356, %v4352
          %v4437 = vpack.c.b16 %v4361, %v4357
          %v4438 = vpack.c.b16 %v4362, %v4358
          %v4439 = vpack.c.b16 %v4363, %v4359
          %v4440 = vpack.c.b16 %v4364, %v4360
          %v4499 = vsel %vm2325, %v4368, 0
          %v4502 = vsel %vm2325, %v4372, 0
          %v4505 = vsel %vm2325, %v4376, 0
          %v4508 = vsel %vm2325, %v4380, 0
          %v4511 = vsel %vm2325, %v4384, 0
          %v4514 = vsel %vm2325, %v4388, 0
          %v4517 = vsel %vm2325, %v4392, 0
          %v4520 = vsel %vm2325, %v4396, 0
          %v4523 = vsel %vm2325, %v4400, 0
          %v4526 = vsel %vm2325, %v4404, 0
          %v4529 = vsel %vm2325, %v4408, 0
          %v4532 = vsel %vm2325, %v4412, 0
          %v4535 = vsel %vm2325, %v4416, 0
          %v4538 = vsel %vm2325, %v4420, 0
          %v4541 = vsel %vm2325, %v4424, 0
          %v4544 = vsel %vm2325, %v4428, 0
          %v4547 = vsel %vm2325, %v4432, 0
          %v4550 = vsel %vm2325, %v4436, 0
          %v4553 = vsel %vm2325, %v4440, 0
          %4555 = vmatprep.subr.bf16.mxu0 %v3661
          %4556 = vmatpush1.bf16.msra.mxu0 %v3660
          %4557 = vmatprep.subr.bf16.mxu0 %v3663
          %4558 = vmatpush1.bf16.msra.mxu0 %v3662
          %4559 = vmatprep.subr.bf16.mxu0 %v3665
          %4560 = vmatpush1.bf16.msra.mxu0 %v3664
          %4561 = vmatprep.subr.bf16.mxu0 %v3667
          %4562 = vmatpush1.bf16.msra.mxu0 %v3666
          %4563 = vmatprep.subr.bf16.mxu0 %v3669
          %4564 = vmatpush1.bf16.msra.mxu0 %v3668
          %4565 = vmatprep.subr.bf16.mxu0 %v3671
          %4566 = vmatpush1.bf16.msra.mxu0 %v3670
          %4567 = vmatprep.subr.bf16.mxu0 %v3673
          %4568 = vmatpush1.bf16.msra.mxu0 %v3672
          %4569 = vmatprep.subr.bf16.mxu0 %v3675
          %4570 = vmatpush1.bf16.msra.mxu0 %v3674
          %4571 = vmatprep.subr.bf16.mxu0 %v3677
          %4572 = vmatpush1.bf16.msra.mxu0 %v3676
          %4573 = vmatprep.subr.bf16.mxu0 %v3679
          %4574 = vmatpush1.bf16.msra.mxu0 %v3678
          %4575 = vmatprep.subr.bf16.mxu0 %v3681
          %4576 = vmatpush1.bf16.msra.mxu0 %v3680
          %4577 = vmatprep.subr.bf16.mxu0 %v3683
          %4578 = vmatpush1.bf16.msra.mxu0 %v3682
          %4579 = vmatprep.subr.bf16.mxu0 %v3685
          %4580 = vmatpush1.bf16.msra.mxu0 %v3684
          %4581 = vmatprep.subr.bf16.mxu0 %v3687
          %4582 = vmatpush1.bf16.msra.mxu0 %v3686
          %4583 = vmatprep.subr.bf16.mxu0 %v3689
          %4584 = vmatpush1.bf16.msra.mxu0 %v3688
          %4585 = vmatprep.subr.bf16.mxu0 %v3691
          %4586 = vmatpush1.bf16.msra.mxu0 %v3690
          %4587 = vmatprep.mubr.bf16.mxu0 %v4366
          %4588 = vmatmul.mubr.bf16.gmra.mrb[0].mxu0 %v4365
          %v4589 = vpop.f32.mrb[0].mxu0
          %v4590 = vadd.f32 %v3949, %v4589
          %v4591 = vpop.f32.mrb[0].mxu0
          %v4592 = vadd.f32 %v3951, %v4591
          %v4593 = vpop.f32.mrb[0].mxu0
          %v4594 = vadd.f32 %v3953, %v4593
          %v4595 = vpop.f32.mrb[0].mxu0
          %v4596 = vadd.f32 %v3955, %v4595
          %4597 = vmatprep.mubr.bf16.mxu0 %v4370
          %4598 = vmatmul.mubr.bf16.gmra.mrb[0].mxu0 %v4369
          %v4599 = vpop.f32.mrb[0].mxu0
          %v4600 = vadd.f32 %v3959, %v4599
          %v4601 = vpop.f32.mrb[0].mxu0
          %v4602 = vadd.f32 %v3961, %v4601
          %v4603 = vpop.f32.mrb[0].mxu0
          %v4604 = vadd.f32 %v3963, %v4603
          %v4605 = vpop.f32.mrb[0].mxu0
          %v4606 = vadd.f32 %v3965, %v4605
          %4607 = vmatprep.mubr.bf16.mxu0 %v4374
          %4608 = vmatmul.mubr.bf16.gmra.mrb[0].mxu0 %v4373
          %v4609 = vpop.f32.mrb[0].mxu0
          %v4610 = vadd.f32 %v3969, %v4609
          %v4611 = vpop.f32.mrb[0].mxu0
          %v4612 = vadd.f32 %v3971, %v4611
          %v4613 = vpop.f32.mrb[0].mxu0
          %v4614 = vadd.f32 %v3973, %v4613
          %v4615 = vpop.f32.mrb[0].mxu0
          %v4616 = vadd.f32 %v3975, %v4615
          %4617 = vmatprep.mubr.bf16.mxu0 %v4378
          %4618 = vmatmul.mubr.bf16.gmra.mrb[0].mxu0 %v4377
          %v4619 = vpop.f32.mrb[0].mxu0
          %v4620 = vadd.f32 %v3979, %v4619
          %v4621 = vpop.f32.mrb[0].mxu0
          %v4622 = vadd.f32 %v3981, %v4621
          %v4623 = vpop.f32.mrb[0].mxu0
          %v4624 = vadd.f32 %v3983, %v4623
          %v4625 = vpop.f32.mrb[0].mxu0
          %v4626 = vadd.f32 %v3985, %v4625
          %4627 = vmatprep.mubr.bf16.mxu0 %v4382
          %4628 = vmatmul.mubr.bf16.gmra.mrb[0].mxu0 %v4381
          %v4629 = vpop.f32.mrb[0].mxu0
          %v4630 = vadd.f32 %v3989, %v4629
          %v4631 = vpop.f32.mrb[0].mxu0
          %v4632 = vadd.f32 %v3991, %v4631
          %v4633 = vpop.f32.mrb[0].mxu0
          %v4634 = vadd.f32 %v3993, %v4633
          %v4635 = vpop.f32.mrb[0].mxu0
          %v4636 = vadd.f32 %v3995, %v4635
          %4637 = vmatprep.mubr.bf16.mxu0 %v4386
          %4638 = vmatmul.mubr.bf16.gmra.mrb[0].mxu0 %v4385
          %v4639 = vpop.f32.mrb[0].mxu0
          %v4640 = vadd.f32 %v3999, %v4639
          %v4641 = vpop.f32.mrb[0].mxu0
          %v4642 = vadd.f32 %v4001, %v4641
          %v4643 = vpop.f32.mrb[0].mxu0
          %v4644 = vadd.f32 %v4003, %v4643
          %v4645 = vpop.f32.mrb[0].mxu0
          %v4646 = vadd.f32 %v4005, %v4645
          %4647 = vmatprep.mubr.bf16.mxu0 %v4390
          %4648 = vmatmul.mubr.bf16.gmra.mrb[0].mxu0 %v4389
          %v4649 = vpop.f32.mrb[0].mxu0
          %v4650 = vadd.f32 %v4009, %v4649
          %v4651 = vpop.f32.mrb[0].mxu0
          %v4652 = vadd.f32 %v4011, %v4651
          %v4653 = vpop.f32.mrb[0].mxu0
          %v4654 = vadd.f32 %v4013, %v4653
          %v4655 = vpop.f32.mrb[0].mxu0
          %v4656 = vadd.f32 %v4015, %v4655
          %4657 = vmatprep.mubr.bf16.mxu0 %v4394
          %4658 = vmatmul.mubr.bf16.gmra.mrb[0].mxu0 %v4393
          %v4659 = vpop.f32.mrb[0].mxu0
          %v4660 = vadd.f32 %v4019, %v4659
          %v4661 = vpop.f32.mrb[0].mxu0
          %v4662 = vadd.f32 %v4021, %v4661
          %v4663 = vpop.f32.mrb[0].mxu0
          %v4664 = vadd.f32 %v4023, %v4663
          %v4665 = vpop.f32.mrb[0].mxu0
          %v4666 = vadd.f32 %v4025, %v4665
          %4667 = vmatprep.mubr.bf16.mxu0 %v4398
          %4668 = vmatmul.mubr.bf16.gmra.mrb[0].mxu0 %v4397
          %v4669 = vpop.f32.mrb[0].mxu0
          %v4670 = vadd.f32 %v4029, %v4669
          %v4671 = vpop.f32.mrb[0].mxu0
          %v4672 = vadd.f32 %v4031, %v4671
          %v4673 = vpop.f32.mrb[0].mxu0
          %v4674 = vadd.f32 %v4033, %v4673
          %v4675 = vpop.f32.mrb[0].mxu0
          %v4676 = vadd.f32 %v4035, %v4675
          %4677 = vmatprep.mubr.bf16.mxu0 %v4402
          %4678 = vmatmul.mubr.bf16.gmra.mrb[0].mxu0 %v4401
          %v4679 = vpop.f32.mrb[0].mxu0
          %v4680 = vadd.f32 %v4039, %v4679
          %v4681 = vpop.f32.mrb[0].mxu0
          %v4682 = vadd.f32 %v4041, %v4681
          %v4683 = vpop.f32.mrb[0].mxu0
          %v4684 = vadd.f32 %v4043, %v4683
          %v4685 = vpop.f32.mrb[0].mxu0
          %v4686 = vadd.f32 %v4045, %v4685
          %4687 = vmatprep.mubr.bf16.mxu0 %v4406
          %4688 = vmatmul.mubr.bf16.gmra.mrb[0].mxu0 %v4405
          %v4689 = vpop.f32.mrb[0].mxu0
          %v4690 = vadd.f32 %v4049, %v4689
          %v4691 = vpop.f32.mrb[0].mxu0
          %v4692 = vadd.f32 %v4051, %v4691
          %v4693 = vpop.f32.mrb[0].mxu0
          %v4694 = vadd.f32 %v4053, %v4693
          %v4695 = vpop.f32.mrb[0].mxu0
          %v4696 = vadd.f32 %v4055, %v4695
          %4697 = vmatprep.mubr.bf16.mxu0 %v4410
          %4698 = vmatmul.mubr.bf16.gmra.mrb[0].mxu0 %v4409
          %v4699 = vpop.f32.mrb[0].mxu0
          %v4700 = vadd.f32 %v4059, %v4699
          %v4701 = vpop.f32.mrb[0].mxu0
          %v4702 = vadd.f32 %v4061, %v4701
          %v4703 = vpop.f32.mrb[0].mxu0
          %v4704 = vadd.f32 %v4063, %v4703
          %v4705 = vpop.f32.mrb[0].mxu0
          %v4706 = vadd.f32 %v4065, %v4705
          %4707 = vmatprep.mubr.bf16.mxu0 %v4414
          %4708 = vmatmul.mubr.bf16.gmra.mrb[0].mxu0 %v4413
          %v4709 = vpop.f32.mrb[0].mxu0
          %v4710 = vadd.f32 %v4069, %v4709
          %v4711 = vpop.f32.mrb[0].mxu0
          %v4712 = vadd.f32 %v4071, %v4711
          %v4713 = vpop.f32.mrb[0].mxu0
          %v4714 = vadd.f32 %v4073, %v4713
          %v4715 = vpop.f32.mrb[0].mxu0
          %v4716 = vadd.f32 %v4075, %v4715
          %4717 = vmatprep.mubr.bf16.mxu0 %v4418
          %4718 = vmatmul.mubr.bf16.gmra.mrb[0].mxu0 %v4417
          %v4719 = vpop.f32.mrb[0].mxu0
          %v4720 = vadd.f32 %v4079, %v4719
          %v4721 = vpop.f32.mrb[0].mxu0
          %v4722 = vadd.f32 %v4081, %v4721
          %v4723 = vpop.f32.mrb[0].mxu0
          %v4724 = vadd.f32 %v4083, %v4723
          %v4725 = vpop.f32.mrb[0].mxu0
          %v4726 = vadd.f32 %v4085, %v4725
          %4727 = vmatprep.mubr.bf16.mxu0 %v4422
          %4728 = vmatmul.mubr.bf16.gmra.mrb[0].mxu0 %v4421
          %v4729 = vpop.f32.mrb[0].mxu0
          %v4730 = vadd.f32 %v4089, %v4729
          %v4731 = vpop.f32.mrb[0].mxu0
          %v4732 = vadd.f32 %v4091, %v4731
          %v4733 = vpop.f32.mrb[0].mxu0
          %v4734 = vadd.f32 %v4093, %v4733
          %v4735 = vpop.f32.mrb[0].mxu0
          %v4736 = vadd.f32 %v4095, %v4735
          %4737 = vmatprep.mubr.bf16.mxu0 %v4426
          %4738 = vmatmul.mubr.bf16.gmra.mrb[0].mxu0 %v4425
          %v4739 = vpop.f32.mrb[0].mxu0
          %v4740 = vadd.f32 %v4099, %v4739
          %v4741 = vpop.f32.mrb[0].mxu0
          %v4742 = vadd.f32 %v4101, %v4741
          %v4743 = vpop.f32.mrb[0].mxu0
          %v4744 = vadd.f32 %v4103, %v4743
          %v4745 = vpop.f32.mrb[0].mxu0
          %v4746 = vadd.f32 %v4105, %v4745
          %4747 = vmatprep.mubr.bf16.mxu0 %v4430
          %4748 = vmatmul.mubr.bf16.gmra.mrb[0].mxu0 %v4429
          %v4749 = vpop.f32.mrb[0].mxu0
          %v4750 = vadd.f32 %v4109, %v4749
          %v4751 = vpop.f32.mrb[0].mxu0
          %v4752 = vadd.f32 %v4111, %v4751
          %v4753 = vpop.f32.mrb[0].mxu0
          %v4754 = vadd.f32 %v4113, %v4753
          %v4755 = vpop.f32.mrb[0].mxu0
          %v4756 = vadd.f32 %v4115, %v4755
          %4757 = vmatprep.mubr.bf16.mxu0 %v4434
          %4758 = vmatmul.mubr.bf16.gmra.mrb[0].mxu0 %v4433
          %v4759 = vpop.f32.mrb[0].mxu0
          %v4760 = vadd.f32 %v4119, %v4759
          %v4761 = vpop.f32.mrb[0].mxu0
          %v4762 = vadd.f32 %v4121, %v4761
          %v4763 = vpop.f32.mrb[0].mxu0
          %v4764 = vadd.f32 %v4123, %v4763
          %v4765 = vpop.f32.mrb[0].mxu0
          %v4766 = vadd.f32 %v4125, %v4765
          %4767 = vmatprep.mubr.bf16.mxu0 %v4438
          %4768 = vmatmul.mubr.bf16.gmra.mrb[0].mxu0 %v4437
          %v4769 = vpop.f32.mrb[0].mxu0
          %v4770 = vadd.f32 %v4129, %v4769
          %v4771 = vpop.f32.mrb[0].mxu0
          %v4772 = vadd.f32 %v4131, %v4771
          %v4773 = vpop.f32.mrb[0].mxu0
          %v4774 = vadd.f32 %v4133, %v4773
          %v4775 = vpop.f32.mrb[0].mxu0
          %v4776 = vadd.f32 %v4135, %v4775
          %4777 = vdwg.mxu0
          %4778 = vmatprep.subr.bf16.mxu0 %v3693
          %4779 = vmatpush1.bf16.msra.mxu0 %v3692
          %4780 = vmatprep.subr.bf16.mxu0 %v3695
          %4781 = vmatpush1.bf16.msra.mxu0 %v3694
          %4782 = vmatprep.subr.bf16.mxu0 %v3697
          %4783 = vmatpush1.bf16.msra.mxu0 %v3696
          %4784 = vmatprep.subr.bf16.mxu0 %v3699
          %4785 = vmatpush1.bf16.msra.mxu0 %v3698
          %4786 = vmatprep.subr.bf16.mxu0 %v3701
          %4787 = vmatpush1.bf16.msra.mxu0 %v3700
          %4788 = vmatprep.subr.bf16.mxu0 %v3703
          %4789 = vmatpush1.bf16.msra.mxu0 %v3702
          %4790 = vmatprep.subr.bf16.mxu0 %v3705
          %4791 = vmatpush1.bf16.msra.mxu0 %v3704
          %4792 = vmatprep.subr.bf16.mxu0 %v3707
          %4793 = vmatpush1.bf16.msra.mxu0 %v3706
          %4794 = vmatprep.subr.bf16.mxu0 %v3709
          %4795 = vmatpush1.bf16.msra.mxu0 %v3708
          %4796 = vmatprep.subr.bf16.mxu0 0
          %4797 = vmatpush1.bf16.msra.mxu0 0
          %4798 = vmatprep.subr.bf16.mxu0 0
          %4799 = vmatpush1.bf16.msra.mxu0 0
          %4800 = vmatprep.subr.bf16.mxu0 0
          %4801 = vmatpush1.bf16.msra.mxu0 0
          %4802 = vmatprep.subr.bf16.mxu0 0
          %4803 = vmatpush1.bf16.msra.mxu0 0
          %4804 = vmatprep.subr.bf16.mxu0 0
          %4805 = vmatpush1.bf16.msra.mxu0 0
          %4806 = vmatprep.subr.bf16.mxu0 0
          %4807 = vmatpush1.bf16.msra.mxu0 0
          %4808 = vmatprep.subr.bf16.mxu0 0
          %4809 = vmatpush1.bf16.msra.mxu0 0
          %4810 = vmatprep.mubr.bf16.mxu0 %v4499
          %4811 = vmatmul.mubr.bf16.gmra.mrb[0].mxu0 %v4367
          %v4812 = vpop.f32.mrb[0].mxu0
          %v4813 = vadd.f32 %v4590, %v4812
          %v4814 = vpop.f32.mrb[0].mxu0
          %v4815 = vadd.f32 %v4592, %v4814
          %v4816 = vpop.f32.mrb[0].mxu0
          %v4817 = vadd.f32 %v4594, %v4816
          %v4818 = vpop.f32.mrb[0].mxu0
          %v4819 = vadd.f32 %v4596, %v4818
          %4820 = vmatprep.mubr.bf16.mxu0 %v4502
          %4821 = vmatmul.mubr.bf16.gmra.mrb[0].mxu0 %v4371
          %v4822 = vpop.f32.mrb[0].mxu0
          %v4823 = vadd.f32 %v4600, %v4822
          %v4824 = vpop.f32.mrb[0].mxu0
          %v4825 = vadd.f32 %v4602, %v4824
          %v4826 = vpop.f32.mrb[0].mxu0
          %v4827 = vadd.f32 %v4604, %v4826
          %v4828 = vpop.f32.mrb[0].mxu0
          %v4829 = vadd.f32 %v4606, %v4828
          %4830 = vmatprep.mubr.bf16.mxu0 %v4505
          %4831 = vmatmul.mubr.bf16.gmra.mrb[0].mxu0 %v4375
          %v4832 = vpop.f32.mrb[0].mxu0
          %v4833 = vadd.f32 %v4610, %v4832
          %v4834 = vpop.f32.mrb[0].mxu0
          %v4835 = vadd.f32 %v4612, %v4834
          %v4836 = vpop.f32.mrb[0].mxu0
          %v4837 = vadd.f32 %v4614, %v4836
          %v4838 = vpop.f32.mrb[0].mxu0
          %v4839 = vadd.f32 %v4616, %v4838
          %4840 = vmatprep.mubr.bf16.mxu0 %v4508
          %4841 = vmatmul.mubr.bf16.gmra.mrb[0].mxu0 %v4379
          %v4842 = vpop.f32.mrb[0].mxu0
          %v4843 = vadd.f32 %v4620, %v4842
          %v4844 = vpop.f32.mrb[0].mxu0
          %v4845 = vadd.f32 %v4622, %v4844
          %v4846 = vpop.f32.mrb[0].mxu0
          %v4847 = vadd.f32 %v4624, %v4846
          %v4848 = vpop.f32.mrb[0].mxu0
          %v4849 = vadd.f32 %v4626, %v4848
          %4850 = vmatprep.mubr.bf16.mxu0 %v4511
          %4851 = vmatmul.mubr.bf16.gmra.mrb[0].mxu0 %v4383
          %v4852 = vpop.f32.mrb[0].mxu0
          %v4853 = vadd.f32 %v4630, %v4852
          %v4854 = vpop.f32.mrb[0].mxu0
          %v4855 = vadd.f32 %v4632, %v4854
          %v4856 = vpop.f32.mrb[0].mxu0
          %v4857 = vadd.f32 %v4634, %v4856
          %v4858 = vpop.f32.mrb[0].mxu0
          %v4859 = vadd.f32 %v4636, %v4858
          %4860 = vmatprep.mubr.bf16.mxu0 %v4514
          %4861 = vmatmul.mubr.bf16.gmra.mrb[0].mxu0 %v4387
          %v4862 = vpop.f32.mrb[0].mxu0
          %v4863 = vadd.f32 %v4640, %v4862
          %v4864 = vpop.f32.mrb[0].mxu0
          %v4865 = vadd.f32 %v4642, %v4864
          %v4866 = vpop.f32.mrb[0].mxu0
          %v4867 = vadd.f32 %v4644, %v4866
          %v4868 = vpop.f32.mrb[0].mxu0
          %v4869 = vadd.f32 %v4646, %v4868
          %4870 = vmatprep.mubr.bf16.mxu0 %v4517
          %4871 = vmatmul.mubr.bf16.gmra.mrb[0].mxu0 %v4391
          %v4872 = vpop.f32.mrb[0].mxu0
          %v4873 = vadd.f32 %v4650, %v4872
          %v4874 = vpop.f32.mrb[0].mxu0
          %v4875 = vadd.f32 %v4652, %v4874
          %v4876 = vpop.f32.mrb[0].mxu0
          %v4877 = vadd.f32 %v4654, %v4876
          %v4878 = vpop.f32.mrb[0].mxu0
          %v4879 = vadd.f32 %v4656, %v4878
          %4880 = vmatprep.mubr.bf16.mxu0 %v4520
          %4881 = vmatmul.mubr.bf16.gmra.mrb[0].mxu0 %v4395
          %v4882 = vpop.f32.mrb[0].mxu0
          %v4883 = vadd.f32 %v4660, %v4882
          %v4884 = vpop.f32.mrb[0].mxu0
          %v4885 = vadd.f32 %v4662, %v4884
          %v4886 = vpop.f32.mrb[0].mxu0
          %v4887 = vadd.f32 %v4664, %v4886
          %v4888 = vpop.f32.mrb[0].mxu0
          %v4889 = vadd.f32 %v4666, %v4888
          %4890 = vmatprep.mubr.bf16.mxu0 %v4523
          %4891 = vmatmul.mubr.bf16.gmra.mrb[0].mxu0 %v4399
          %v4892 = vpop.f32.mrb[0].mxu0
          %v4893 = vadd.f32 %v4670, %v4892
          %v4894 = vpop.f32.mrb[0].mxu0
          %v4895 = vadd.f32 %v4672, %v4894
          %v4896 = vpop.f32.mrb[0].mxu0
          %v4897 = vadd.f32 %v4674, %v4896
          %v4898 = vpop.f32.mrb[0].mxu0
          %v4899 = vadd.f32 %v4676, %v4898
          %4900 = vmatprep.mubr.bf16.mxu0 %v4526
          %4901 = vmatmul.mubr.bf16.gmra.mrb[0].mxu0 %v4403
          %v4902 = vpop.f32.mrb[0].mxu0
          %v4903 = vadd.f32 %v4680, %v4902
          %v4904 = vpop.f32.mrb[0].mxu0
          %v4905 = vadd.f32 %v4682, %v4904
          %v4906 = vpop.f32.mrb[0].mxu0
          %v4907 = vadd.f32 %v4684, %v4906
          %v4908 = vpop.f32.mrb[0].mxu0
          %v4909 = vadd.f32 %v4686, %v4908
          %4910 = vmatprep.mubr.bf16.mxu0 %v4529
          %4911 = vmatmul.mubr.bf16.gmra.mrb[0].mxu0 %v4407
          %v4912 = vpop.f32.mrb[0].mxu0
          %v4913 = vadd.f32 %v4690, %v4912
          %v4914 = vpop.f32.mrb[0].mxu0
          %v4915 = vadd.f32 %v4692, %v4914
          %v4916 = vpop.f32.mrb[0].mxu0
          %v4917 = vadd.f32 %v4694, %v4916
          %v4918 = vpop.f32.mrb[0].mxu0
          %v4919 = vadd.f32 %v4696, %v4918
          %4920 = vmatprep.mubr.bf16.mxu0 %v4532
          %4921 = vmatmul.mubr.bf16.gmra.mrb[0].mxu0 %v4411
          %v4922 = vpop.f32.mrb[0].mxu0
          %v4923 = vadd.f32 %v4700, %v4922
          %v4924 = vpop.f32.mrb[0].mxu0
          %v4925 = vadd.f32 %v4702, %v4924
          %v4926 = vpop.f32.mrb[0].mxu0
          %v4927 = vadd.f32 %v4704, %v4926
          %v4928 = vpop.f32.mrb[0].mxu0
          %v4929 = vadd.f32 %v4706, %v4928
          %4930 = vmatprep.mubr.bf16.mxu0 %v4535
          %4931 = vmatmul.mubr.bf16.gmra.mrb[0].mxu0 %v4415
          %v4932 = vpop.f32.mrb[0].mxu0
          %v4933 = vadd.f32 %v4710, %v4932
          %v4934 = vpop.f32.mrb[0].mxu0
          %v4935 = vadd.f32 %v4712, %v4934
          %v4936 = vpop.f32.mrb[0].mxu0
          %v4937 = vadd.f32 %v4714, %v4936
          %v4938 = vpop.f32.mrb[0].mxu0
          %v4939 = vadd.f32 %v4716, %v4938
          %4940 = vmatprep.mubr.bf16.mxu0 %v4538
          %4941 = vmatmul.mubr.bf16.gmra.mrb[0].mxu0 %v4419
          %v4942 = vpop.f32.mrb[0].mxu0
          %v4943 = vadd.f32 %v4720, %v4942
          %v4944 = vpop.f32.mrb[0].mxu0
          %v4945 = vadd.f32 %v4722, %v4944
          %v4946 = vpop.f32.mrb[0].mxu0
          %v4947 = vadd.f32 %v4724, %v4946
          %v4948 = vpop.f32.mrb[0].mxu0
          %v4949 = vadd.f32 %v4726, %v4948
          %4950 = vmatprep.mubr.bf16.mxu0 %v4541
          %4951 = vmatmul.mubr.bf16.gmra.mrb[0].mxu0 %v4423
          %v4952 = vpop.f32.mrb[0].mxu0
          %v4953 = vadd.f32 %v4730, %v4952
          %v4954 = vpop.f32.mrb[0].mxu0
          %v4955 = vadd.f32 %v4732, %v4954
          %v4956 = vpop.f32.mrb[0].mxu0
          %v4957 = vadd.f32 %v4734, %v4956
          %v4958 = vpop.f32.mrb[0].mxu0
          %v4959 = vadd.f32 %v4736, %v4958
          %4960 = vmatprep.mubr.bf16.mxu0 %v4544
          %4961 = vmatmul.mubr.bf16.gmra.mrb[0].mxu0 %v4427
          %v4962 = vpop.f32.mrb[0].mxu0
          %v4963 = vadd.f32 %v4740, %v4962
          %v4964 = vpop.f32.mrb[0].mxu0
          %v4965 = vadd.f32 %v4742, %v4964
          %v4966 = vpop.f32.mrb[0].mxu0
          %v4967 = vadd.f32 %v4744, %v4966
          %v4968 = vpop.f32.mrb[0].mxu0
          %v4969 = vadd.f32 %v4746, %v4968
          %4970 = vmatprep.mubr.bf16.mxu0 %v4547
          %4971 = vmatmul.mubr.bf16.gmra.mrb[0].mxu0 %v4431
          %v4972 = vpop.f32.mrb[0].mxu0
          %v4973 = vadd.f32 %v4750, %v4972
          %v4974 = vpop.f32.mrb[0].mxu0
          %v4975 = vadd.f32 %v4752, %v4974
          %v4976 = vpop.f32.mrb[0].mxu0
          %v4977 = vadd.f32 %v4754, %v4976
          %v4978 = vpop.f32.mrb[0].mxu0
          %v4979 = vadd.f32 %v4756, %v4978
          %4980 = vmatprep.mubr.bf16.mxu0 %v4550
          %4981 = vmatmul.mubr.bf16.gmra.mrb[0].mxu0 %v4435
          %v4982 = vpop.f32.mrb[0].mxu0
          %v4983 = vadd.f32 %v4760, %v4982
          %v4984 = vpop.f32.mrb[0].mxu0
          %v4985 = vadd.f32 %v4762, %v4984
          %v4986 = vpop.f32.mrb[0].mxu0
          %v4987 = vadd.f32 %v4764, %v4986
          %v4988 = vpop.f32.mrb[0].mxu0
          %v4989 = vadd.f32 %v4766, %v4988
          %4990 = vmatprep.mubr.bf16.mxu0 %v4553
          %4991 = vmatmul.mubr.bf16.gmra.mrb[0].mxu0 %v4439
          %v4992 = vpop.f32.mrb[0].mxu0
          %v4993 = vadd.f32 %v4770, %v4992
          %v4994 = vpop.f32.mrb[0].mxu0
          %v4995 = vadd.f32 %v4772, %v4994
          %v4996 = vpop.f32.mrb[0].mxu0
          %v4997 = vadd.f32 %v4774, %v4996
          %v4998 = vpop.f32.mrb[0].mxu0
          %v4999 = vadd.f32 %v4776, %v4998
          %5000 = vdwg.mxu0
          %v5001 = vld [vmem:[%s5 + $0x4d0] sm:$0xff]
          %v5002 = vld [vmem:[%s5 + $0x4d8] sm:$0xff]
          %v5003 = vld [vmem:[%s5 + $0x4e0] sm:$0xff]
          %v5004 = vld [vmem:[%s5 + $0x4e8] sm:$0xff]
          %v5005 = vld [vmem:[%s5 + $0x4f0] sm:$0xff]
          %v5006 = vld [vmem:[%s5 + $0x4f8] sm:$0xff]
          %v5007 = vld [vmem:[%s5 + $0x500] sm:$0xff]
          %v5008 = vld [vmem:[%s5 + $0x508] sm:$0xff]
          %v5009 = vld [vmem:[%s5 + $0x510] sm:$0xff]
          %v5010 = vld [vmem:[%s5 + $0x518] sm:$0xff]
          %v5011 = vld [vmem:[%s5 + $0x520] sm:$0xff]
          %v5012 = vld [vmem:[%s5 + $0x528] sm:$0xff]
          %v5013 = vld [vmem:[%s5 + $0x530] sm:$0xff]
          %v5014 = vld [vmem:[%s5 + $0x538] sm:$0xff]
          %v5015 = vld [vmem:[%s5 + $0x540] sm:$0xff]
          %v5016 = vld [vmem:[%s5 + $0x548] sm:$0xff]
          %v5017 = vld [vmem:[%s5 + $0x550] sm:$0xff]
          %v5018 = vld [vmem:[%s5 + $0x558] sm:$0xff]
          %v5019 = vld [vmem:[%s5 + $0x560] sm:$0xff]
          %v5020 = vld [vmem:[%s5 + $0x568] sm:$0xff]
          %v5021 = vld [vmem:[%s5 + $0x570] sm:$0xff]
          %v5022 = vld [vmem:[%s5 + $0x578] sm:$0xff]
          %v5023 = vld [vmem:[%s5 + $0x580] sm:$0xff]
          %v5024 = vld [vmem:[%s5 + $0x588] sm:$0xff]
          %v5025 = vld [vmem:[%s5 + $0x590] sm:$0xff]
          %v5026 = vld [vmem:[%s5 + $0x598] sm:$0xff]
          %v5027 = vld [vmem:[%s5 + $0x5a0] sm:$0xff]
          %v5028 = vld [vmem:[%s5 + $0x5a8] sm:$0xff]
          %v5029 = vld [vmem:[%s5 + $0x5b0] sm:$0xff]
          %v5030 = vld [vmem:[%s5 + $0x5b8] sm:$0xff]
          %v5031 = vld [vmem:[%s5 + $0x5c0] sm:$0xff]
          %v5032 = vld [vmem:[%s5 + $0x5c8] sm:$0xff]
          %v5033 = vld [vmem:[%s5 + $0x5d0] sm:$0xff]
          %v5034 = vld [vmem:[%s5 + $0x5d8] sm:$0xff]
          %v5035 = vld [vmem:[%s5 + $0x5e0] sm:$0xff]
          %v5036 = vld [vmem:[%s5 + $0x5e8] sm:$0xff]
          %v5037 = vld [vmem:[%s5 + $0x5f0] sm:$0xff]
          %v5038 = vld [vmem:[%s5 + $0x5f8] sm:$0xf]
          %5040 = vset.pattern.permute.xlu0 0
          %5041 = vperm.xlu0 %5040, %v5001
          %v5042 = vpop.permute.xlu0 %5041
          %5045 = vset.pattern.permute.xlu0 0
          %5046 = vperm.xlu0 %5045, %v5002
          %v5047 = vpop.permute.xlu0 %5046
          %5050 = vset.pattern.permute.xlu0 0
          %5051 = vperm.xlu0 %5050, %v5003
          %v5052 = vpop.permute.xlu0 %5051
          %5055 = vset.pattern.permute.xlu0 0
          %5056 = vperm.xlu0 %5055, %v5004
          %v5057 = vpop.permute.xlu0 %5056
          %5060 = vset.pattern.permute.xlu0 0
          %5061 = vperm.xlu0 %5060, %v5005
          %v5062 = vpop.permute.xlu0 %5061
          %5065 = vset.pattern.permute.xlu0 0
          %5066 = vperm.xlu0 %5065, %v5006
          %v5067 = vpop.permute.xlu0 %5066
          %5070 = vset.pattern.permute.xlu0 0
          %5071 = vperm.xlu0 %5070, %v5007
          %v5072 = vpop.permute.xlu0 %5071
          %5075 = vset.pattern.permute.xlu0 0
          %5076 = vperm.xlu0 %5075, %v5008
          %v5077 = vpop.permute.xlu0 %5076
          %5080 = vset.pattern.permute.xlu0 0
          %5081 = vperm.xlu0 %5080, %v5009
          %v5082 = vpop.permute.xlu0 %5081
          %5085 = vset.pattern.permute.xlu0 0
          %5086 = vperm.xlu0 %5085, %v5010
          %v5087 = vpop.permute.xlu0 %5086
          %5090 = vset.pattern.permute.xlu0 0
          %5091 = vperm.xlu0 %5090, %v5011
          %v5092 = vpop.permute.xlu0 %5091
          %5095 = vset.pattern.permute.xlu0 0
          %5096 = vperm.xlu0 %5095, %v5012
          %v5097 = vpop.permute.xlu0 %5096
          %5100 = vset.pattern.permute.xlu0 0
          %5101 = vperm.xlu0 %5100, %v5013
          %v5102 = vpop.permute.xlu0 %5101
          %5105 = vset.pattern.permute.xlu0 0
          %5106 = vperm.xlu0 %5105, %v5014
          %v5107 = vpop.permute.xlu0 %5106
          %5110 = vset.pattern.permute.xlu0 0
          %5111 = vperm.xlu0 %5110, %v5015
          %v5112 = vpop.permute.xlu0 %5111
          %5115 = vset.pattern.permute.xlu0 0
          %5116 = vperm.xlu0 %5115, %v5016
          %v5117 = vpop.permute.xlu0 %5116
          %5120 = vset.pattern.permute.xlu0 0
          %5121 = vperm.xlu0 %5120, %v5017
          %v5122 = vpop.permute.xlu0 %5121
          %5125 = vset.pattern.permute.xlu0 0
          %5126 = vperm.xlu0 %5125, %v5018
          %v5127 = vpop.permute.xlu0 %5126
          %5130 = vset.pattern.permute.xlu0 0
          %5131 = vperm.xlu0 %5130, %v5019
          %v5132 = vpop.permute.xlu0 %5131
          %5135 = vset.pattern.permute.xlu0 0
          %5136 = vperm.xlu0 %5135, %v5020
          %v5137 = vpop.permute.xlu0 %5136
          %5140 = vset.pattern.permute.xlu0 0
          %5141 = vperm.xlu0 %5140, %v5021
          %v5142 = vpop.permute.xlu0 %5141
          %5145 = vset.pattern.permute.xlu0 0
          %5146 = vperm.xlu0 %5145, %v5022
          %v5147 = vpop.permute.xlu0 %5146
          %5150 = vset.pattern.permute.xlu0 0
          %5151 = vperm.xlu0 %5150, %v5023
          %v5152 = vpop.permute.xlu0 %5151
          %5155 = vset.pattern.permute.xlu0 0
          %5156 = vperm.xlu0 %5155, %v5024
          %v5157 = vpop.permute.xlu0 %5156
          %5160 = vset.pattern.permute.xlu0 0
          %5161 = vperm.xlu0 %5160, %v5025
          %v5162 = vpop.permute.xlu0 %5161
          %5165 = vset.pattern.permute.xlu0 0
          %5166 = vperm.xlu0 %5165, %v5026
          %v5167 = vpop.permute.xlu0 %5166
          %5170 = vset.pattern.permute.xlu0 0
          %5171 = vperm.xlu0 %5170, %v5027
          %v5172 = vpop.permute.xlu0 %5171
          %5175 = vset.pattern.permute.xlu0 0
          %5176 = vperm.xlu0 %5175, %v5028
          %v5177 = vpop.permute.xlu0 %5176
          %5180 = vset.pattern.permute.xlu0 0
          %5181 = vperm.xlu0 %5180, %v5029
          %v5182 = vpop.permute.xlu0 %5181
          %5185 = vset.pattern.permute.xlu0 0
          %5186 = vperm.xlu0 %5185, %v5030
          %v5187 = vpop.permute.xlu0 %5186
          %5190 = vset.pattern.permute.xlu0 0
          %5191 = vperm.xlu0 %5190, %v5031
          %v5192 = vpop.permute.xlu0 %5191
          %5195 = vset.pattern.permute.xlu0 0
          %5196 = vperm.xlu0 %5195, %v5032
          %v5197 = vpop.permute.xlu0 %5196
          %5200 = vset.pattern.permute.xlu0 0
          %5201 = vperm.xlu0 %5200, %v5033
          %v5202 = vpop.permute.xlu0 %5201
          %5205 = vset.pattern.permute.xlu0 0
          %5206 = vperm.xlu0 %5205, %v5034
          %v5207 = vpop.permute.xlu0 %5206
          %5210 = vset.pattern.permute.xlu0 0
          %5211 = vperm.xlu0 %5210, %v5035
          %v5212 = vpop.permute.xlu0 %5211
          %5215 = vset.pattern.permute.xlu0 0
          %5216 = vperm.xlu0 %5215, %v5036
          %v5217 = vpop.permute.xlu0 %5216
          %5220 = vset.pattern.permute.xlu0 0
          %5221 = vperm.xlu0 %5220, %v5037
          %v5222 = vpop.permute.xlu0 %5221
          %5225 = vset.pattern.permute.xlu0 0
          %5226 = vperm.xlu0 %5225, %v5038
          %v5227 = vpop.permute.xlu0 %5226
          %v5229 = vadd.f32 %v4813, %v5042
          %v5230 = vadd.f32 %v4815, %v5042
          %v5231 = vadd.f32 %v4817, %v5047
          %v5232 = vadd.f32 %v4819, %v5047
          %v5233 = vadd.f32 %v4823, %v5052
          %v5234 = vadd.f32 %v4825, %v5052
          %v5235 = vadd.f32 %v4827, %v5057
          %v5236 = vadd.f32 %v4829, %v5057
          %v5237 = vadd.f32 %v4833, %v5062
          %v5238 = vadd.f32 %v4835, %v5062
          %v5239 = vadd.f32 %v4837, %v5067
          %v5240 = vadd.f32 %v4839, %v5067
          %v5241 = vadd.f32 %v4843, %v5072
          %v5242 = vadd.f32 %v4845, %v5072
          %v5243 = vadd.f32 %v4847, %v5077
          %v5244 = vadd.f32 %v4849, %v5077
          %v5245 = vadd.f32 %v4853, %v5082
          %v5246 = vadd.f32 %v4855, %v5082
          %v5247 = vadd.f32 %v4857, %v5087
          %v5248 = vadd.f32 %v4859, %v5087
          %v5249 = vadd.f32 %v4863, %v5092
          %v5250 = vadd.f32 %v4865, %v5092
          %v5251 = vadd.f32 %v4867, %v5097
          %v5252 = vadd.f32 %v4869, %v5097
          %v5253 = vadd.f32 %v4873, %v5102
          %v5254 = vadd.f32 %v4875, %v5102
          %v5255 = vadd.f32 %v4877, %v5107
          %v5256 = vadd.f32 %v4879, %v5107
          %v5257 = vadd.f32 %v4883, %v5112
          %v5258 = vadd.f32 %v4885, %v5112
          %v5259 = vadd.f32 %v4887, %v5117
          %v5260 = vadd.f32 %v4889, %v5117
          %v5261 = vadd.f32 %v4893, %v5122
          %v5262 = vadd.f32 %v4895, %v5122
          %v5263 = vadd.f32 %v4897, %v5127
          %v5264 = vadd.f32 %v4899, %v5127
          %v5265 = vadd.f32 %v4903, %v5132
          %v5266 = vadd.f32 %v4905, %v5132
          %v5267 = vadd.f32 %v4907, %v5137
          %v5268 = vadd.f32 %v4909, %v5137
          %v5269 = vadd.f32 %v4913, %v5142
          %v5270 = vadd.f32 %v4915, %v5142
          %v5271 = vadd.f32 %v4917, %v5147
          %v5272 = vadd.f32 %v4919, %v5147
          %v5273 = vadd.f32 %v4923, %v5152
          %v5274 = vadd.f32 %v4925, %v5152
          %v5275 = vadd.f32 %v4927, %v5157
          %v5276 = vadd.f32 %v4929, %v5157
          %v5277 = vadd.f32 %v4933, %v5162
          %v5278 = vadd.f32 %v4935, %v5162
          %v5279 = vadd.f32 %v4937, %v5167
          %v5280 = vadd.f32 %v4939, %v5167
          %v5281 = vadd.f32 %v4943, %v5172
          %v5282 = vadd.f32 %v4945, %v5172
          %v5283 = vadd.f32 %v4947, %v5177
          %v5284 = vadd.f32 %v4949, %v5177
          %v5285 = vadd.f32 %v4953, %v5182
          %v5286 = vadd.f32 %v4955, %v5182
          %v5287 = vadd.f32 %v4957, %v5187
          %v5288 = vadd.f32 %v4959, %v5187
          %v5289 = vadd.f32 %v4963, %v5192
          %v5290 = vadd.f32 %v4965, %v5192
          %v5291 = vadd.f32 %v4967, %v5197
          %v5292 = vadd.f32 %v4969, %v5197
          %v5293 = vadd.f32 %v4973, %v5202
          %v5294 = vadd.f32 %v4975, %v5202
          %v5295 = vadd.f32 %v4977, %v5207
          %v5296 = vadd.f32 %v4979, %v5207
          %v5297 = vadd.f32 %v4983, %v5212
          %v5298 = vadd.f32 %v4985, %v5212
          %v5299 = vadd.f32 %v4987, %v5217
          %v5300 = vadd.f32 %v4989, %v5217
          %v5301 = vadd.f32 %v4993, %v5222
          %v5302 = vadd.f32 %v4995, %v5222
          %v5303 = vadd.f32 %v4997, %v5227
          %v5304 = vadd.f32 %v4999, %v5227
          %v5305 = vmax.f32 %v5229, 0.0
          %v5306 = vmax.f32 %v5230, 0.0
          %v5307 = vmax.f32 %v5231, 0.0
          %v5308 = vmax.f32 %v5232, 0.0
          %v5309 = vmax.f32 %v5233, 0.0
          %v5310 = vmax.f32 %v5234, 0.0
          %v5311 = vmax.f32 %v5235, 0.0
          %v5312 = vmax.f32 %v5236, 0.0
          %v5313 = vmax.f32 %v5237, 0.0
          %v5314 = vmax.f32 %v5238, 0.0
          %v5315 = vmax.f32 %v5239, 0.0
          %v5316 = vmax.f32 %v5240, 0.0
          %v5317 = vmax.f32 %v5241, 0.0
          %v5318 = vmax.f32 %v5242, 0.0
          %v5319 = vmax.f32 %v5243, 0.0
          %v5320 = vmax.f32 %v5244, 0.0
          %v5321 = vmax.f32 %v5245, 0.0
          %v5322 = vmax.f32 %v5246, 0.0
          %v5323 = vmax.f32 %v5247, 0.0
          %v5324 = vmax.f32 %v5248, 0.0
          %v5325 = vmax.f32 %v5249, 0.0
          %v5326 = vmax.f32 %v5250, 0.0
          %v5327 = vmax.f32 %v5251, 0.0
          %v5328 = vmax.f32 %v5252, 0.0
          %v5329 = vmax.f32 %v5253, 0.0
          %v5330 = vmax.f32 %v5254, 0.0
          %v5331 = vmax.f32 %v5255, 0.0
          %v5332 = vmax.f32 %v5256, 0.0
          %v5333 = vmax.f32 %v5257, 0.0
          %v5334 = vmax.f32 %v5258, 0.0
          %v5335 = vmax.f32 %v5259, 0.0
          %v5336 = vmax.f32 %v5260, 0.0
          %v5337 = vmax.f32 %v5261, 0.0
          %v5338 = vmax.f32 %v5262, 0.0
          %v5339 = vmax.f32 %v5263, 0.0
          %v5340 = vmax.f32 %v5264, 0.0
          %v5341 = vmax.f32 %v5265, 0.0
          %v5342 = vmax.f32 %v5266, 0.0
          %v5343 = vmax.f32 %v5267, 0.0
          %v5344 = vmax.f32 %v5268, 0.0
          %v5345 = vmax.f32 %v5269, 0.0
          %v5346 = vmax.f32 %v5270, 0.0
          %v5347 = vmax.f32 %v5271, 0.0
          %v5348 = vmax.f32 %v5272, 0.0
          %v5349 = vmax.f32 %v5273, 0.0
          %v5350 = vmax.f32 %v5274, 0.0
          %v5351 = vmax.f32 %v5275, 0.0
          %v5352 = vmax.f32 %v5276, 0.0
          %v5353 = vmax.f32 %v5277, 0.0
          %v5354 = vmax.f32 %v5278, 0.0
          %v5355 = vmax.f32 %v5279, 0.0
          %v5356 = vmax.f32 %v5280, 0.0
          %v5357 = vmax.f32 %v5281, 0.0
          %v5358 = vmax.f32 %v5282, 0.0
          %v5359 = vmax.f32 %v5283, 0.0
          %v5360 = vmax.f32 %v5284, 0.0
          %v5361 = vmax.f32 %v5285, 0.0
          %v5362 = vmax.f32 %v5286, 0.0
          %v5363 = vmax.f32 %v5287, 0.0
          %v5364 = vmax.f32 %v5288, 0.0
          %v5365 = vmax.f32 %v5289, 0.0
          %v5366 = vmax.f32 %v5290, 0.0
          %v5367 = vmax.f32 %v5291, 0.0
          %v5368 = vmax.f32 %v5292, 0.0
          %v5369 = vmax.f32 %v5293, 0.0
          %v5370 = vmax.f32 %v5294, 0.0
          %v5371 = vmax.f32 %v5295, 0.0
          %v5372 = vmax.f32 %v5296, 0.0
          %v5373 = vmax.f32 %v5297, 0.0
          %v5374 = vmax.f32 %v5298, 0.0
          %v5375 = vmax.f32 %v5299, 0.0
          %v5376 = vmax.f32 %v5300, 0.0
          %v5377 = vmax.f32 %v5301, 0.0
          %v5378 = vmax.f32 %v5302, 0.0
          %v5379 = vmax.f32 %v5303, 0.0
          %v5380 = vmax.f32 %v5304, 0.0
          %v5381 = vld [vmem:[%s5 + $0x600] sm:$0xff]
          %v5382 = vld [vmem:[%s5 + $0x608] sm:$0xff]
          %v5383 = vld [vmem:[%s5 + $0x610] sm:$0xff]
          %v5384 = vld [vmem:[%s5 + $0x618] sm:$0xff]
          %v5385 = vld [vmem:[%s5 + $0x620] sm:$0xff]
          %v5386 = vld [vmem:[%s5 + $0x628] sm:$0xff]
          %v5387 = vld [vmem:[%s5 + $0x630] sm:$0xff]
          %v5388 = vld [vmem:[%s5 + $0x638] sm:$0xff]
          %v5389 = vld [vmem:[%s5 + $0x640] sm:$0xff]
          %v5390 = vld [vmem:[%s5 + $0x648] sm:$0xff]
          %v5391 = vld [vmem:[%s5 + $0x650] sm:$0xff]
          %v5392 = vld [vmem:[%s5 + $0x658] sm:$0xff]
          %v5393 = vld [vmem:[%s5 + $0x660] sm:$0xff]
          %v5394 = vld [vmem:[%s5 + $0x668] sm:$0xff]
          %v5395 = vld [vmem:[%s5 + $0x670] sm:$0xff]
          %v5396 = vld [vmem:[%s5 + $0x678] sm:$0xff]
          %v5397 = vld [vmem:[%s5 + $0x680] sm:$0xff]
          %v5398 = vld [vmem:[%s5 + $0x688] sm:$0xff]
          %v5399 = vld [vmem:[%s5 + $0x690] sm:$0xff]
          %v5400 = vld [vmem:[%s5 + $0x698] sm:$0xff]
          %v5401 = vld [vmem:[%s5 + $0x6a0] sm:$0xff]
          %v5402 = vld [vmem:[%s5 + $0x6a8] sm:$0xff]
          %v5403 = vld [vmem:[%s5 + $0x6b0] sm:$0xff]
          %v5404 = vld [vmem:[%s5 + $0x6b8] sm:$0xff]
          %v5405 = vld [vmem:[%s5 + $0x6c0] sm:$0xff]
          %v5406 = vld [vmem:[%s5 + $0x6c8] sm:$0xff]
          %v5407 = vld [vmem:[%s5 + $0x6d0] sm:$0xff]
          %v5408 = vld [vmem:[%s5 + $0x6d8] sm:$0xff]
          %v5409 = vld [vmem:[%s5 + $0x6e0] sm:$0xff]
          %v5410 = vld [vmem:[%s5 + $0x6e8] sm:$0xff]
          %v5411 = vld [vmem:[%s5 + $0x6f0] sm:$0xff]
          %v5412 = vld [vmem:[%s5 + $0x6f8] sm:$0xff]
          %v5413 = vld [vmem:[%s5 + $0x700] sm:$0xff]
          %v5414 = vld [vmem:[%s5 + $0x708] sm:$0xff]
          %v5415 = vld [vmem:[%s5 + $0x710] sm:$0xff]
          %v5416 = vld [vmem:[%s5 + $0x718] sm:$0xff]
          %v5417 = vld [vmem:[%s5 + $0x720] sm:$0xff]
          %v5418 = vld [vmem:[%s5 + $0x728] sm:$0xf]
          %5420 = vset.pattern.permute.xlu0 0
          %5421 = vperm.xlu0 %5420, %v5381
          %v5422 = vpop.permute.xlu0 %5421
          %5425 = vset.pattern.permute.xlu0 0
          %5426 = vperm.xlu0 %5425, %v5382
          %v5427 = vpop.permute.xlu0 %5426
          %5430 = vset.pattern.permute.xlu0 0
          %5431 = vperm.xlu0 %5430, %v5383
          %v5432 = vpop.permute.xlu0 %5431
          %5435 = vset.pattern.permute.xlu0 0
          %5436 = vperm.xlu0 %5435, %v5384
          %v5437 = vpop.permute.xlu0 %5436
          %5440 = vset.pattern.permute.xlu0 0
          %5441 = vperm.xlu0 %5440, %v5385
          %v5442 = vpop.permute.xlu0 %5441
          %5445 = vset.pattern.permute.xlu0 0
          %5446 = vperm.xlu0 %5445, %v5386
          %v5447 = vpop.permute.xlu0 %5446
          %5450 = vset.pattern.permute.xlu0 0
          %5451 = vperm.xlu0 %5450, %v5387
          %v5452 = vpop.permute.xlu0 %5451
          %5455 = vset.pattern.permute.xlu0 0
          %5456 = vperm.xlu0 %5455, %v5388
          %v5457 = vpop.permute.xlu0 %5456
          %5460 = vset.pattern.permute.xlu0 0
          %5461 = vperm.xlu0 %5460, %v5389
          %v5462 = vpop.permute.xlu0 %5461
          %5465 = vset.pattern.permute.xlu0 0
          %5466 = vperm.xlu0 %5465, %v5390
          %v5467 = vpop.permute.xlu0 %5466
          %5470 = vset.pattern.permute.xlu0 0
          %5471 = vperm.xlu0 %5470, %v5391
          %v5472 = vpop.permute.xlu0 %5471
          %5475 = vset.pattern.permute.xlu0 0
          %5476 = vperm.xlu0 %5475, %v5392
          %v5477 = vpop.permute.xlu0 %5476
          %5480 = vset.pattern.permute.xlu0 0
          %5481 = vperm.xlu0 %5480, %v5393
          %v5482 = vpop.permute.xlu0 %5481
          %5485 = vset.pattern.permute.xlu0 0
          %5486 = vperm.xlu0 %5485, %v5394
          %v5487 = vpop.permute.xlu0 %5486
          %5490 = vset.pattern.permute.xlu0 0
          %5491 = vperm.xlu0 %5490, %v5395
          %v5492 = vpop.permute.xlu0 %5491
          %5495 = vset.pattern.permute.xlu0 0
          %5496 = vperm.xlu0 %5495, %v5396
          %v5497 = vpop.permute.xlu0 %5496
          %5500 = vset.pattern.permute.xlu0 0
          %5501 = vperm.xlu0 %5500, %v5397
          %v5502 = vpop.permute.xlu0 %5501
          %5505 = vset.pattern.permute.xlu0 0
          %5506 = vperm.xlu0 %5505, %v5398
          %v5507 = vpop.permute.xlu0 %5506
          %5510 = vset.pattern.permute.xlu0 0
          %5511 = vperm.xlu0 %5510, %v5399
          %v5512 = vpop.permute.xlu0 %5511
          %5515 = vset.pattern.permute.xlu0 0
          %5516 = vperm.xlu0 %5515, %v5400
          %v5517 = vpop.permute.xlu0 %5516
          %5520 = vset.pattern.permute.xlu0 0
          %5521 = vperm.xlu0 %5520, %v5401
          %v5522 = vpop.permute.xlu0 %5521
          %5525 = vset.pattern.permute.xlu0 0
          %5526 = vperm.xlu0 %5525, %v5402
          %v5527 = vpop.permute.xlu0 %5526
          %5530 = vset.pattern.permute.xlu0 0
          %5531 = vperm.xlu0 %5530, %v5403
          %v5532 = vpop.permute.xlu0 %5531
          %5535 = vset.pattern.permute.xlu0 0
          %5536 = vperm.xlu0 %5535, %v5404
          %v5537 = vpop.permute.xlu0 %5536
          %5540 = vset.pattern.permute.xlu0 0
          %5541 = vperm.xlu0 %5540, %v5405
          %v5542 = vpop.permute.xlu0 %5541
          %5545 = vset.pattern.permute.xlu0 0
          %5546 = vperm.xlu0 %5545, %v5406
          %v5547 = vpop.permute.xlu0 %5546
          %5550 = vset.pattern.permute.xlu0 0
          %5551 = vperm.xlu0 %5550, %v5407
          %v5552 = vpop.permute.xlu0 %5551
          %5555 = vset.pattern.permute.xlu0 0
          %5556 = vperm.xlu0 %5555, %v5408
          %v5557 = vpop.permute.xlu0 %5556
          %5560 = vset.pattern.permute.xlu0 0
          %5561 = vperm.xlu0 %5560, %v5409
          %v5562 = vpop.permute.xlu0 %5561
          %5565 = vset.pattern.permute.xlu0 0
          %5566 = vperm.xlu0 %5565, %v5410
          %v5567 = vpop.permute.xlu0 %5566
          %5570 = vset.pattern.permute.xlu0 0
          %5571 = vperm.xlu0 %5570, %v5411
          %v5572 = vpop.permute.xlu0 %5571
          %5575 = vset.pattern.permute.xlu0 0
          %5576 = vperm.xlu0 %5575, %v5412
          %v5577 = vpop.permute.xlu0 %5576
          %5580 = vset.pattern.permute.xlu0 0
          %5581 = vperm.xlu0 %5580, %v5413
          %v5582 = vpop.permute.xlu0 %5581
          %5585 = vset.pattern.permute.xlu0 0
          %5586 = vperm.xlu0 %5585, %v5414
          %v5587 = vpop.permute.xlu0 %5586
          %5590 = vset.pattern.permute.xlu0 0
          %5591 = vperm.xlu0 %5590, %v5415
          %v5592 = vpop.permute.xlu0 %5591
          %5595 = vset.pattern.permute.xlu0 0
          %5596 = vperm.xlu0 %5595, %v5416
          %v5597 = vpop.permute.xlu0 %5596
          %5600 = vset.pattern.permute.xlu0 0
          %5601 = vperm.xlu0 %5600, %v5417
          %v5602 = vpop.permute.xlu0 %5601
          %5605 = vset.pattern.permute.xlu0 0
          %5606 = vperm.xlu0 %5605, %v5418
          %v5607 = vpop.permute.xlu0 %5606
          %v5609 = vmul.f32 %v5305, %v5422
          %v5610 = vmul.f32 %v5306, %v5422
          %v5611 = vmul.f32 %v5307, %v5427
          %v5612 = vmul.f32 %v5308, %v5427
          %v5613 = vmul.f32 %v5309, %v5432
          %v5614 = vmul.f32 %v5310, %v5432
          %v5615 = vmul.f32 %v5311, %v5437
          %v5616 = vmul.f32 %v5312, %v5437
          %v5617 = vmul.f32 %v5313, %v5442
          %v5618 = vmul.f32 %v5314, %v5442
          %v5619 = vmul.f32 %v5315, %v5447
          %v5620 = vmul.f32 %v5316, %v5447
          %v5621 = vmul.f32 %v5317, %v5452
          %v5622 = vmul.f32 %v5318, %v5452
          %v5623 = vmul.f32 %v5319, %v5457
          %v5624 = vmul.f32 %v5320, %v5457
          %v5625 = vmul.f32 %v5321, %v5462
          %v5626 = vmul.f32 %v5322, %v5462
          %v5627 = vmul.f32 %v5323, %v5467
          %v5628 = vmul.f32 %v5324, %v5467
          %v5629 = vmul.f32 %v5325, %v5472
          %v5630 = vmul.f32 %v5326, %v5472
          %v5631 = vmul.f32 %v5327, %v5477
          %v5632 = vmul.f32 %v5328, %v5477
          %v5633 = vmul.f32 %v5329, %v5482
          %v5634 = vmul.f32 %v5330, %v5482
          %v5635 = vmul.f32 %v5331, %v5487
          %v5636 = vmul.f32 %v5332, %v5487
          %v5637 = vmul.f32 %v5333, %v5492
          %v5638 = vmul.f32 %v5334, %v5492
          %v5639 = vmul.f32 %v5335, %v5497
          %v5640 = vmul.f32 %v5336, %v5497
          %v5641 = vmul.f32 %v5337, %v5502
          %v5642 = vmul.f32 %v5338, %v5502
          %v5643 = vmul.f32 %v5339, %v5507
          %v5644 = vmul.f32 %v5340, %v5507
          %v5645 = vmul.f32 %v5341, %v5512
          %v5646 = vmul.f32 %v5342, %v5512
          %v5647 = vmul.f32 %v5343, %v5517
          %v5648 = vmul.f32 %v5344, %v5517
          %v5649 = vmul.f32 %v5345, %v5522
          %v5650 = vmul.f32 %v5346, %v5522
          %v5651 = vmul.f32 %v5347, %v5527
          %v5652 = vmul.f32 %v5348, %v5527
          %v5653 = vmul.f32 %v5349, %v5532
          %v5654 = vmul.f32 %v5350, %v5532
          %v5655 = vmul.f32 %v5351, %v5537
          %v5656 = vmul.f32 %v5352, %v5537
          %v5657 = vmul.f32 %v5353, %v5542
          %v5658 = vmul.f32 %v5354, %v5542
          %v5659 = vmul.f32 %v5355, %v5547
          %v5660 = vmul.f32 %v5356, %v5547
          %v5661 = vmul.f32 %v5357, %v5552
          %v5662 = vmul.f32 %v5358, %v5552
          %v5663 = vmul.f32 %v5359, %v5557
          %v5664 = vmul.f32 %v5360, %v5557
          %v5665 = vmul.f32 %v5361, %v5562
          %v5666 = vmul.f32 %v5362, %v5562
          %v5667 = vmul.f32 %v5363, %v5567
          %v5668 = vmul.f32 %v5364, %v5567
          %v5669 = vmul.f32 %v5365, %v5572
          %v5670 = vmul.f32 %v5366, %v5572
          %v5671 = vmul.f32 %v5367, %v5577
          %v5672 = vmul.f32 %v5368, %v5577
          %v5673 = vmul.f32 %v5369, %v5582
          %v5674 = vmul.f32 %v5370, %v5582
          %v5675 = vmul.f32 %v5371, %v5587
          %v5676 = vmul.f32 %v5372, %v5587
          %v5677 = vmul.f32 %v5373, %v5592
          %v5678 = vmul.f32 %v5374, %v5592
          %v5679 = vmul.f32 %v5375, %v5597
          %v5680 = vmul.f32 %v5376, %v5597
          %v5681 = vmul.f32 %v5377, %v5602
          %v5682 = vmul.f32 %v5378, %v5602
          %v5683 = vmul.f32 %v5379, %v5607
          %v5684 = vmul.f32 %v5380, %v5607
          %v5685 = vadd.f32 %v5609, %v5611
          %v5686 = vadd.f32 %v5685, %v5613
          %v5687 = vadd.f32 %v5686, %v5615
          %v5688 = vadd.f32 %v5687, %v5617
          %v5689 = vadd.f32 %v5688, %v5619
          %v5690 = vadd.f32 %v5689, %v5621
          %v5691 = vadd.f32 %v5690, %v5623
          %v5692 = vadd.f32 %v5691, %v5625
          %v5693 = vadd.f32 %v5692, %v5627
          %v5694 = vadd.f32 %v5693, %v5629
          %v5695 = vadd.f32 %v5694, %v5631
          %v5696 = vadd.f32 %v5695, %v5633
          %v5697 = vadd.f32 %v5696, %v5635
          %v5698 = vadd.f32 %v5697, %v5637
          %v5699 = vadd.f32 %v5698, %v5639
          %v5700 = vadd.f32 %v5699, %v5641
          %v5701 = vadd.f32 %v5700, %v5643
          %v5702 = vadd.f32 %v5701, %v5645
          %v5703 = vadd.f32 %v5702, %v5647
          %v5704 = vadd.f32 %v5703, %v5649
          %v5705 = vadd.f32 %v5704, %v5651
          %v5706 = vadd.f32 %v5705, %v5653
          %v5707 = vadd.f32 %v5706, %v5655
          %v5708 = vadd.f32 %v5707, %v5657
          %v5709 = vadd.f32 %v5708, %v5659
          %v5710 = vadd.f32 %v5709, %v5661
          %v5711 = vadd.f32 %v5710, %v5663
          %v5712 = vadd.f32 %v5711, %v5665
          %v5713 = vadd.f32 %v5712, %v5667
          %v5714 = vadd.f32 %v5713, %v5669
          %v5715 = vadd.f32 %v5714, %v5671
          %v5716 = vadd.f32 %v5715, %v5673
          %v5717 = vadd.f32 %v5716, %v5675
          %v5718 = vadd.f32 %v5717, %v5677
          %v5719 = vadd.f32 %v5718, %v5679
          %v5720 = vadd.f32 %v5719, %v5681
          %v5721 = vsel %vm3907, %v5683, 0.0
          %v5722 = vadd.f32 %v5720, %v5721
          %v5723 = vrot.slane %v5722, 4
          %v5724 = vadd.f32 %v5722, %v5723
          %v5725 = vrot.slane %v5724, 2
          %v5726 = vadd.f32 %v5724, %v5725
          %v5727 = vrot.slane %v5726, 1
          %v5728 = vadd.f32 %v5726, %v5727
          %v5729 = vadd.f32 %v5610, %v5612
          %v5730 = vadd.f32 %v5729, %v5614
          %v5731 = vadd.f32 %v5730, %v5616
          %v5732 = vadd.f32 %v5731, %v5618
          %v5733 = vadd.f32 %v5732, %v5620
          %v5734 = vadd.f32 %v5733, %v5622
          %v5735 = vadd.f32 %v5734, %v5624
          %v5736 = vadd.f32 %v5735, %v5626
          %v5737 = vadd.f32 %v5736, %v5628
          %v5738 = vadd.f32 %v5737, %v5630
          %v5739 = vadd.f32 %v5738, %v5632
          %v5740 = vadd.f32 %v5739, %v5634
          %v5741 = vadd.f32 %v5740, %v5636
          %v5742 = vadd.f32 %v5741, %v5638
          %v5743 = vadd.f32 %v5742, %v5640
          %v5744 = vadd.f32 %v5743, %v5642
          %v5745 = vadd.f32 %v5744, %v5644
          %v5746 = vadd.f32 %v5745, %v5646
          %v5747 = vadd.f32 %v5746, %v5648
          %v5748 = vadd.f32 %v5747, %v5650
          %v5749 = vadd.f32 %v5748, %v5652
          %v5750 = vadd.f32 %v5749, %v5654
          %v5751 = vadd.f32 %v5750, %v5656
          %v5752 = vadd.f32 %v5751, %v5658
          %v5753 = vadd.f32 %v5752, %v5660
          %v5754 = vadd.f32 %v5753, %v5662
          %v5755 = vadd.f32 %v5754, %v5664
          %v5756 = vadd.f32 %v5755, %v5666
          %v5757 = vadd.f32 %v5756, %v5668
          %v5758 = vadd.f32 %v5757, %v5670
          %v5759 = vadd.f32 %v5758, %v5672
          %v5760 = vadd.f32 %v5759, %v5674
          %v5761 = vadd.f32 %v5760, %v5676
          %v5762 = vadd.f32 %v5761, %v5678
          %v5763 = vadd.f32 %v5762, %v5680
          %v5764 = vadd.f32 %v5763, %v5682
          %v5765 = vsel %vm3907, %v5684, 0.0
          %v5766 = vadd.f32 %v5764, %v5765
          %v5767 = vrot.slane %v5766, 4
          %v5768 = vadd.f32 %v5766, %v5767
          %v5769 = vrot.slane %v5768, 2
          %v5770 = vadd.f32 %v5768, %v5769
          %v5771 = vrot.slane %v5770, 1
          %v5772 = vadd.f32 %v5770, %v5771
          %v5773 = vld [vmem:[%s5 + $0x730] sm:$0x1]
          %5775 = vset.pattern.permute.xlu0 0
          %5776 = vperm.xlu0 %5775, %v5773
          %v5777 = vpop.permute.xlu0 %5776
          %v5779 = vadd.f32 %v5728, %v5777
          %v5780 = vadd.f32 %v5772, %v5777
          %v5783 = vcombine.low %v5779, %v5780
          %v5785 = vunpack.c.l.s4 1966171168
          %v5786 = vunpack.c.0.s8 %v5785
          %v5787 = vlaneseq
          %v5788 = vshrl.u32 %v5787, 7
          %v5789 = vsub.s32 %v5786, %v5788
          %v5790 = vrot.slane %v5783, %v5789
          %v5792 = vunpack.c.l.s4 1966171168
          %v5793 = vunpack.c.0.s8 %v5792
          %v5794 = vlaneseq
          %v5795 = vshrl.u32 %v5794, 7
          %v5796 = vsub.s32 %v5793, %v5795
          %v5797 = vrot.slane %v5790, %v5796
          %v5799 = vlaneseq
          %vm5800 = vcmp.ge.s32.totalorder %v5799, 0
          %vm5801 = vcmp.lt.s32.totalorder %v5799, 256
          %vm5802 = vmand %vm5800, %vm5801
          %5803 = vst.msk [vmem:[%s280] sm:$0x3] %vm5802, %v5797
        $region60: #{critic_bn_forward.1} parent=43 // pred_fallthru
          _
        %s5804 = sand.u32 %s180, 1
        %s5805 = scalar_lea.sflag [#allocation8], %s5804
        %s5806 = sand.u32 %s180, 1
        %s5807 = smul.addr %s5806, 2
        %s5808 = scalar_lea.vmem [#allocation7], %s5807
        // Predicated region
        $region61: #{critic_bn_forward.1} parent=43 // pred_check
          %p5809 = pneg %p190
        $region62: #{critic_bn_forward.1} parent=43 // pred_check_branch
          %5811 = sbr.rel (%p5809) target = $region64
        $region63: #{critic_bn_forward.1} parent=43 // pred_region
          %s5812 = smul.u32 %s25, %s24
          %s5813 = smul.u32 2, %s5812
          %s5815 = ssub.s32 32, 32
          %5816 = vsyncadd %s5805, %s5815
          %s5817 = smul.addr %s5813, 16
          %s5818 = scalar_lea.hbm %s6, %s5817
          %s5820 = sshll.u32 %s5808, 4
          %s5821 = int_to_ptr.vmem [resolvable:$true] %s5820
          %5823 = dma.vmem_to_hbm [thread:$0]  %s5821, 32, %s5818, %s5805
        $region64: #{critic_bn_forward.1} parent=43 // pred_fallthru
          _
      $region44: #{critic_bn_forward.1} parent=5 // pred_fallthru
        _
      %p5824 = scmp.le.s32.totalorder 2, %s15
      // Predicated region
      $region65: #{critic_bn_forward.1} parent=5 // pred_check
        %p5825 = pneg %p5824
      $region66: #{critic_bn_forward.1} parent=5 // pred_check_branch
        %5827 = sbr.rel (%p5825) target = $region68
      $region67: #{critic_bn_forward.1} parent=5 // pred_region
        %s5828 = ssub.s32 %s15, 2
        // Predicated region
        $region69: #{critic_bn_forward.1} parent=67 // pred_check
          %p5829 = pneg %p196
        $region70: #{critic_bn_forward.1} parent=67 // pred_check_branch
          %5831 = sbr.rel (%p5829) target = $region72
        $region71: #{critic_bn_forward.1} parent=67 // pred_region
          %s5832 = sand.u32 %s181, 1
          %s5833 = scalar_lea.sflag [#allocation8], %s5832
          %s5834 = sand.u32 %s181, 1
          %s5835 = smul.addr %s5834, 2
          %s5836 = scalar_lea.vmem [#allocation7], %s5835
          %5837 = dma.done %s5833, 32
        $region72: #{critic_bn_forward.1} parent=67 // pred_fallthru
          _
      $region68: #{critic_bn_forward.1} parent=5 // pred_fallthru
        _
    $region6: #{critic_bn_forward.1} parent=1 // loop_footer
      %s19 = sadd.s32 1, %s15
    $region7: #{critic_bn_forward.1} parent=1 // loop_footer_branch
      %14 = sbr.rel target = $region3
    $region8: #{critic_bn_forward.1} parent=1 // loop_exit
      _
    %5838 = vsyncpa [#allocation8], 1
    %s5839 = scalar_lea.sflag [#allocation8], 1
    %5840 = vsyncpa %s5839, 1

</llo_original>
